<compile_context>
chip_gen: v6e
topology: v6e:2x2x1
jax: 0.10.0
libtpu: 0.0.40
codegen_flags: <defaults>
</compile_context>

<pallas_src>
import functools

import jax
import jax.numpy as jnp
import numpy as np
from jax import lax
from jax.experimental import pallas as pl
from jax.experimental.pallas import tpu as pltpu


# ----------------------------------------------------------------------------
# Fully fused decoder kernel (one grid step per batch element).
# ----------------------------------------------------------------------------
def _decoder_kernel(xp_ref, w1_ref, b1_ref, wkv_ref, bkv_ref, wa_ref, ba_ref,
                    wfc_ref, wff_ref, bfu_ref, wdt_ref, bdt_ref,
                    o_ref, ocpad_ref, *, H, W, kc):
    f32, bf16 = jnp.float32, jnp.bfloat16
    HW = H * W
    mid = ocpad_ref.shape[-1]
    cin = xp_ref.shape[-1]

    def im2col3x3(src_ref, C):
        # 9 shifted HxW windows stacked along channels -> (HW, 9*C) bf16 patch matrix
        return jnp.concatenate(
            [src_ref[ky:ky + H, kx:kx + W, :] for ky in range(3) for kx in range(3)],
            axis=-1).reshape(HW, 9 * C)

    # ---- Conv2d(3x3, pad=1) + folded BN + ReLU : one im2col MXU matmul (K = 9*Cin) ----
    f = jnp.dot(im2col3x3(xp_ref, cin), w1_ref[...],
                preferred_element_type=f32) + b1_ref[...]
    f = jnp.maximum(f, 0.0)                                   # (HW, mid) f32
    fb = f.astype(bf16)

    # ---- BaseOC self-attention: fused key|value 1x1 conv (single MXU pass) ----
    kv = jnp.dot(fb, wkv_ref[...], preferred_element_type=f32) + bkv_ref[...]
    qk = jnp.maximum(kv[:, :kc], 0.0).astype(bf16)            # sqrt(scale) pre-folded
    v = kv[:, kc:].astype(bf16)
    sim = lax.dot_general(qk, qk, (((1,), (1,)), ((), ())),
                          preferred_element_type=f32)         # (HW, HW); scale folded in
    sim = sim - jnp.max(sim, axis=-1, keepdims=True)
    e = jnp.exp(sim)
    prob = e * pl.reciprocal(jnp.sum(e, axis=-1, keepdims=True), approx=True)
    ctx = jnp.dot(prob.astype(bf16), v, preferred_element_type=f32)    # (HW, vc)
    ctx = jnp.dot(ctx.astype(bf16), wa_ref[...],
                  preferred_element_type=f32) + ba_ref[...]            # W: 1x1 conv

    # ---- conv_bn_dropout on cat([context, feats]) : concat-free split weights ----
    oc = (jnp.dot(ctx.astype(bf16), wfc_ref[...], preferred_element_type=f32)
          + jnp.dot(fb, wff_ref[...], preferred_element_type=f32) + bfu_ref[...])
    oc = jnp.maximum(oc, 0.0)                                 # Dropout2d: identity (eval)

    # ---- ConvTranspose2d(k=4, s=2, p=1) : single im2col matmul, phases along N ----
    # Only the 1-px halo needs (re)zeroing: the interior is fully overwritten each step.
    z = ocpad_ref.dtype
    ocpad_ref[0:1, :, :] = jnp.zeros((1, W + 2, mid), z)
    ocpad_ref[H + 1:H + 2, :, :] = jnp.zeros((1, W + 2, mid), z)
    ocpad_ref[1:H + 1, 0:1, :] = jnp.zeros((H, 1, mid), z)
    ocpad_ref[1:H + 1, W + 1:W + 2, :] = jnp.zeros((H, 1, mid), z)
    ocpad_ref[1:H + 1, 1:W + 1, :] = oc.reshape(H, W, mid).astype(bf16)
    patches = im2col3x3(ocpad_ref, mid)                       # (HW, 9*mid) bf16
    # Transposed matmul -> (4*cout, HW): lane dim = HW (multiple of 128) => dense stores.
    dec = lax.dot_general(wdt_ref[...], patches, (((1,), (1,)), ((), ())),
                          preferred_element_type=f32) + bdt_ref[...]
    o_ref[...] = dec.astype(o_ref.dtype)


# ----------------------------------------------------------------------------
# Decoder forward (Pallas wrapper): NCHW in / NCHW out, weight prep host-side.
# ----------------------------------------------------------------------------
def decoder_forward_pallas(args_nchw, params):
    x = jnp.concatenate(args_nchw, axis=1)                    # torch.cat(args, 1)
    x = jnp.transpose(x, (0, 2, 3, 1))                        # NCHW -> NHWC
    B, H, W, cin = x.shape
    HW = H * W
    # bf16 activation path + host-side zero pad for the 3x3 conv.
    xp = jnp.pad(x.astype(jnp.bfloat16), ((0, 0), (1, 1), (1, 1), (0, 0)))

    mid = params['conv1_w'].shape[-1]
    kc = params['fkey_w'].shape[-1]
    vc = params['fval_w'].shape[-1]
    cout = params['deconv_w'].shape[1]
    bf16 = jnp.bfloat16

    # Fold BN scale into the conv weights; kernel epilogue is only bias (+ReLU).
    def fold(w, b, bn, eps=1e-5):
        g, beta, mean, var = bn
        s = g / jnp.sqrt(var + eps)
        return w * s, ((b - mean) * s + beta).reshape(1, -1)

    w1, b1 = fold(params['conv1_w'], params['conv1_b'], params['bn1'])
    w1 = w1.reshape(9 * cin, mid).astype(bf16)

    # f_key / f_value fused into one matmul.  The attention scale kc**-0.5 is folded
    # into the key weights AND bias (sqrt(scale) each; ReLU commutes with a positive
    # scalar, and Q == K so QK^T picks up exactly `scale`).
    wk, bk = fold(params['fkey_w'], params['fkey_b'], params['bn_key'])
    sqrt_scale = float(kc) ** -0.25
    wk = wk.reshape(mid, kc) * sqrt_scale
    bk = bk * sqrt_scale
    wv = params['fval_w'].reshape(mid, vc)
    bv = params['fval_b'].reshape(1, vc)
    wkv = jnp.concatenate([wk, wv], axis=1).astype(bf16)      # (mid, kc+vc)
    bkv = jnp.concatenate([bk, bv], axis=1)                   # (1, kc+vc) f32

    wa = params['attW_w'].reshape(vc, mid).astype(bf16)
    ba = params['attW_b'].reshape(1, mid)
    wf, bfu = fold(params['fuse_w'], params['fuse_b'], params['bn_fuse'])
    wf = wf.reshape(2 * mid, mid)
    wfc, wff = wf[:mid].astype(bf16), wf[mid:].astype(bf16)   # cat([ctx, f]) split

    # ConvTranspose2d(k=4,s=2,p=1) as ONE im2col matmul over the 3x3 window of the
    # zero-padded (by 1) input: output pixel (2m+rh, 2n+rw) (phase rh,rw) reads window
    # tap (ky,kx) with weight wt[:, :, 3+rh-2*ky, 3+rw-2*kx] when (ky-rh),(kx-rw) in
    # {0,1}, zero otherwise.  Phases are concatenated along the output dim.
    wt = params['deconv_w']                                   # (mid, cout, 4, 4) torch
    phase_cols = []
    for rh in range(2):
        for rw in range(2):
            rows = []
            for ky in range(3):
                for kx in range(3):
                    dy, dx = ky - rh, kx - rw
                    if dy in (0, 1) and dx in (0, 1):
                        rows.append(wt[:, :, (3 - rh) - 2 * dy, (3 - rw) - 2 * dx])
                    else:
                        rows.append(jnp.zeros((mid, cout), wt.dtype))
            phase_cols.append(jnp.concatenate(rows, axis=0))  # (9*mid, cout)
    wdt = jnp.concatenate(phase_cols, axis=1).T.astype(bf16)  # (4*cout, 9*mid)
    bdt = jnp.tile(params['deconv_b'], 4).reshape(4 * cout, 1)

    kernel = functools.partial(_decoder_kernel, H=H, W=W, kc=kc)
    dec = pl.pallas_call(
        kernel,
        out_shape=jax.ShapeDtypeStruct((B, 4 * cout, HW), jnp.float32),
        grid=(B,),
        in_specs=[
            pl.BlockSpec((None, H + 2, W + 2, cin), lambda b: (b, 0, 0, 0)),
            pl.BlockSpec((9 * cin, mid), lambda b: (0, 0)),
            pl.BlockSpec((1, mid), lambda b: (0, 0)),
            pl.BlockSpec((mid, kc + vc), lambda b: (0, 0)),
            pl.BlockSpec((1, kc + vc), lambda b: (0, 0)),
            pl.BlockSpec((vc, mid), lambda b: (0, 0)),
            pl.BlockSpec((1, mid), lambda b: (0, 0)),
            pl.BlockSpec((mid, mid), lambda b: (0, 0)),
            pl.BlockSpec((mid, mid), lambda b: (0, 0)),
            pl.BlockSpec((1, mid), lambda b: (0, 0)),
            pl.BlockSpec((4 * cout, 9 * mid), lambda b: (0, 0)),
            pl.BlockSpec((4 * cout, 1), lambda b: (0, 0)),
        ],
        out_specs=pl.BlockSpec((None, 4 * cout, HW), lambda b: (b, 0, 0)),
        scratch_shapes=[pltpu.VMEM((H + 2, W + 2, mid), jnp.bfloat16)],
        compiler_params=pltpu.CompilerParams(
            dimension_semantics=("parallel",),
            # Re-derive per generation for larger tiles (v5e/v6e: up to ~100 MiB;
            # v7x: keep <= ~48 MiB of its 64 MiB for double-buffer headroom).
            vmem_limit_bytes=48 * 1024 * 1024),
    )(xp, w1, b1, wkv, bkv, wa, ba, wfc, wff, bfu, wdt, bdt)

    # Interleave deconv phases and return NCHW:
    # dec[b, (rh, rw, c), h*W + w] -> out[b, c, 2h+rh, 2w+rw]
    out = dec.reshape(B, 2, 2, cout, H, W)
    out = jnp.transpose(out, (0, 3, 4, 1, 5, 2)).reshape(B, cout, 2 * H, 2 * W)
    return out


# ----------------------------------------------------------------------------
# Pure-JAX reference (same math, lax convs, f32) for correctness check.
# ----------------------------------------------------------------------------
def decoder_forward_ref(args_nchw, p):
    hi = lax.Precision.HIGHEST
    x = jnp.concatenate(args_nchw, axis=1)
    x = jnp.transpose(x, (0, 2, 3, 1))

    def conv(x, w, b, pad):
        y = lax.conv_general_dilated(x, w, (1, 1), pad,
                                     dimension_numbers=('NHWC', 'HWIO', 'NHWC'),
                                     precision=hi)
        return y + b

    def bn_relu(x, bn, eps=1e-5):
        g, bt, m, v = bn
        return jnp.maximum((x - m) / jnp.sqrt(v + eps) * g + bt, 0.0)

    f = bn_relu(conv(x, p['conv1_w'], p['conv1_b'], [(1, 1), (1, 1)]), p['bn1'])
    qk = bn_relu(conv(f, p['fkey_w'], p['fkey_b'], [(0, 0), (0, 0)]), p['bn_key'])
    v = conv(f, p['fval_w'], p['fval_b'], [(0, 0), (0, 0)])
    B, H, W, _ = f.shape
    kc = qk.shape[-1]
    q2 = qk.reshape(B, H * W, kc)
    v2 = v.reshape(B, H * W, -1)
    sim = jnp.einsum('bik,bjk->bij', q2, q2, precision=hi) * (kc ** -0.5)
    att = jax.nn.softmax(sim, axis=-1)
    ctx = jnp.einsum('bij,bjc->bic', att, v2, precision=hi).reshape(B, H, W, -1)
    ctx = conv(ctx, p['attW_w'], p['attW_b'], [(0, 0), (0, 0)])
    cat = jnp.concatenate([ctx, f], axis=-1)
    oc = bn_relu(conv(cat, p['fuse_w'], p['fuse_b'], [(0, 0), (0, 0)]), p['bn_fuse'])
    w_hwio = jnp.transpose(jnp.flip(p['deconv_w'], (2, 3)), (2, 3, 0, 1))
    out = lax.conv_general_dilated(oc, w_hwio, (1, 1), [(2, 2), (2, 2)],
                                   lhs_dilation=(2, 2),
                                   dimension_numbers=('NHWC', 'HWIO', 'NHWC'),
                                   precision=hi)
    out = out + p['deconv_b']
    return jnp.transpose(out, (0, 3, 1, 2))


# ----------------------------------------------------------------------------
# Deterministic parameter init (shapes from the module's __init__).
# ----------------------------------------------------------------------------
def init_params(key, cin, mid, cout):
    kc, vc = mid // 2, mid // 2
    ks = jax.random.split(key, 15)

    def w(k, shape, s=0.15):
        return jax.random.normal(k, shape, jnp.float32) * s

    def bn(k, c):
        k1, k2, k3, k4 = jax.random.split(k, 4)
        gamma = 1.0 + 0.1 * jax.random.normal(k1, (c,), jnp.float32)
        beta = 0.1 * jax.random.normal(k2, (c,), jnp.float32)
        mean = 0.1 * jax.random.normal(k3, (c,), jnp.float32)
        var = 1.0 + 0.5 * jax.random.uniform(k4, (c,), jnp.float32)
        return (gamma, beta, mean, var)

    return {
        'conv1_w': w(ks[0], (3, 3, cin, mid)),  'conv1_b': w(ks[1], (mid,)),
        'bn1': bn(ks[2], mid),
        'fkey_w': w(ks[3], (1, 1, mid, kc)),    'fkey_b': w(ks[4], (kc,)),
        'bn_key': bn(ks[5], kc),
        'fval_w': w(ks[6], (1, 1, mid, vc)),    'fval_b': w(ks[7], (vc,)),
        'attW_w': w(ks[8], (1, 1, vc, mid)),    'attW_b': w(ks[9], (mid,)),
        'fuse_w': w(ks[10], (1, 1, 2 * mid, mid)), 'fuse_b': w(ks[11], (mid,)),
        'bn_fuse': bn(ks[12], mid),
        'deconv_w': w(ks[13], (mid, cout, 4, 4)),  # torch ConvTranspose2d layout
        'deconv_b': w(ks[14], (cout,)),
    }


if __name__ == "__main__":
    key = jax.random.PRNGKey(0)
    B, H, W = 2, 16, 16
    c1, c2 = 4, 4                       # Decoder.forward cats two skip tensors
    in_ch, mid, out_ch = c1 + c2, 16, 8

    k1, k2, kp = jax.random.split(key, 3)
    x1 = jax.random.normal(k1, (B, c1, H, W), jnp.float32)
    x2 = jax.random.normal(k2, (B, c2, H, W), jnp.float32)
    params = init_params(kp, in_ch, mid, out_ch)

    out = decoder_forward_pallas((x1, x2), params)
    out = jax.block_until_ready(out)
    assert out.shape == (B, out_ch, 2 * H, 2 * W)

    ref = decoder_forward_ref((x1, x2), params)
    # Tolerance accounts for bf16 MXU operands (f32 accumulation) vs. f32 reference.
    np.testing.assert_allclose(np.asarray(out), np.asarray(ref),
                               rtol=3e-2, atol=3e-2)
    print("KERNEL_OK")
</pallas_src>

<mosaic_0001>
module attributes {stable_mosaic.version = 11 : i64} {
  func.func @_decoder_kernel(%arg0: i32, %arg1: memref<1x18x18x8xbf16, #tpu.memory_space<vmem>>, %arg2: memref<72x16xbf16, #tpu.memory_space<vmem>>, %arg3: memref<1x16xf32, #tpu.memory_space<vmem>>, %arg4: memref<16x16xbf16, #tpu.memory_space<vmem>>, %arg5: memref<1x16xf32, #tpu.memory_space<vmem>>, %arg6: memref<8x16xbf16, #tpu.memory_space<vmem>>, %arg7: memref<1x16xf32, #tpu.memory_space<vmem>>, %arg8: memref<16x16xbf16, #tpu.memory_space<vmem>>, %arg9: memref<16x16xbf16, #tpu.memory_space<vmem>>, %arg10: memref<1x16xf32, #tpu.memory_space<vmem>>, %arg11: memref<32x144xbf16, #tpu.memory_space<vmem>>, %arg12: memref<32x1xf32, #tpu.memory_space<vmem>>, %arg13: memref<1x32x256xf32, #tpu.memory_space<vmem>>, %arg14: memref<18x18x16xbf16, #tpu.memory_space<vmem>>) attributes {dimension_semantics = [#tpu.dimension_semantics<parallel>], iteration_bounds = array<i64: 2>, scalar_prefetch = 0 : i64, scratch_operands = 1 : i64, tpu.core_type = #tpu.core_type<tc>, window_params = [{transform_indices = @transform_0, window_bounds = array<i64: 1, 18, 18, 8>}, {pipeline_mode = #tpu.pipeline_mode<synchronous>, transform_indices = @transform_1, window_bounds = array<i64: 72, 16>}, {pipeline_mode = #tpu.pipeline_mode<synchronous>, transform_indices = @transform_2, window_bounds = array<i64: 1, 16>}, {pipeline_mode = #tpu.pipeline_mode<synchronous>, transform_indices = @transform_3, window_bounds = array<i64: 16, 16>}, {pipeline_mode = #tpu.pipeline_mode<synchronous>, transform_indices = @transform_4, window_bounds = array<i64: 1, 16>}, {pipeline_mode = #tpu.pipeline_mode<synchronous>, transform_indices = @transform_5, window_bounds = array<i64: 8, 16>}, {pipeline_mode = #tpu.pipeline_mode<synchronous>, transform_indices = @transform_6, window_bounds = array<i64: 1, 16>}, {pipeline_mode = #tpu.pipeline_mode<synchronous>, transform_indices = @transform_7, window_bounds = array<i64: 16, 16>}, {pipeline_mode = #tpu.pipeline_mode<synchronous>, transform_indices = @transform_8, window_bounds = array<i64: 16, 16>}, {pipeline_mode = #tpu.pipeline_mode<synchronous>, transform_indices = @transform_9, window_bounds = array<i64: 1, 16>}, {pipeline_mode = #tpu.pipeline_mode<synchronous>, transform_indices = @transform_10, window_bounds = array<i64: 32, 144>}, {pipeline_mode = #tpu.pipeline_mode<synchronous>, transform_indices = @transform_11, window_bounds = array<i64: 32, 1>}, {transform_indices = @transform_12, window_bounds = array<i64: 1, 32, 256>}]} {
    %c0 = arith.constant 0 : index
    %c0_0 = arith.constant 0 : index
    %c0_1 = arith.constant 0 : index
    %c0_2 = arith.constant 0 : index
    %0 = vector.load %arg1[%c0, %c0_0, %c0_1, %c0_2] : memref<1x18x18x8xbf16, #tpu.memory_space<vmem>>, vector<1x16x16x8xbf16>
    %1 = vector.shape_cast %0 : vector<1x16x16x8xbf16> to vector<16x16x8xbf16>
    %c0_3 = arith.constant 0 : index
    %c0_4 = arith.constant 0 : index
    %c1 = arith.constant 1 : index
    %c0_5 = arith.constant 0 : index
    %2 = vector.load %arg1[%c0_3, %c0_4, %c1, %c0_5] : memref<1x18x18x8xbf16, #tpu.memory_space<vmem>>, vector<1x16x16x8xbf16>
    %3 = vector.shape_cast %2 : vector<1x16x16x8xbf16> to vector<16x16x8xbf16>
    %c0_6 = arith.constant 0 : index
    %c0_7 = arith.constant 0 : index
    %c2 = arith.constant 2 : index
    %c0_8 = arith.constant 0 : index
    %4 = vector.load %arg1[%c0_6, %c0_7, %c2, %c0_8] : memref<1x18x18x8xbf16, #tpu.memory_space<vmem>>, vector<1x16x16x8xbf16>
    %5 = vector.shape_cast %4 : vector<1x16x16x8xbf16> to vector<16x16x8xbf16>
    %c0_9 = arith.constant 0 : index
    %c1_10 = arith.constant 1 : index
    %c0_11 = arith.constant 0 : index
    %c0_12 = arith.constant 0 : index
    %6 = vector.load %arg1[%c0_9, %c1_10, %c0_11, %c0_12] : memref<1x18x18x8xbf16, #tpu.memory_space<vmem>>, vector<1x16x16x8xbf16>
    %7 = vector.shape_cast %6 : vector<1x16x16x8xbf16> to vector<16x16x8xbf16>
    %c0_13 = arith.constant 0 : index
    %c1_14 = arith.constant 1 : index
    %c1_15 = arith.constant 1 : index
    %c0_16 = arith.constant 0 : index
    %8 = vector.load %arg1[%c0_13, %c1_14, %c1_15, %c0_16] : memref<1x18x18x8xbf16, #tpu.memory_space<vmem>>, vector<1x16x16x8xbf16>
    %9 = vector.shape_cast %8 : vector<1x16x16x8xbf16> to vector<16x16x8xbf16>
    %c0_17 = arith.constant 0 : index
    %c1_18 = arith.constant 1 : index
    %c2_19 = arith.constant 2 : index
    %c0_20 = arith.constant 0 : index
    %10 = vector.load %arg1[%c0_17, %c1_18, %c2_19, %c0_20] : memref<1x18x18x8xbf16, #tpu.memory_space<vmem>>, vector<1x16x16x8xbf16>
    %11 = vector.shape_cast %10 : vector<1x16x16x8xbf16> to vector<16x16x8xbf16>
    %c0_21 = arith.constant 0 : index
    %c2_22 = arith.constant 2 : index
    %c0_23 = arith.constant 0 : index
    %c0_24 = arith.constant 0 : index
    %12 = vector.load %arg1[%c0_21, %c2_22, %c0_23, %c0_24] : memref<1x18x18x8xbf16, #tpu.memory_space<vmem>>, vector<1x16x16x8xbf16>
    %13 = vector.shape_cast %12 : vector<1x16x16x8xbf16> to vector<16x16x8xbf16>
    %c0_25 = arith.constant 0 : index
    %c2_26 = arith.constant 2 : index
    %c1_27 = arith.constant 1 : index
    %c0_28 = arith.constant 0 : index
    %14 = vector.load %arg1[%c0_25, %c2_26, %c1_27, %c0_28] : memref<1x18x18x8xbf16, #tpu.memory_space<vmem>>, vector<1x16x16x8xbf16>
    %15 = vector.shape_cast %14 : vector<1x16x16x8xbf16> to vector<16x16x8xbf16>
    %c0_29 = arith.constant 0 : index
    %c2_30 = arith.constant 2 : index
    %c2_31 = arith.constant 2 : index
    %c0_32 = arith.constant 0 : index
    %16 = vector.load %arg1[%c0_29, %c2_30, %c2_31, %c0_32] : memref<1x18x18x8xbf16, #tpu.memory_space<vmem>>, vector<1x16x16x8xbf16>
    %17 = vector.shape_cast %16 : vector<1x16x16x8xbf16> to vector<16x16x8xbf16>
    %18 = tpu.concatenate %1, %3, %5, %7, %9, %11, %13, %15, %17 in 2 : vector<16x16x8xbf16>, vector<16x16x8xbf16>, vector<16x16x8xbf16>, vector<16x16x8xbf16>, vector<16x16x8xbf16>, vector<16x16x8xbf16>, vector<16x16x8xbf16>, vector<16x16x8xbf16>, vector<16x16x8xbf16> -> vector<16x16x72xbf16>
    %19 = vector.shape_cast %18 : vector<16x16x72xbf16> to vector<256x72xbf16>
    %c0_33 = arith.constant 0 : index
    %c0_34 = arith.constant 0 : index
    %20 = vector.load %arg2[%c0_33, %c0_34] : memref<72x16xbf16, #tpu.memory_space<vmem>>, vector<72x16xbf16>
    %cst = arith.constant dense<0.000000e+00> : vector<256x16xf32>
    %21 = tpu.matmul %19, %20, %cst {dimension_numbers = #tpu.dot_dimension_numbers<[1], [0], [0], [1], [0, 0, 1, 1], [], []>} : vector<256x72xbf16>, vector<72x16xbf16>, vector<256x16xf32> -> vector<256x16xf32>
    %c0_35 = arith.constant 0 : index
    %c0_36 = arith.constant 0 : index
    %22 = vector.load %arg3[%c0_35, %c0_36] : memref<1x16xf32, #tpu.memory_space<vmem>>, vector<1x16xf32>
    %23 = vector.broadcast %22 : vector<1x16xf32> to vector<256x16xf32>
    %24 = arith.addf %21, %23 : vector<256x16xf32>
    %cst_37 = arith.constant 0.000000e+00 : f32
    %25 = vector.broadcast %cst_37 : f32 to vector<256x16xf32>
    %26 = arith.maximumf %24, %25 : vector<256x16xf32>
    %27 = arith.truncf %26 : vector<256x16xf32> to vector<256x16xbf16>
    %c0_38 = arith.constant 0 : index
    %c0_39 = arith.constant 0 : index
    %28 = vector.load %arg4[%c0_38, %c0_39] : memref<16x16xbf16, #tpu.memory_space<vmem>>, vector<16x16xbf16>
    %cst_40 = arith.constant dense<0.000000e+00> : vector<256x16xf32>
    %29 = tpu.matmul %27, %28, %cst_40 {dimension_numbers = #tpu.dot_dimension_numbers<[1], [0], [0], [1], [0, 0, 1, 1], [], []>} : vector<256x16xbf16>, vector<16x16xbf16>, vector<256x16xf32> -> vector<256x16xf32>
    %c0_41 = arith.constant 0 : index
    %c0_42 = arith.constant 0 : index
    %30 = vector.load %arg5[%c0_41, %c0_42] : memref<1x16xf32, #tpu.memory_space<vmem>>, vector<1x16xf32>
    %31 = vector.broadcast %30 : vector<1x16xf32> to vector<256x16xf32>
    %32 = arith.addf %29, %31 : vector<256x16xf32>
    %33 = vector.extract_strided_slice %32 {offsets = [0, 0], sizes = [256, 8], strides = [1, 1]} : vector<256x16xf32> to vector<256x8xf32>
    %cst_43 = arith.constant 0.000000e+00 : f32
    %34 = vector.broadcast %cst_43 : f32 to vector<256x8xf32>
    %35 = arith.maximumf %33, %34 : vector<256x8xf32>
    %36 = arith.truncf %35 : vector<256x8xf32> to vector<256x8xbf16>
    %37 = vector.extract_strided_slice %32 {offsets = [0, 8], sizes = [256, 8], strides = [1, 1]} : vector<256x16xf32> to vector<256x8xf32>
    %38 = arith.truncf %37 : vector<256x8xf32> to vector<256x8xbf16>
    %cst_44 = arith.constant dense<0.000000e+00> : vector<256x256xf32>
    %39 = tpu.matmul %36, %36, %cst_44 {dimension_numbers = #tpu.dot_dimension_numbers<[1], [1], [0], [0], [0, 0, 1, 0], [], []>} : vector<256x8xbf16>, vector<256x8xbf16>, vector<256x256xf32> -> vector<256x256xf32>
    %cst_45 = arith.constant dense<0xFF800000> : vector<256xf32>
    %40 = vector.multi_reduction <maximumf>, %39, %cst_45 [1] : vector<256x256xf32> to vector<256xf32>
    %41 = vector.shape_cast %40 : vector<256xf32> to vector<256x1xf32>
    %42 = vector.broadcast %41 : vector<256x1xf32> to vector<256x256xf32>
    %43 = arith.subf %39, %42 : vector<256x256xf32>
    %44 = math.exp %43 : vector<256x256xf32>
    %cst_46 = arith.constant dense<0.000000e+00> : vector<256xf32>
    %45 = vector.multi_reduction <add>, %44, %cst_46 [1] : vector<256x256xf32> to vector<256xf32>
    %46 = vector.shape_cast %45 : vector<256xf32> to vector<256x1xf32>
    %47 = tpu.reciprocal %46 {approx = true} : vector<256x1xf32> -> vector<256x1xf32>
    %48 = vector.broadcast %47 : vector<256x1xf32> to vector<256x256xf32>
    %49 = arith.mulf %44, %48 : vector<256x256xf32>
    %50 = arith.truncf %49 : vector<256x256xf32> to vector<256x256xbf16>
    %cst_47 = arith.constant dense<0.000000e+00> : vector<256x8xf32>
    %51 = tpu.matmul %50, %38, %cst_47 {dimension_numbers = #tpu.dot_dimension_numbers<[1], [0], [0], [1], [0, 0, 1, 1], [], []>} : vector<256x256xbf16>, vector<256x8xbf16>, vector<256x8xf32> -> vector<256x8xf32>
    %52 = arith.truncf %51 : vector<256x8xf32> to vector<256x8xbf16>
    %c0_48 = arith.constant 0 : index
    %c0_49 = arith.constant 0 : index
    %53 = vector.load %arg6[%c0_48, %c0_49] : memref<8x16xbf16, #tpu.memory_space<vmem>>, vector<8x16xbf16>
    %cst_50 = arith.constant dense<0.000000e+00> : vector<256x16xf32>
    %54 = tpu.matmul %52, %53, %cst_50 {dimension_numbers = #tpu.dot_dimension_numbers<[1], [0], [0], [1], [0, 0, 1, 1], [], []>} : vector<256x8xbf16>, vector<8x16xbf16>, vector<256x16xf32> -> vector<256x16xf32>
    %c0_51 = arith.constant 0 : index
    %c0_52 = arith.constant 0 : index
    %55 = vector.load %arg7[%c0_51, %c0_52] : memref<1x16xf32, #tpu.memory_space<vmem>>, vector<1x16xf32>
    %56 = vector.broadcast %55 : vector<1x16xf32> to vector<256x16xf32>
    %57 = arith.addf %54, %56 : vector<256x16xf32>
    %58 = arith.truncf %57 : vector<256x16xf32> to vector<256x16xbf16>
    %c0_53 = arith.constant 0 : index
    %c0_54 = arith.constant 0 : index
    %59 = vector.load %arg8[%c0_53, %c0_54] : memref<16x16xbf16, #tpu.memory_space<vmem>>, vector<16x16xbf16>
    %cst_55 = arith.constant dense<0.000000e+00> : vector<256x16xf32>
    %60 = tpu.matmul %58, %59, %cst_55 {dimension_numbers = #tpu.dot_dimension_numbers<[1], [0], [0], [1], [0, 0, 1, 1], [], []>} : vector<256x16xbf16>, vector<16x16xbf16>, vector<256x16xf32> -> vector<256x16xf32>
    %c0_56 = arith.constant 0 : index
    %c0_57 = arith.constant 0 : index
    %61 = vector.load %arg9[%c0_56, %c0_57] : memref<16x16xbf16, #tpu.memory_space<vmem>>, vector<16x16xbf16>
    %cst_58 = arith.constant dense<0.000000e+00> : vector<256x16xf32>
    %62 = tpu.matmul %27, %61, %cst_58 {dimension_numbers = #tpu.dot_dimension_numbers<[1], [0], [0], [1], [0, 0, 1, 1], [], []>} : vector<256x16xbf16>, vector<16x16xbf16>, vector<256x16xf32> -> vector<256x16xf32>
    %63 = arith.addf %60, %62 : vector<256x16xf32>
    %c0_59 = arith.constant 0 : index
    %c0_60 = arith.constant 0 : index
    %64 = vector.load %arg10[%c0_59, %c0_60] : memref<1x16xf32, #tpu.memory_space<vmem>>, vector<1x16xf32>
    %65 = vector.broadcast %64 : vector<1x16xf32> to vector<256x16xf32>
    %66 = arith.addf %63, %65 : vector<256x16xf32>
    %cst_61 = arith.constant 0.000000e+00 : f32
    %67 = vector.broadcast %cst_61 : f32 to vector<256x16xf32>
    %68 = arith.maximumf %66, %67 : vector<256x16xf32>
    %cst_62 = arith.constant 0.000000e+00 : bf16
    %69 = vector.broadcast %cst_62 : bf16 to vector<1x18x16xbf16>
    %c0_63 = arith.constant 0 : index
    %c0_64 = arith.constant 0 : index
    %c0_65 = arith.constant 0 : index
    %70 = vector.load %arg14[%c0_63, %c0_64, %c0_65] : memref<18x18x16xbf16, #tpu.memory_space<vmem>>, vector<1x18x16xbf16>
    tpu.vector_store %arg14[%c0_63, %c0_64, %c0_65], %69 {strides = array<i32>} : memref<18x18x16xbf16, #tpu.memory_space<vmem>>, vector<1x18x16xbf16>,
    %cst_66 = arith.constant 0.000000e+00 : bf16
    %71 = vector.broadcast %cst_66 : bf16 to vector<1x18x16xbf16>
    %c17 = arith.constant 17 : index
    %c0_67 = arith.constant 0 : index
    %c0_68 = arith.constant 0 : index
    %72 = vector.load %arg14[%c17, %c0_67, %c0_68] : memref<18x18x16xbf16, #tpu.memory_space<vmem>>, vector<1x18x16xbf16>
    tpu.vector_store %arg14[%c17, %c0_67, %c0_68], %71 {strides = array<i32>} : memref<18x18x16xbf16, #tpu.memory_space<vmem>>, vector<1x18x16xbf16>,
    %cst_69 = arith.constant 0.000000e+00 : bf16
    %73 = vector.broadcast %cst_69 : bf16 to vector<16x1x16xbf16>
    %c1_70 = arith.constant 1 : index
    %c0_71 = arith.constant 0 : index
    %c0_72 = arith.constant 0 : index
    %74 = vector.load %arg14[%c1_70, %c0_71, %c0_72] : memref<18x18x16xbf16, #tpu.memory_space<vmem>>, vector<16x1x16xbf16>
    tpu.vector_store %arg14[%c1_70, %c0_71, %c0_72], %73 {strides = array<i32>} : memref<18x18x16xbf16, #tpu.memory_space<vmem>>, vector<16x1x16xbf16>,
    %cst_73 = arith.constant 0.000000e+00 : bf16
    %75 = vector.broadcast %cst_73 : bf16 to vector<16x1x16xbf16>
    %c1_74 = arith.constant 1 : index
    %c17_75 = arith.constant 17 : index
    %c0_76 = arith.constant 0 : index
    %76 = vector.load %arg14[%c1_74, %c17_75, %c0_76] : memref<18x18x16xbf16, #tpu.memory_space<vmem>>, vector<16x1x16xbf16>
    tpu.vector_store %arg14[%c1_74, %c17_75, %c0_76], %75 {strides = array<i32>} : memref<18x18x16xbf16, #tpu.memory_space<vmem>>, vector<16x1x16xbf16>,
    %77 = vector.shape_cast %68 : vector<256x16xf32> to vector<16x16x16xf32>
    %78 = arith.truncf %77 : vector<16x16x16xf32> to vector<16x16x16xbf16>
    %c1_77 = arith.constant 1 : index
    %c1_78 = arith.constant 1 : index
    %c0_79 = arith.constant 0 : index
    %79 = vector.load %arg14[%c1_77, %c1_78, %c0_79] : memref<18x18x16xbf16, #tpu.memory_space<vmem>>, vector<16x16x16xbf16>
    tpu.vector_store %arg14[%c1_77, %c1_78, %c0_79], %78 {strides = array<i32>} : memref<18x18x16xbf16, #tpu.memory_space<vmem>>, vector<16x16x16xbf16>,
    %c0_80 = arith.constant 0 : index
    %c0_81 = arith.constant 0 : index
    %c0_82 = arith.constant 0 : index
    %80 = vector.load %arg14[%c0_80, %c0_81, %c0_82] : memref<18x18x16xbf16, #tpu.memory_space<vmem>>, vector<16x16x16xbf16>
    %c0_83 = arith.constant 0 : index
    %c1_84 = arith.constant 1 : index
    %c0_85 = arith.constant 0 : index
    %81 = vector.load %arg14[%c0_83, %c1_84, %c0_85] : memref<18x18x16xbf16, #tpu.memory_space<vmem>>, vector<16x16x16xbf16>
    %c0_86 = arith.constant 0 : index
    %c2_87 = arith.constant 2 : index
    %c0_88 = arith.constant 0 : index
    %82 = vector.load %arg14[%c0_86, %c2_87, %c0_88] : memref<18x18x16xbf16, #tpu.memory_space<vmem>>, vector<16x16x16xbf16>
    %c1_89 = arith.constant 1 : index
    %c0_90 = arith.constant 0 : index
    %c0_91 = arith.constant 0 : index
    %83 = vector.load %arg14[%c1_89, %c0_90, %c0_91] : memref<18x18x16xbf16, #tpu.memory_space<vmem>>, vector<16x16x16xbf16>
    %c1_92 = arith.constant 1 : index
    %c1_93 = arith.constant 1 : index
    %c0_94 = arith.constant 0 : index
    %84 = vector.load %arg14[%c1_92, %c1_93, %c0_94] : memref<18x18x16xbf16, #tpu.memory_space<vmem>>, vector<16x16x16xbf16>
    %c1_95 = arith.constant 1 : index
    %c2_96 = arith.constant 2 : index
    %c0_97 = arith.constant 0 : index
    %85 = vector.load %arg14[%c1_95, %c2_96, %c0_97] : memref<18x18x16xbf16, #tpu.memory_space<vmem>>, vector<16x16x16xbf16>
    %c2_98 = arith.constant 2 : index
    %c0_99 = arith.constant 0 : index
    %c0_100 = arith.constant 0 : index
    %86 = vector.load %arg14[%c2_98, %c0_99, %c0_100] : memref<18x18x16xbf16, #tpu.memory_space<vmem>>, vector<16x16x16xbf16>
    %c2_101 = arith.constant 2 : index
    %c1_102 = arith.constant 1 : index
    %c0_103 = arith.constant 0 : index
    %87 = vector.load %arg14[%c2_101, %c1_102, %c0_103] : memref<18x18x16xbf16, #tpu.memory_space<vmem>>, vector<16x16x16xbf16>
    %c2_104 = arith.constant 2 : index
    %c2_105 = arith.constant 2 : index
    %c0_106 = arith.constant 0 : index
    %88 = vector.load %arg14[%c2_104, %c2_105, %c0_106] : memref<18x18x16xbf16, #tpu.memory_space<vmem>>, vector<16x16x16xbf16>
    %89 = tpu.concatenate %80, %81, %82, %83, %84, %85, %86, %87, %88 in 2 : vector<16x16x16xbf16>, vector<16x16x16xbf16>, vector<16x16x16xbf16>, vector<16x16x16xbf16>, vector<16x16x16xbf16>, vector<16x16x16xbf16>, vector<16x16x16xbf16>, vector<16x16x16xbf16>, vector<16x16x16xbf16> -> vector<16x16x144xbf16>
    %90 = vector.shape_cast %89 : vector<16x16x144xbf16> to vector<256x144xbf16>
    %c0_107 = arith.constant 0 : index
    %c0_108 = arith.constant 0 : index
    %91 = vector.load %arg11[%c0_107, %c0_108] : memref<32x144xbf16, #tpu.memory_space<vmem>>, vector<32x144xbf16>
    %cst_109 = arith.constant dense<0.000000e+00> : vector<32x256xf32>
    %92 = tpu.matmul %91, %90, %cst_109 {dimension_numbers = #tpu.dot_dimension_numbers<[1], [1], [0], [0], [0, 0, 1, 0], [], []>} : vector<32x144xbf16>, vector<256x144xbf16>, vector<32x256xf32> -> vector<32x256xf32>
    %c0_110 = arith.constant 0 : index
    %c0_111 = arith.constant 0 : index
    %93 = vector.load %arg12[%c0_110, %c0_111] : memref<32x1xf32, #tpu.memory_space<vmem>>, vector<32x1xf32>
    %94 = vector.broadcast %93 : vector<32x1xf32> to vector<32x256xf32>
    %95 = arith.addf %92, %94 : vector<32x256xf32>
    %c0_112 = arith.constant 0 : index
    %c0_113 = arith.constant 0 : index
    %c0_114 = arith.constant 0 : index
    %96 = vector.load %arg13[%c0_112, %c0_113, %c0_114] : memref<1x32x256xf32, #tpu.memory_space<vmem>>, vector<1x32x256xf32>
    %97 = vector.shape_cast %96 : vector<1x32x256xf32> to vector<32x256xf32>
    %98 = vector.shape_cast %95 : vector<32x256xf32> to vector<1x32x256xf32>
    tpu.vector_store %arg13[%c0_112, %c0_113, %c0_114], %98 {strides = array<i32>} : memref<1x32x256xf32, #tpu.memory_space<vmem>>, vector<1x32x256xf32>,
    return
  }
  func.func @transform_0(%arg0: i32) -> (i32, i32, i32, i32) {
    %c0_i32 = arith.constant 0 : i32
    %c0_i32_0 = arith.constant 0 : i32
    %c0_i32_1 = arith.constant 0 : i32
    %c0_i32_2 = arith.constant 0 : i32
    return %arg0, %c0_i32, %c0_i32_0, %c0_i32_1 : i32, i32, i32, i32
  }
  func.func @transform_1(%arg0: i32) -> (i32, i32) {
    %c0_i32 = arith.constant 0 : i32
    %c0_i32_0 = arith.constant 0 : i32
    %c0_i32_1 = arith.constant 0 : i32
    return %c0_i32, %c0_i32_0 : i32, i32
  }
  func.func @transform_2(%arg0: i32) -> (i32, i32) {
    %c0_i32 = arith.constant 0 : i32
    %c0_i32_0 = arith.constant 0 : i32
    %c0_i32_1 = arith.constant 0 : i32
    return %c0_i32, %c0_i32_0 : i32, i32
  }
  func.func @transform_3(%arg0: i32) -> (i32, i32) {
    %c0_i32 = arith.constant 0 : i32
    %c0_i32_0 = arith.constant 0 : i32
    %c0_i32_1 = arith.constant 0 : i32
    return %c0_i32, %c0_i32_0 : i32, i32
  }
  func.func @transform_4(%arg0: i32) -> (i32, i32) {
    %c0_i32 = arith.constant 0 : i32
    %c0_i32_0 = arith.constant 0 : i32
    %c0_i32_1 = arith.constant 0 : i32
    return %c0_i32, %c0_i32_0 : i32, i32
  }
  func.func @transform_5(%arg0: i32) -> (i32, i32) {
    %c0_i32 = arith.constant 0 : i32
    %c0_i32_0 = arith.constant 0 : i32
    %c0_i32_1 = arith.constant 0 : i32
    return %c0_i32, %c0_i32_0 : i32, i32
  }
  func.func @transform_6(%arg0: i32) -> (i32, i32) {
    %c0_i32 = arith.constant 0 : i32
    %c0_i32_0 = arith.constant 0 : i32
    %c0_i32_1 = arith.constant 0 : i32
    return %c0_i32, %c0_i32_0 : i32, i32
  }
  func.func @transform_7(%arg0: i32) -> (i32, i32) {
    %c0_i32 = arith.constant 0 : i32
    %c0_i32_0 = arith.constant 0 : i32
    %c0_i32_1 = arith.constant 0 : i32
    return %c0_i32, %c0_i32_0 : i32, i32
  }
  func.func @transform_8(%arg0: i32) -> (i32, i32) {
    %c0_i32 = arith.constant 0 : i32
    %c0_i32_0 = arith.constant 0 : i32
    %c0_i32_1 = arith.constant 0 : i32
    return %c0_i32, %c0_i32_0 : i32, i32
  }
  func.func @transform_9(%arg0: i32) -> (i32, i32) {
    %c0_i32 = arith.constant 0 : i32
    %c0_i32_0 = arith.constant 0 : i32
    %c0_i32_1 = arith.constant 0 : i32
    return %c0_i32, %c0_i32_0 : i32, i32
  }
  func.func @transform_10(%arg0: i32) -> (i32, i32) {
    %c0_i32 = arith.constant 0 : i32
    %c0_i32_0 = arith.constant 0 : i32
    %c0_i32_1 = arith.constant 0 : i32
    return %c0_i32, %c0_i32_0 : i32, i32
  }
  func.func @transform_11(%arg0: i32) -> (i32, i32) {
    %c0_i32 = arith.constant 0 : i32
    %c0_i32_0 = arith.constant 0 : i32
    %c0_i32_1 = arith.constant 0 : i32
    return %c0_i32, %c0_i32_0 : i32, i32
  }
  func.func @transform_12(%arg0: i32) -> (i32, i32, i32) {
    %c0_i32 = arith.constant 0 : i32
    %c0_i32_0 = arith.constant 0 : i32
    %c0_i32_1 = arith.constant 0 : i32
    return %arg0, %c0_i32, %c0_i32_0 : i32, i32, i32
  }
}

</mosaic_0001>

<llo_original>
// kernel: tpu_custom_call.1
$region0: #{tpu_custom_call.1}
  #allocation0 [shape = 'u32[]', space=smem, size = 0x4, offset = 0x4, fixed_abs, tag = 'smem constant byte address 0x4 - core index']
  #allocation1 [shape = 'u32[144,128]{1,0:T(1,128)}', space=vmem, size = 0x12000, scoped, tag = 'internal scratch']
  #allocation2 [shape = 'bf16[18,18,16]{2,1,0:T(8,128)(2,1)}', space=vmem, size = 0x1b000, scoped, tag = 'scratch operand']
  %s0 = inlined_call_operand.vmem [shape: bf16[2,18,18,8], index: 0, kind: input, shape index: {}]
  %s1 = inlined_call_operand.vmem [shape: bf16[72,16], index: 1, kind: input, shape index: {}]
  %s2 = inlined_call_operand.vmem [shape: f32[1,16], index: 2, kind: input, shape index: {}]
  %s3 = inlined_call_operand.vmem [shape: bf16[16,16], index: 3, kind: input, shape index: {}]
  %s4 = inlined_call_operand.vmem [shape: f32[1,16], index: 4, kind: input, shape index: {}]
  %s5 = inlined_call_operand.vmem [shape: bf16[8,16], index: 5, kind: input, shape index: {}]
  %s6 = inlined_call_operand.vmem [shape: f32[1,16], index: 6, kind: input, shape index: {}]
  %s7 = inlined_call_operand.vmem [shape: bf16[16,16], index: 7, kind: input, shape index: {}]
  %s8 = inlined_call_operand.vmem [shape: bf16[16,16], index: 8, kind: input, shape index: {}]
  %s9 = inlined_call_operand.vmem [shape: f32[1,16], index: 9, kind: input, shape index: {}]
  %s10 = inlined_call_operand.vmem [shape: bf16[32,144], index: 10, kind: input, shape index: {}]
  %s11 = inlined_call_operand.vmem [shape: f32[32,1], index: 11, kind: input, shape index: {}]
  %s12 = inlined_call_operand.hbm [shape: f32[2,32,256], index: 12, kind: output, shape index: {}]
  %s13 = sld [smem:[#allocation0]]
  $region81: #{tpu_custom_call.1} parent=0
    _
  %s15 = ssub.s32 1, %s13
  %s16 = scalar_select 0, %s15, %s13
  $region1: #{tpu_custom_call.1} parent=0
    #allocation3 [shape = 'u8[65536]{0}', space=vmem, size = 0x10000, scoped, tag = 'output window, operand 0']
    #allocation4 [shape = 's32[2]{0}', space=sflag, size = 0x8, scoped, tag = 'scoped memory for tpu_custom_call.1']
    %17 = vsyncpa [#allocation4], 0
    %s18 = scalar_lea.sflag [#allocation4], 1
    %19 = vsyncpa %s18, 0
    loop: start=0, step=1, limit=4
    $region2: #{tpu_custom_call.1} parent=1 // loop_pre_header
      _
    $region3: #{tpu_custom_call.1} parent=1 // loop_header
      %s21 = sphi 0, %s25
      %p22 = scmp.ge.s32.totalorder %s21, 4
      %s31 = sphi 0, %s33
      %s34 = sphi 0, %s31
      %s35 = sphi 0, %s34
      %s51 = sphi 0, %s35
      %s55 = sphi 0, %s55
      %s57 = sphi 0, %s55
      %s58 = sphi 0, %s57
      %s72 = sphi 0, %s58
      %s76 = sphi 0, %s76
      %s78 = sphi 0, %s76
      %s79 = sphi 0, %s78
      %s93 = sphi 0, %s79
      %s97 = sphi 0, %s97
      %s99 = sphi 0, %s97
      %s100 = sphi 0, %s99
      %s114 = sphi 0, %s100
      %s118 = sphi 0, %s118
      %s120 = sphi 0, %s118
      %s121 = sphi 0, %s120
      %s135 = sphi 0, %s121
      %s139 = sphi 0, %s139
      %s141 = sphi 0, %s139
      %s142 = sphi 0, %s141
      %s156 = sphi 0, %s142
      %s160 = sphi 0, %s160
      %s162 = sphi 0, %s160
      %s163 = sphi 0, %s162
      %s177 = sphi 0, %s163
      %s181 = sphi 0, %s181
      %s183 = sphi 0, %s181
      %s184 = sphi 0, %s183
      %s198 = sphi 0, %s184
      %s202 = sphi 0, %s202
      %s204 = sphi 0, %s202
      %s205 = sphi 0, %s204
      %s219 = sphi 0, %s205
      %s223 = sphi 0, %s223
      %s225 = sphi 0, %s223
      %s226 = sphi 0, %s225
      %s240 = sphi 0, %s226
      %s244 = sphi 0, %s244
      %s246 = sphi 0, %s244
      %s247 = sphi 0, %s246
      %s261 = sphi 0, %s247
      %s265 = sphi 0, %s265
      %s267 = sphi 0, %s265
      %s268 = sphi 0, %s267
      %s282 = sphi 0, %s268
      %s288 = sphi 0, %s290
      %s291 = sphi 0, %s288
      %s292 = sphi 0, %s291
      %s308 = sphi 0, %s292
    $region4: #{tpu_custom_call.1} parent=1 // loop_header_branch
      %24 = sbr.rel (%p22) target = $region8
    $region5: #{tpu_custom_call.1} parent=1 // loop_body
      %s26 = ssub.s32 %s21, 1
      %s27 = ssub.s32 %s21, 2
      %s28 = sadd.s32 %s21, 1
      %s29 = ssub.s32 %s21, %s28
      %p30 = scmp.eq.s32.totalorder %s29, 0
      %s32 = sadd.s32 %s31, 1
      %s33 = scalar_select %p30, %s31, %s32
      %p36 = pneg %p30
      %p37 = scmp.eq.s32.totalorder %s21, 1
      %p38 = por %p36, %p37
      %p39 = scmp.ne.s32.totalorder %s31, %s34
      %p40 = scmp.eq.s32.totalorder %s21, 0
      %p41 = por %p39, %p40
      %p42 = scmp.ne.s32.totalorder %s31, %s34
      %p43 = scmp.eq.s32.totalorder %s26, 1
      %p44 = por %p42, %p43
      %p45 = scmp.ne.s32.totalorder %s34, %s35
      %p46 = scmp.eq.s32.totalorder %s26, 0
      %p47 = por %p45, %p46
      %p48 = scmp.ne.s32.totalorder %s34, %s35
      %p49 = scmp.eq.s32.totalorder %s27, 1
      %p50 = por %p48, %p49
      %p52 = scmp.ne.s32.totalorder %s35, %s51
      %p53 = scmp.eq.s32.totalorder %s27, 0
      %p54 = por %p52, %p53
      %s56 = sadd.s32 %s55, 1
      %p59 = scmp.eq.s32.totalorder %s21, 1
      %p60 = scmp.ne.s32.totalorder %s55, %s57
      %p61 = scmp.eq.s32.totalorder %s21, 0
      %p62 = por %p60, %p61
      %p63 = scmp.ne.s32.totalorder %s55, %s57
      %p64 = scmp.eq.s32.totalorder %s26, 1
      %p65 = por %p63, %p64
      %p66 = scmp.ne.s32.totalorder %s57, %s58
      %p67 = scmp.eq.s32.totalorder %s26, 0
      %p68 = por %p66, %p67
      %p69 = scmp.ne.s32.totalorder %s57, %s58
      %p70 = scmp.eq.s32.totalorder %s27, 1
      %p71 = por %p69, %p70
      %p73 = scmp.ne.s32.totalorder %s58, %s72
      %p74 = scmp.eq.s32.totalorder %s27, 0
      %p75 = por %p73, %p74
      %s77 = sadd.s32 %s76, 1
      %p80 = scmp.eq.s32.totalorder %s21, 1
      %p81 = scmp.ne.s32.totalorder %s76, %s78
      %p82 = scmp.eq.s32.totalorder %s21, 0
      %p83 = por %p81, %p82
      %p84 = scmp.ne.s32.totalorder %s76, %s78
      %p85 = scmp.eq.s32.totalorder %s26, 1
      %p86 = por %p84, %p85
      %p87 = scmp.ne.s32.totalorder %s78, %s79
      %p88 = scmp.eq.s32.totalorder %s26, 0
      %p89 = por %p87, %p88
      %p90 = scmp.ne.s32.totalorder %s78, %s79
      %p91 = scmp.eq.s32.totalorder %s27, 1
      %p92 = por %p90, %p91
      %p94 = scmp.ne.s32.totalorder %s79, %s93
      %p95 = scmp.eq.s32.totalorder %s27, 0
      %p96 = por %p94, %p95
      %s98 = sadd.s32 %s97, 1
      %p101 = scmp.eq.s32.totalorder %s21, 1
      %p102 = scmp.ne.s32.totalorder %s97, %s99
      %p103 = scmp.eq.s32.totalorder %s21, 0
      %p104 = por %p102, %p103
      %p105 = scmp.ne.s32.totalorder %s97, %s99
      %p106 = scmp.eq.s32.totalorder %s26, 1
      %p107 = por %p105, %p106
      %p108 = scmp.ne.s32.totalorder %s99, %s100
      %p109 = scmp.eq.s32.totalorder %s26, 0
      %p110 = por %p108, %p109
      %p111 = scmp.ne.s32.totalorder %s99, %s100
      %p112 = scmp.eq.s32.totalorder %s27, 1
      %p113 = por %p111, %p112
      %p115 = scmp.ne.s32.totalorder %s100, %s114
      %p116 = scmp.eq.s32.totalorder %s27, 0
      %p117 = por %p115, %p116
      %s119 = sadd.s32 %s118, 1
      %p122 = scmp.eq.s32.totalorder %s21, 1
      %p123 = scmp.ne.s32.totalorder %s118, %s120
      %p124 = scmp.eq.s32.totalorder %s21, 0
      %p125 = por %p123, %p124
      %p126 = scmp.ne.s32.totalorder %s118, %s120
      %p127 = scmp.eq.s32.totalorder %s26, 1
      %p128 = por %p126, %p127
      %p129 = scmp.ne.s32.totalorder %s120, %s121
      %p130 = scmp.eq.s32.totalorder %s26, 0
      %p131 = por %p129, %p130
      %p132 = scmp.ne.s32.totalorder %s120, %s121
      %p133 = scmp.eq.s32.totalorder %s27, 1
      %p134 = por %p132, %p133
      %p136 = scmp.ne.s32.totalorder %s121, %s135
      %p137 = scmp.eq.s32.totalorder %s27, 0
      %p138 = por %p136, %p137
      %s140 = sadd.s32 %s139, 1
      %p143 = scmp.eq.s32.totalorder %s21, 1
      %p144 = scmp.ne.s32.totalorder %s139, %s141
      %p145 = scmp.eq.s32.totalorder %s21, 0
      %p146 = por %p144, %p145
      %p147 = scmp.ne.s32.totalorder %s139, %s141
      %p148 = scmp.eq.s32.totalorder %s26, 1
      %p149 = por %p147, %p148
      %p150 = scmp.ne.s32.totalorder %s141, %s142
      %p151 = scmp.eq.s32.totalorder %s26, 0
      %p152 = por %p150, %p151
      %p153 = scmp.ne.s32.totalorder %s141, %s142
      %p154 = scmp.eq.s32.totalorder %s27, 1
      %p155 = por %p153, %p154
      %p157 = scmp.ne.s32.totalorder %s142, %s156
      %p158 = scmp.eq.s32.totalorder %s27, 0
      %p159 = por %p157, %p158
      %s161 = sadd.s32 %s160, 1
      %p164 = scmp.eq.s32.totalorder %s21, 1
      %p165 = scmp.ne.s32.totalorder %s160, %s162
      %p166 = scmp.eq.s32.totalorder %s21, 0
      %p167 = por %p165, %p166
      %p168 = scmp.ne.s32.totalorder %s160, %s162
      %p169 = scmp.eq.s32.totalorder %s26, 1
      %p170 = por %p168, %p169
      %p171 = scmp.ne.s32.totalorder %s162, %s163
      %p172 = scmp.eq.s32.totalorder %s26, 0
      %p173 = por %p171, %p172
      %p174 = scmp.ne.s32.totalorder %s162, %s163
      %p175 = scmp.eq.s32.totalorder %s27, 1
      %p176 = por %p174, %p175
      %p178 = scmp.ne.s32.totalorder %s163, %s177
      %p179 = scmp.eq.s32.totalorder %s27, 0
      %p180 = por %p178, %p179
      %s182 = sadd.s32 %s181, 1
      %p185 = scmp.eq.s32.totalorder %s21, 1
      %p186 = scmp.ne.s32.totalorder %s181, %s183
      %p187 = scmp.eq.s32.totalorder %s21, 0
      %p188 = por %p186, %p187
      %p189 = scmp.ne.s32.totalorder %s181, %s183
      %p190 = scmp.eq.s32.totalorder %s26, 1
      %p191 = por %p189, %p190
      %p192 = scmp.ne.s32.totalorder %s183, %s184
      %p193 = scmp.eq.s32.totalorder %s26, 0
      %p194 = por %p192, %p193
      %p195 = scmp.ne.s32.totalorder %s183, %s184
      %p196 = scmp.eq.s32.totalorder %s27, 1
      %p197 = por %p195, %p196
      %p199 = scmp.ne.s32.totalorder %s184, %s198
      %p200 = scmp.eq.s32.totalorder %s27, 0
      %p201 = por %p199, %p200
      %s203 = sadd.s32 %s202, 1
      %p206 = scmp.eq.s32.totalorder %s21, 1
      %p207 = scmp.ne.s32.totalorder %s202, %s204
      %p208 = scmp.eq.s32.totalorder %s21, 0
      %p209 = por %p207, %p208
      %p210 = scmp.ne.s32.totalorder %s202, %s204
      %p211 = scmp.eq.s32.totalorder %s26, 1
      %p212 = por %p210, %p211
      %p213 = scmp.ne.s32.totalorder %s204, %s205
      %p214 = scmp.eq.s32.totalorder %s26, 0
      %p215 = por %p213, %p214
      %p216 = scmp.ne.s32.totalorder %s204, %s205
      %p217 = scmp.eq.s32.totalorder %s27, 1
      %p218 = por %p216, %p217
      %p220 = scmp.ne.s32.totalorder %s205, %s219
      %p221 = scmp.eq.s32.totalorder %s27, 0
      %p222 = por %p220, %p221
      %s224 = sadd.s32 %s223, 1
      %p227 = scmp.eq.s32.totalorder %s21, 1
      %p228 = scmp.ne.s32.totalorder %s223, %s225
      %p229 = scmp.eq.s32.totalorder %s21, 0
      %p230 = por %p228, %p229
      %p231 = scmp.ne.s32.totalorder %s223, %s225
      %p232 = scmp.eq.s32.totalorder %s26, 1
      %p233 = por %p231, %p232
      %p234 = scmp.ne.s32.totalorder %s225, %s226
      %p235 = scmp.eq.s32.totalorder %s26, 0
      %p236 = por %p234, %p235
      %p237 = scmp.ne.s32.totalorder %s225, %s226
      %p238 = scmp.eq.s32.totalorder %s27, 1
      %p239 = por %p237, %p238
      %p241 = scmp.ne.s32.totalorder %s226, %s240
      %p242 = scmp.eq.s32.totalorder %s27, 0
      %p243 = por %p241, %p242
      %s245 = sadd.s32 %s244, 1
      %p248 = scmp.eq.s32.totalorder %s21, 1
      %p249 = scmp.ne.s32.totalorder %s244, %s246
      %p250 = scmp.eq.s32.totalorder %s21, 0
      %p251 = por %p249, %p250
      %p252 = scmp.ne.s32.totalorder %s244, %s246
      %p253 = scmp.eq.s32.totalorder %s26, 1
      %p254 = por %p252, %p253
      %p255 = scmp.ne.s32.totalorder %s246, %s247
      %p256 = scmp.eq.s32.totalorder %s26, 0
      %p257 = por %p255, %p256
      %p258 = scmp.ne.s32.totalorder %s246, %s247
      %p259 = scmp.eq.s32.totalorder %s27, 1
      %p260 = por %p258, %p259
      %p262 = scmp.ne.s32.totalorder %s247, %s261
      %p263 = scmp.eq.s32.totalorder %s27, 0
      %p264 = por %p262, %p263
      %s266 = sadd.s32 %s265, 1
      %p269 = scmp.eq.s32.totalorder %s21, 1
      %p270 = scmp.ne.s32.totalorder %s265, %s267
      %p271 = scmp.eq.s32.totalorder %s21, 0
      %p272 = por %p270, %p271
      %p273 = scmp.ne.s32.totalorder %s265, %s267
      %p274 = scmp.eq.s32.totalorder %s26, 1
      %p275 = por %p273, %p274
      %p276 = scmp.ne.s32.totalorder %s267, %s268
      %p277 = scmp.eq.s32.totalorder %s26, 0
      %p278 = por %p276, %p277
      %p279 = scmp.ne.s32.totalorder %s267, %s268
      %p280 = scmp.eq.s32.totalorder %s27, 1
      %p281 = por %p279, %p280
      %p283 = scmp.ne.s32.totalorder %s268, %s282
      %p284 = scmp.eq.s32.totalorder %s27, 0
      %p285 = por %p283, %p284
      %s286 = ssub.s32 %s21, %s28
      %p287 = scmp.eq.s32.totalorder %s286, 0
      %s289 = sadd.s32 %s288, 1
      %s290 = scalar_select %p287, %s288, %s289
      %p293 = pneg %p287
      %p294 = scmp.eq.s32.totalorder %s21, 1
      %p295 = por %p293, %p294
      %p296 = scmp.ne.s32.totalorder %s288, %s291
      %p297 = scmp.eq.s32.totalorder %s21, 0
      %p298 = por %p296, %p297
      %p299 = scmp.ne.s32.totalorder %s288, %s291
      %p300 = scmp.eq.s32.totalorder %s26, 1
      %p301 = por %p299, %p300
      %p302 = scmp.ne.s32.totalorder %s291, %s292
      %p303 = scmp.eq.s32.totalorder %s26, 0
      %p304 = por %p302, %p303
      %p305 = scmp.ne.s32.totalorder %s291, %s292
      %p306 = scmp.eq.s32.totalorder %s27, 1
      %p307 = por %p305, %p306
      %p309 = scmp.ne.s32.totalorder %s292, %s308
      %p310 = scmp.eq.s32.totalorder %s27, 0
      %p311 = por %p309, %p310
      %p312 = scmp.le.s32.totalorder 1, %s21
      %p313 = scmp.lt.s32.totalorder %s21, 3
      %p314 = pnand %p312, %p313
      %p315 = pneg %p314
      // Predicated region
      $region9: #{tpu_custom_call.1} parent=5 // pred_check
        _
      $region10: #{tpu_custom_call.1} parent=5 // pred_check_branch
        %317 = sbr.rel (%p314) target = $region12
      $region11: #{tpu_custom_call.1} parent=5 // pred_region
        %s318 = ssub.s32 %s21, 1
        // Predicated region
        $region13: #{tpu_custom_call.1} parent=11 // pred_check
          %p319 = pneg %p68
        $region14: #{tpu_custom_call.1} parent=11 // pred_check_branch
          %321 = sbr.rel (%p319) target = $region16
        $region15: #{tpu_custom_call.1} parent=11 // pred_region
          _
        $region16: #{tpu_custom_call.1} parent=11 // pred_fallthru
          _
        // Predicated region
        $region17: #{tpu_custom_call.1} parent=11 // pred_check
          %p322 = pneg %p89
        $region18: #{tpu_custom_call.1} parent=11 // pred_check_branch
          %324 = sbr.rel (%p322) target = $region20
        $region19: #{tpu_custom_call.1} parent=11 // pred_region
          _
        $region20: #{tpu_custom_call.1} parent=11 // pred_fallthru
          _
        // Predicated region
        $region21: #{tpu_custom_call.1} parent=11 // pred_check
          %p325 = pneg %p110
        $region22: #{tpu_custom_call.1} parent=11 // pred_check_branch
          %327 = sbr.rel (%p325) target = $region24
        $region23: #{tpu_custom_call.1} parent=11 // pred_region
          _
        $region24: #{tpu_custom_call.1} parent=11 // pred_fallthru
          _
        // Predicated region
        $region25: #{tpu_custom_call.1} parent=11 // pred_check
          %p328 = pneg %p131
        $region26: #{tpu_custom_call.1} parent=11 // pred_check_branch
          %330 = sbr.rel (%p328) target = $region28
        $region27: #{tpu_custom_call.1} parent=11 // pred_region
          _
        $region28: #{tpu_custom_call.1} parent=11 // pred_fallthru
          _
        // Predicated region
        $region29: #{tpu_custom_call.1} parent=11 // pred_check
          %p331 = pneg %p152
        $region30: #{tpu_custom_call.1} parent=11 // pred_check_branch
          %333 = sbr.rel (%p331) target = $region32
        $region31: #{tpu_custom_call.1} parent=11 // pred_region
          _
        $region32: #{tpu_custom_call.1} parent=11 // pred_fallthru
          _
        // Predicated region
        $region33: #{tpu_custom_call.1} parent=11 // pred_check
          %p334 = pneg %p173
        $region34: #{tpu_custom_call.1} parent=11 // pred_check_branch
          %336 = sbr.rel (%p334) target = $region36
        $region35: #{tpu_custom_call.1} parent=11 // pred_region
          _
        $region36: #{tpu_custom_call.1} parent=11 // pred_fallthru
          _
        // Predicated region
        $region37: #{tpu_custom_call.1} parent=11 // pred_check
          %p337 = pneg %p194
        $region38: #{tpu_custom_call.1} parent=11 // pred_check_branch
          %339 = sbr.rel (%p337) target = $region40
        $region39: #{tpu_custom_call.1} parent=11 // pred_region
          _
        $region40: #{tpu_custom_call.1} parent=11 // pred_fallthru
          _
        // Predicated region
        $region41: #{tpu_custom_call.1} parent=11 // pred_check
          %p340 = pneg %p215
        $region42: #{tpu_custom_call.1} parent=11 // pred_check_branch
          %342 = sbr.rel (%p340) target = $region44
        $region43: #{tpu_custom_call.1} parent=11 // pred_region
          _
        $region44: #{tpu_custom_call.1} parent=11 // pred_fallthru
          _
        // Predicated region
        $region45: #{tpu_custom_call.1} parent=11 // pred_check
          %p343 = pneg %p236
        $region46: #{tpu_custom_call.1} parent=11 // pred_check_branch
          %345 = sbr.rel (%p343) target = $region48
        $region47: #{tpu_custom_call.1} parent=11 // pred_region
          _
        $region48: #{tpu_custom_call.1} parent=11 // pred_fallthru
          _
        // Predicated region
        $region49: #{tpu_custom_call.1} parent=11 // pred_check
          %p346 = pneg %p257
        $region50: #{tpu_custom_call.1} parent=11 // pred_check_branch
          %348 = sbr.rel (%p346) target = $region52
        $region51: #{tpu_custom_call.1} parent=11 // pred_region
          _
        $region52: #{tpu_custom_call.1} parent=11 // pred_fallthru
          _
        // Predicated region
        $region53: #{tpu_custom_call.1} parent=11 // pred_check
          %p349 = pneg %p278
        $region54: #{tpu_custom_call.1} parent=11 // pred_check_branch
          %351 = sbr.rel (%p349) target = $region56
        $region55: #{tpu_custom_call.1} parent=11 // pred_region
          _
        $region56: #{tpu_custom_call.1} parent=11 // pred_fallthru
          _
      $region12: #{tpu_custom_call.1} parent=5 // pred_fallthru
        _
      %p352 = scmp.lt.s32.totalorder %s21, 2
      // Predicated region
      $region57: #{tpu_custom_call.1} parent=5 // pred_check
        %p353 = pneg %p352
      $region58: #{tpu_custom_call.1} parent=5 // pred_check_branch
        %355 = sbr.rel (%p353) target = $region60
      $region59: #{tpu_custom_call.1} parent=5 // pred_region
        // Predicated region
        $region61: #{tpu_custom_call.1} parent=59 // pred_check
          %p356 = pneg %p41
        $region62: #{tpu_custom_call.1} parent=59 // pred_check_branch
          %358 = sbr.rel (%p356) target = $region64
        $region63: #{tpu_custom_call.1} parent=59 // pred_region
          %p359 = scmp.lt.s32.totalorder %s21, 1
          %s360 = scalar_select %p359, %s21, 1
          %s361 = smul.addr %s360, 54
          %s362 = smul.addr %s361, 4
          %s363 = scalar_lea.vmem %s0, %s362
        $region64: #{tpu_custom_call.1} parent=59 // pred_fallthru
          _
      $region60: #{tpu_custom_call.1} parent=5 // pred_fallthru
        _
      %p364 = scmp.le.s32.totalorder 1, %s21
      %p365 = scmp.lt.s32.totalorder %s21, 3
      %p366 = pnand %p364, %p365
      %p367 = pneg %p366
      // Predicated region
      $region65: #{tpu_custom_call.1} parent=5 // pred_check
        _
      $region66: #{tpu_custom_call.1} parent=5 // pred_check_branch
        %369 = sbr.rel (%p366) target = $region68
      $region67: #{tpu_custom_call.1} parent=5 // pred_region
        %s370 = ssub.s32 %s21, 1
        %p371 = scmp.lt.s32.totalorder %s26, 1
        %s372 = scalar_select %p371, %s26, 1
        %s373 = smul.addr %s372, 54
        %s374 = smul.addr %s373, 4
        %s375 = scalar_lea.vmem %s0, %s374
        %p376 = pneg %p47
        %p377 = pneg %p44
        %p378 = pneg %p68
        %p379 = pneg %p65
        %p380 = pneg %p89
        %p381 = pneg %p86
        %p382 = pneg %p110
        %p383 = pneg %p107
        %p384 = pneg %p131
        %p385 = pneg %p128
        %p386 = pneg %p152
        %p387 = pneg %p149
        %p388 = pneg %p173
        %p389 = pneg %p170
        %p390 = pneg %p194
        %p391 = pneg %p191
        %p392 = pneg %p215
        %p393 = pneg %p212
        %p394 = pneg %p236
        %p395 = pneg %p233
        %p396 = pneg %p257
        %p397 = pneg %p254
        %p398 = pneg %p278
        %p399 = pneg %p275
        %p400 = pneg %p304
        %p401 = pneg %p301
        %s402 = sand.u32 %s291, 1
        %s403 = scalar_lea.sflag [#allocation4], %s402
        %s404 = sand.u32 %s291, 1
        %s405 = smul.addr %s404, 64
        %s406 = scalar_lea.vmem [#allocation3], %s405
        %p407 = scmp.lt.s32.totalorder %s26, 1
        %s408 = scalar_select %p407, %s26, 1
        %s409 = smul.addr %s408, 54
        %s410 = smul.addr %s409, 4
        %s411 = scalar_lea.vmem %s0, %s410
        %v413 = vld [vmem:[%s411] sm:$0xf]
        %v414 = vld [vmem:[%s411 + $0x4] sm:$0xf]
        %v415 = vld [vmem:[%s411 + $0xc] sm:$0xf]
        %v416 = vld [vmem:[%s411 + $0x10] sm:$0xf]
        %v417 = vld [vmem:[%s411 + $0x18] sm:$0xf]
        %v418 = vld [vmem:[%s411 + $0x1c] sm:$0xf]
        %v419 = vld [vmem:[%s411 + $0x24] sm:$0xf]
        %v420 = vld [vmem:[%s411 + $0x28] sm:$0xf]
        %v421 = vld [vmem:[%s411 + $0x30] sm:$0xf]
        %v422 = vld [vmem:[%s411 + $0x34] sm:$0xf]
        %v423 = vld [vmem:[%s411 + $0x3c] sm:$0xf]
        %v424 = vld [vmem:[%s411 + $0x40] sm:$0xf]
        %v425 = vld [vmem:[%s411 + $0x48] sm:$0xf]
        %v426 = vld [vmem:[%s411 + $0x4c] sm:$0xf]
        %v427 = vld [vmem:[%s411 + $0x54] sm:$0xf]
        %v428 = vld [vmem:[%s411 + $0x58] sm:$0xf]
        %v429 = vld [vmem:[%s411 + $0x60] sm:$0xf]
        %v430 = vld [vmem:[%s411 + $0x64] sm:$0xf]
        %v431 = vld [vmem:[%s411 + $0x6c] sm:$0xf]
        %v432 = vld [vmem:[%s411 + $0x70] sm:$0xf]
        %v433 = vld [vmem:[%s411 + $0x78] sm:$0xf]
        %v434 = vld [vmem:[%s411 + $0x7c] sm:$0xf]
        %v435 = vld [vmem:[%s411 + $0x84] sm:$0xf]
        %v436 = vld [vmem:[%s411 + $0x88] sm:$0xf]
        %v437 = vld [vmem:[%s411 + $0x90] sm:$0xf]
        %v438 = vld [vmem:[%s411 + $0x94] sm:$0xf]
        %v439 = vld [vmem:[%s411 + $0x9c] sm:$0xf]
        %v440 = vld [vmem:[%s411 + $0xa0] sm:$0xf]
        %v441 = vld [vmem:[%s411 + $0xa8] sm:$0xf]
        %v442 = vld [vmem:[%s411 + $0xac] sm:$0xf]
        %v443 = vld [vmem:[%s411 + $0xb4] sm:$0xf]
        %v444 = vld [vmem:[%s411 + $0xb8] sm:$0xf]
        %v445 = vld [vmem:[%s411 + $0x8] sm:$0x1]
        %v446 = vld [vmem:[%s411 + $0x14] sm:$0x1]
        %v447 = vld [vmem:[%s411 + $0x20] sm:$0x1]
        %v448 = vld [vmem:[%s411 + $0x2c] sm:$0x1]
        %v449 = vld [vmem:[%s411 + $0x38] sm:$0x1]
        %v450 = vld [vmem:[%s411 + $0x44] sm:$0x1]
        %v451 = vld [vmem:[%s411 + $0x50] sm:$0x1]
        %v452 = vld [vmem:[%s411 + $0x5c] sm:$0x1]
        %v453 = vld [vmem:[%s411 + $0x68] sm:$0x1]
        %v454 = vld [vmem:[%s411 + $0x74] sm:$0x1]
        %v455 = vld [vmem:[%s411 + $0x80] sm:$0x1]
        %v456 = vld [vmem:[%s411 + $0x8c] sm:$0x1]
        %v457 = vld [vmem:[%s411 + $0x98] sm:$0x1]
        %v458 = vld [vmem:[%s411 + $0xa4] sm:$0x1]
        %v459 = vld [vmem:[%s411 + $0xb0] sm:$0x1]
        %v460 = vld [vmem:[%s411 + $0xbc] sm:$0x1]
        %v461 = vld [vmem:[%s411] sm:$0xe]
        %v462 = vld [vmem:[%s411 + $0xc] sm:$0xe]
        %v463 = vld [vmem:[%s411 + $0x18] sm:$0xe]
        %v464 = vld [vmem:[%s411 + $0x24] sm:$0xe]
        %v465 = vld [vmem:[%s411 + $0x30] sm:$0xe]
        %v466 = vld [vmem:[%s411 + $0x3c] sm:$0xe]
        %v467 = vld [vmem:[%s411 + $0x48] sm:$0xe]
        %v468 = vld [vmem:[%s411 + $0x54] sm:$0xe]
        %v469 = vld [vmem:[%s411 + $0x60] sm:$0xe]
        %v470 = vld [vmem:[%s411 + $0x6c] sm:$0xe]
        %v471 = vld [vmem:[%s411 + $0x78] sm:$0xe]
        %v472 = vld [vmem:[%s411 + $0x84] sm:$0xe]
        %v473 = vld [vmem:[%s411 + $0x90] sm:$0xe]
        %v474 = vld [vmem:[%s411 + $0x9c] sm:$0xe]
        %v475 = vld [vmem:[%s411 + $0xa8] sm:$0xe]
        %v476 = vld [vmem:[%s411 + $0xb4] sm:$0xe]
        %s477 = scalar_lea.vmem %s411, 12
        %v478 = vld [vmem:[%s477] sm:$0xf]
        %v479 = vld [vmem:[%s477 + $0x4] sm:$0xf]
        %v480 = vld [vmem:[%s477 + $0xc] sm:$0xf]
        %v481 = vld [vmem:[%s477 + $0x10] sm:$0xf]
        %v482 = vld [vmem:[%s477 + $0x18] sm:$0xf]
        %v483 = vld [vmem:[%s477 + $0x1c] sm:$0xf]
        %v484 = vld [vmem:[%s477 + $0x24] sm:$0xf]
        %v485 = vld [vmem:[%s477 + $0x28] sm:$0xf]
        %v486 = vld [vmem:[%s477 + $0x30] sm:$0xf]
        %v487 = vld [vmem:[%s477 + $0x34] sm:$0xf]
        %v488 = vld [vmem:[%s477 + $0x3c] sm:$0xf]
        %v489 = vld [vmem:[%s477 + $0x40] sm:$0xf]
        %v490 = vld [vmem:[%s477 + $0x48] sm:$0xf]
        %v491 = vld [vmem:[%s477 + $0x4c] sm:$0xf]
        %v492 = vld [vmem:[%s477 + $0x54] sm:$0xf]
        %v493 = vld [vmem:[%s477 + $0x58] sm:$0xf]
        %v494 = vld [vmem:[%s477 + $0x60] sm:$0xf]
        %v495 = vld [vmem:[%s477 + $0x64] sm:$0xf]
        %v496 = vld [vmem:[%s477 + $0x6c] sm:$0xf]
        %v497 = vld [vmem:[%s477 + $0x70] sm:$0xf]
        %v498 = vld [vmem:[%s477 + $0x78] sm:$0xf]
        %v499 = vld [vmem:[%s477 + $0x7c] sm:$0xf]
        %v500 = vld [vmem:[%s477 + $0x84] sm:$0xf]
        %v501 = vld [vmem:[%s477 + $0x88] sm:$0xf]
        %v502 = vld [vmem:[%s477 + $0x90] sm:$0xf]
        %v503 = vld [vmem:[%s477 + $0x94] sm:$0xf]
        %v504 = vld [vmem:[%s477 + $0x9c] sm:$0xf]
        %v505 = vld [vmem:[%s477 + $0xa0] sm:$0xf]
        %v506 = vld [vmem:[%s477 + $0xa8] sm:$0xf]
        %v507 = vld [vmem:[%s477 + $0xac] sm:$0xf]
        %v508 = vld [vmem:[%s477 + $0xb4] sm:$0xf]
        %v509 = vld [vmem:[%s477 + $0xb8] sm:$0xf]
        %v510 = vld [vmem:[%s477 + $0x8] sm:$0x1]
        %v511 = vld [vmem:[%s477 + $0x14] sm:$0x1]
        %v512 = vld [vmem:[%s477 + $0x20] sm:$0x1]
        %v513 = vld [vmem:[%s477 + $0x2c] sm:$0x1]
        %v514 = vld [vmem:[%s477 + $0x38] sm:$0x1]
        %v515 = vld [vmem:[%s477 + $0x44] sm:$0x1]
        %v516 = vld [vmem:[%s477 + $0x50] sm:$0x1]
        %v517 = vld [vmem:[%s477 + $0x5c] sm:$0x1]
        %v518 = vld [vmem:[%s477 + $0x68] sm:$0x1]
        %v519 = vld [vmem:[%s477 + $0x74] sm:$0x1]
        %v520 = vld [vmem:[%s477 + $0x80] sm:$0x1]
        %v521 = vld [vmem:[%s477 + $0x8c] sm:$0x1]
        %v522 = vld [vmem:[%s477 + $0x98] sm:$0x1]
        %v523 = vld [vmem:[%s477 + $0xa4] sm:$0x1]
        %v524 = vld [vmem:[%s477 + $0xb0] sm:$0x1]
        %v525 = vld [vmem:[%s477 + $0xbc] sm:$0x1]
        %v526 = vld [vmem:[%s477] sm:$0xe]
        %v527 = vld [vmem:[%s477 + $0xc] sm:$0xe]
        %v528 = vld [vmem:[%s477 + $0x18] sm:$0xe]
        %v529 = vld [vmem:[%s477 + $0x24] sm:$0xe]
        %v530 = vld [vmem:[%s477 + $0x30] sm:$0xe]
        %v531 = vld [vmem:[%s477 + $0x3c] sm:$0xe]
        %v532 = vld [vmem:[%s477 + $0x48] sm:$0xe]
        %v533 = vld [vmem:[%s477 + $0x54] sm:$0xe]
        %v534 = vld [vmem:[%s477 + $0x60] sm:$0xe]
        %v535 = vld [vmem:[%s477 + $0x6c] sm:$0xe]
        %v536 = vld [vmem:[%s477 + $0x78] sm:$0xe]
        %v537 = vld [vmem:[%s477 + $0x84] sm:$0xe]
        %v538 = vld [vmem:[%s477 + $0x90] sm:$0xe]
        %v539 = vld [vmem:[%s477 + $0x9c] sm:$0xe]
        %v540 = vld [vmem:[%s477 + $0xa8] sm:$0xe]
        %v541 = vld [vmem:[%s477 + $0xb4] sm:$0xe]
        %s542 = scalar_lea.vmem %s411, 24
        %v543 = vld [vmem:[%s542] sm:$0xf]
        %v544 = vld [vmem:[%s542 + $0x4] sm:$0xf]
        %v545 = vld [vmem:[%s542 + $0xc] sm:$0xf]
        %v546 = vld [vmem:[%s542 + $0x10] sm:$0xf]
        %v547 = vld [vmem:[%s542 + $0x18] sm:$0xf]
        %v548 = vld [vmem:[%s542 + $0x1c] sm:$0xf]
        %v549 = vld [vmem:[%s542 + $0x24] sm:$0xf]
        %v550 = vld [vmem:[%s542 + $0x28] sm:$0xf]
        %v551 = vld [vmem:[%s542 + $0x30] sm:$0xf]
        %v552 = vld [vmem:[%s542 + $0x34] sm:$0xf]
        %v553 = vld [vmem:[%s542 + $0x3c] sm:$0xf]
        %v554 = vld [vmem:[%s542 + $0x40] sm:$0xf]
        %v555 = vld [vmem:[%s542 + $0x48] sm:$0xf]
        %v556 = vld [vmem:[%s542 + $0x4c] sm:$0xf]
        %v557 = vld [vmem:[%s542 + $0x54] sm:$0xf]
        %v558 = vld [vmem:[%s542 + $0x58] sm:$0xf]
        %v559 = vld [vmem:[%s542 + $0x60] sm:$0xf]
        %v560 = vld [vmem:[%s542 + $0x64] sm:$0xf]
        %v561 = vld [vmem:[%s542 + $0x6c] sm:$0xf]
        %v562 = vld [vmem:[%s542 + $0x70] sm:$0xf]
        %v563 = vld [vmem:[%s542 + $0x78] sm:$0xf]
        %v564 = vld [vmem:[%s542 + $0x7c] sm:$0xf]
        %v565 = vld [vmem:[%s542 + $0x84] sm:$0xf]
        %v566 = vld [vmem:[%s542 + $0x88] sm:$0xf]
        %v567 = vld [vmem:[%s542 + $0x90] sm:$0xf]
        %v568 = vld [vmem:[%s542 + $0x94] sm:$0xf]
        %v569 = vld [vmem:[%s542 + $0x9c] sm:$0xf]
        %v570 = vld [vmem:[%s542 + $0xa0] sm:$0xf]
        %v571 = vld [vmem:[%s542 + $0xa8] sm:$0xf]
        %v572 = vld [vmem:[%s542 + $0xac] sm:$0xf]
        %v573 = vld [vmem:[%s542 + $0xb4] sm:$0xf]
        %v574 = vld [vmem:[%s542 + $0xb8] sm:$0xf]
        %v575 = vld [vmem:[%s542 + $0x8] sm:$0x1]
        %v576 = vld [vmem:[%s542 + $0x14] sm:$0x1]
        %v577 = vld [vmem:[%s542 + $0x20] sm:$0x1]
        %v578 = vld [vmem:[%s542 + $0x2c] sm:$0x1]
        %v579 = vld [vmem:[%s542 + $0x38] sm:$0x1]
        %v580 = vld [vmem:[%s542 + $0x44] sm:$0x1]
        %v581 = vld [vmem:[%s542 + $0x50] sm:$0x1]
        %v582 = vld [vmem:[%s542 + $0x5c] sm:$0x1]
        %v583 = vld [vmem:[%s542 + $0x68] sm:$0x1]
        %v584 = vld [vmem:[%s542 + $0x74] sm:$0x1]
        %v585 = vld [vmem:[%s542 + $0x80] sm:$0x1]
        %v586 = vld [vmem:[%s542 + $0x8c] sm:$0x1]
        %v587 = vld [vmem:[%s542 + $0x98] sm:$0x1]
        %v588 = vld [vmem:[%s542 + $0xa4] sm:$0x1]
        %v589 = vld [vmem:[%s542 + $0xb0] sm:$0x1]
        %v590 = vld [vmem:[%s542 + $0xbc] sm:$0x1]
        %v591 = vld [vmem:[%s542] sm:$0xe]
        %v592 = vld [vmem:[%s542 + $0xc] sm:$0xe]
        %v593 = vld [vmem:[%s542 + $0x18] sm:$0xe]
        %v594 = vld [vmem:[%s542 + $0x24] sm:$0xe]
        %v595 = vld [vmem:[%s542 + $0x30] sm:$0xe]
        %v596 = vld [vmem:[%s542 + $0x3c] sm:$0xe]
        %v597 = vld [vmem:[%s542 + $0x48] sm:$0xe]
        %v598 = vld [vmem:[%s542 + $0x54] sm:$0xe]
        %v599 = vld [vmem:[%s542 + $0x60] sm:$0xe]
        %v600 = vld [vmem:[%s542 + $0x6c] sm:$0xe]
        %v601 = vld [vmem:[%s542 + $0x78] sm:$0xe]
        %v602 = vld [vmem:[%s542 + $0x84] sm:$0xe]
        %v603 = vld [vmem:[%s542 + $0x90] sm:$0xe]
        %v604 = vld [vmem:[%s542 + $0x9c] sm:$0xe]
        %v605 = vld [vmem:[%s542 + $0xa8] sm:$0xe]
        %v606 = vld [vmem:[%s542 + $0xb4] sm:$0xe]
        %v639 = vunpack.c.l.b16 %v413
        %v640 = vunpack.c.l.b16 %v414
        %v641 = vunpack.c.l.b16 %v415
        %v642 = vunpack.c.l.b16 %v416
        %v643 = vunpack.c.l.b16 %v417
        %v644 = vunpack.c.l.b16 %v418
        %v645 = vunpack.c.l.b16 %v419
        %v646 = vunpack.c.l.b16 %v420
        %v647 = vunpack.c.l.b16 %v421
        %v648 = vunpack.c.l.b16 %v422
        %v649 = vunpack.c.l.b16 %v423
        %v650 = vunpack.c.l.b16 %v424
        %v651 = vunpack.c.l.b16 %v425
        %v652 = vunpack.c.l.b16 %v426
        %v653 = vunpack.c.l.b16 %v427
        %v654 = vunpack.c.l.b16 %v428
        %v655 = vunpack.c.l.b16 %v429
        %v656 = vunpack.c.l.b16 %v430
        %v657 = vunpack.c.l.b16 %v431
        %v658 = vunpack.c.l.b16 %v432
        %v659 = vunpack.c.l.b16 %v433
        %v660 = vunpack.c.l.b16 %v434
        %v661 = vunpack.c.l.b16 %v435
        %v662 = vunpack.c.l.b16 %v436
        %v663 = vunpack.c.l.b16 %v437
        %v664 = vunpack.c.l.b16 %v438
        %v665 = vunpack.c.l.b16 %v439
        %v666 = vunpack.c.l.b16 %v440
        %v667 = vunpack.c.l.b16 %v441
        %v668 = vunpack.c.l.b16 %v442
        %v669 = vunpack.c.l.b16 %v443
        %v670 = vunpack.c.l.b16 %v444
        %v671 = vpack.c.b16 %v640, %v639
        %v672 = vpack.c.b16 %v642, %v641
        %v673 = vpack.c.b16 %v644, %v643
        %v674 = vpack.c.b16 %v646, %v645
        %v675 = vpack.c.b16 %v648, %v647
        %v676 = vpack.c.b16 %v650, %v649
        %v677 = vpack.c.b16 %v652, %v651
        %v678 = vpack.c.b16 %v654, %v653
        %v679 = vpack.c.b16 %v656, %v655
        %v680 = vpack.c.b16 %v658, %v657
        %v681 = vpack.c.b16 %v660, %v659
        %v682 = vpack.c.b16 %v662, %v661
        %v683 = vpack.c.b16 %v664, %v663
        %v684 = vpack.c.b16 %v666, %v665
        %v685 = vpack.c.b16 %v668, %v667
        %v686 = vpack.c.b16 %v670, %v669
        %v703 = vunpack.c.l.b16 %v445
        %v704 = vunpack.c.l.b16 %v446
        %v705 = vunpack.c.l.b16 %v447
        %v706 = vunpack.c.l.b16 %v448
        %v707 = vunpack.c.l.b16 %v449
        %v708 = vunpack.c.l.b16 %v450
        %v709 = vunpack.c.l.b16 %v451
        %v710 = vunpack.c.l.b16 %v452
        %v711 = vunpack.c.l.b16 %v453
        %v712 = vunpack.c.l.b16 %v454
        %v713 = vunpack.c.l.b16 %v455
        %v714 = vunpack.c.l.b16 %v456
        %v715 = vunpack.c.l.b16 %v457
        %v716 = vunpack.c.l.b16 %v458
        %v717 = vunpack.c.l.b16 %v459
        %v718 = vunpack.c.l.b16 %v460
        %v719 = vpack.c.b16 %v703, %v703
        %v720 = vpack.c.b16 %v704, %v704
        %v721 = vpack.c.b16 %v705, %v705
        %v722 = vpack.c.b16 %v706, %v706
        %v723 = vpack.c.b16 %v707, %v707
        %v724 = vpack.c.b16 %v708, %v708
        %v725 = vpack.c.b16 %v709, %v709
        %v726 = vpack.c.b16 %v710, %v710
        %v727 = vpack.c.b16 %v711, %v711
        %v728 = vpack.c.b16 %v712, %v712
        %v729 = vpack.c.b16 %v713, %v713
        %v730 = vpack.c.b16 %v714, %v714
        %v731 = vpack.c.b16 %v715, %v715
        %v732 = vpack.c.b16 %v716, %v716
        %v733 = vpack.c.b16 %v717, %v717
        %v734 = vpack.c.b16 %v718, %v718
        %vm735 = vsmask.f32 7424
        %v737 = vshrl.u32 %v671, 16
        %v739 = vshll.u32 %v671, 16
        %v741 = vrot.slane %v739, 1
        %v742 = vor.u32 %v737, %v741
        %v744 = vshll.u32 %v719, 16
        %v746 = vrot.slane %v744, 1
        %v747 = vsel %vm735, %v742, %v746
        %v749 = vshrl.u32 %v672, 16
        %v751 = vshll.u32 %v672, 16
        %v753 = vrot.slane %v751, 1
        %v754 = vor.u32 %v749, %v753
        %v756 = vshll.u32 %v720, 16
        %v758 = vrot.slane %v756, 1
        %v759 = vsel %vm735, %v754, %v758
        %v761 = vshrl.u32 %v673, 16
        %v763 = vshll.u32 %v673, 16
        %v765 = vrot.slane %v763, 1
        %v766 = vor.u32 %v761, %v765
        %v768 = vshll.u32 %v721, 16
        %v770 = vrot.slane %v768, 1
        %v771 = vsel %vm735, %v766, %v770
        %v773 = vshrl.u32 %v674, 16
        %v775 = vshll.u32 %v674, 16
        %v777 = vrot.slane %v775, 1
        %v778 = vor.u32 %v773, %v777
        %v780 = vshll.u32 %v722, 16
        %v782 = vrot.slane %v780, 1
        %v783 = vsel %vm735, %v778, %v782
        %v785 = vshrl.u32 %v675, 16
        %v787 = vshll.u32 %v675, 16
        %v789 = vrot.slane %v787, 1
        %v790 = vor.u32 %v785, %v789
        %v792 = vshll.u32 %v723, 16
        %v794 = vrot.slane %v792, 1
        %v795 = vsel %vm735, %v790, %v794
        %v797 = vshrl.u32 %v676, 16
        %v799 = vshll.u32 %v676, 16
        %v801 = vrot.slane %v799, 1
        %v802 = vor.u32 %v797, %v801
        %v804 = vshll.u32 %v724, 16
        %v806 = vrot.slane %v804, 1
        %v807 = vsel %vm735, %v802, %v806
        %v809 = vshrl.u32 %v677, 16
        %v811 = vshll.u32 %v677, 16
        %v813 = vrot.slane %v811, 1
        %v814 = vor.u32 %v809, %v813
        %v816 = vshll.u32 %v725, 16
        %v818 = vrot.slane %v816, 1
        %v819 = vsel %vm735, %v814, %v818
        %v821 = vshrl.u32 %v678, 16
        %v823 = vshll.u32 %v678, 16
        %v825 = vrot.slane %v823, 1
        %v826 = vor.u32 %v821, %v825
        %v828 = vshll.u32 %v726, 16
        %v830 = vrot.slane %v828, 1
        %v831 = vsel %vm735, %v826, %v830
        %v833 = vshrl.u32 %v679, 16
        %v835 = vshll.u32 %v679, 16
        %v837 = vrot.slane %v835, 1
        %v838 = vor.u32 %v833, %v837
        %v840 = vshll.u32 %v727, 16
        %v842 = vrot.slane %v840, 1
        %v843 = vsel %vm735, %v838, %v842
        %v845 = vshrl.u32 %v680, 16
        %v847 = vshll.u32 %v680, 16
        %v849 = vrot.slane %v847, 1
        %v850 = vor.u32 %v845, %v849
        %v852 = vshll.u32 %v728, 16
        %v854 = vrot.slane %v852, 1
        %v855 = vsel %vm735, %v850, %v854
        %v857 = vshrl.u32 %v681, 16
        %v859 = vshll.u32 %v681, 16
        %v861 = vrot.slane %v859, 1
        %v862 = vor.u32 %v857, %v861
        %v864 = vshll.u32 %v729, 16
        %v866 = vrot.slane %v864, 1
        %v867 = vsel %vm735, %v862, %v866
        %v869 = vshrl.u32 %v682, 16
        %v871 = vshll.u32 %v682, 16
        %v873 = vrot.slane %v871, 1
        %v874 = vor.u32 %v869, %v873
        %v876 = vshll.u32 %v730, 16
        %v878 = vrot.slane %v876, 1
        %v879 = vsel %vm735, %v874, %v878
        %v881 = vshrl.u32 %v683, 16
        %v883 = vshll.u32 %v683, 16
        %v885 = vrot.slane %v883, 1
        %v886 = vor.u32 %v881, %v885
        %v888 = vshll.u32 %v731, 16
        %v890 = vrot.slane %v888, 1
        %v891 = vsel %vm735, %v886, %v890
        %v893 = vshrl.u32 %v684, 16
        %v895 = vshll.u32 %v684, 16
        %v897 = vrot.slane %v895, 1
        %v898 = vor.u32 %v893, %v897
        %v900 = vshll.u32 %v732, 16
        %v902 = vrot.slane %v900, 1
        %v903 = vsel %vm735, %v898, %v902
        %v905 = vshrl.u32 %v685, 16
        %v907 = vshll.u32 %v685, 16
        %v909 = vrot.slane %v907, 1
        %v910 = vor.u32 %v905, %v909
        %v912 = vshll.u32 %v733, 16
        %v914 = vrot.slane %v912, 1
        %v915 = vsel %vm735, %v910, %v914
        %v917 = vshrl.u32 %v686, 16
        %v919 = vshll.u32 %v686, 16
        %v921 = vrot.slane %v919, 1
        %v922 = vor.u32 %v917, %v921
        %v924 = vshll.u32 %v734, 16
        %v926 = vrot.slane %v924, 1
        %v927 = vsel %vm735, %v922, %v926
        %928 = vrot.lane.b32.xlu0 %v747, 8
        %v929 = vpop.permute.xlu0 %928
        %930 = vrot.lane.b32.xlu0 %v759, 8
        %v931 = vpop.permute.xlu0 %930
        %932 = vrot.lane.b32.xlu0 %v771, 8
        %v933 = vpop.permute.xlu0 %932
        %934 = vrot.lane.b32.xlu0 %v783, 8
        %v935 = vpop.permute.xlu0 %934
        %936 = vrot.lane.b32.xlu0 %v795, 8
        %v937 = vpop.permute.xlu0 %936
        %938 = vrot.lane.b32.xlu0 %v807, 8
        %v939 = vpop.permute.xlu0 %938
        %940 = vrot.lane.b32.xlu0 %v819, 8
        %v941 = vpop.permute.xlu0 %940
        %942 = vrot.lane.b32.xlu0 %v831, 8
        %v943 = vpop.permute.xlu0 %942
        %944 = vrot.lane.b32.xlu0 %v843, 8
        %v945 = vpop.permute.xlu0 %944
        %946 = vrot.lane.b32.xlu0 %v855, 8
        %v947 = vpop.permute.xlu0 %946
        %948 = vrot.lane.b32.xlu0 %v867, 8
        %v949 = vpop.permute.xlu0 %948
        %950 = vrot.lane.b32.xlu0 %v879, 8
        %v951 = vpop.permute.xlu0 %950
        %952 = vrot.lane.b32.xlu0 %v891, 8
        %v953 = vpop.permute.xlu0 %952
        %954 = vrot.lane.b32.xlu0 %v903, 8
        %v955 = vpop.permute.xlu0 %954
        %956 = vrot.lane.b32.xlu0 %v915, 8
        %v957 = vpop.permute.xlu0 %956
        %958 = vrot.lane.b32.xlu0 %v927, 8
        %v959 = vpop.permute.xlu0 %958
        %v976 = vunpack.c.l.b16 %v461
        %v977 = vunpack.c.l.b16 %v462
        %v978 = vunpack.c.l.b16 %v463
        %v979 = vunpack.c.l.b16 %v464
        %v980 = vunpack.c.l.b16 %v465
        %v981 = vunpack.c.l.b16 %v466
        %v982 = vunpack.c.l.b16 %v467
        %v983 = vunpack.c.l.b16 %v468
        %v984 = vunpack.c.l.b16 %v469
        %v985 = vunpack.c.l.b16 %v470
        %v986 = vunpack.c.l.b16 %v471
        %v987 = vunpack.c.l.b16 %v472
        %v988 = vunpack.c.l.b16 %v473
        %v989 = vunpack.c.l.b16 %v474
        %v990 = vunpack.c.l.b16 %v475
        %v991 = vunpack.c.l.b16 %v476
        %v992 = vpack.c.b16 %v640, %v976
        %v993 = vpack.c.b16 %v642, %v977
        %v994 = vpack.c.b16 %v644, %v978
        %v995 = vpack.c.b16 %v646, %v979
        %v996 = vpack.c.b16 %v648, %v980
        %v997 = vpack.c.b16 %v650, %v981
        %v998 = vpack.c.b16 %v652, %v982
        %v999 = vpack.c.b16 %v654, %v983
        %v1000 = vpack.c.b16 %v656, %v984
        %v1001 = vpack.c.b16 %v658, %v985
        %v1002 = vpack.c.b16 %v660, %v986
        %v1003 = vpack.c.b16 %v662, %v987
        %v1004 = vpack.c.b16 %v664, %v988
        %v1005 = vpack.c.b16 %v666, %v989
        %v1006 = vpack.c.b16 %v668, %v990
        %v1007 = vpack.c.b16 %v670, %v991
        %vm1008 = vcmask 1046528
        %v1009 = vrot.slane %v992, 1
        %v1010 = vrot.slane %v719, 1
        %v1011 = vsel %vm1008, %v1009, %v1010
        %v1012 = vrot.slane %v993, 1
        %v1013 = vrot.slane %v720, 1
        %v1014 = vsel %vm1008, %v1012, %v1013
        %v1015 = vrot.slane %v994, 1
        %v1016 = vrot.slane %v721, 1
        %v1017 = vsel %vm1008, %v1015, %v1016
        %v1018 = vrot.slane %v995, 1
        %v1019 = vrot.slane %v722, 1
        %v1020 = vsel %vm1008, %v1018, %v1019
        %v1021 = vrot.slane %v996, 1
        %v1022 = vrot.slane %v723, 1
        %v1023 = vsel %vm1008, %v1021, %v1022
        %v1024 = vrot.slane %v997, 1
        %v1025 = vrot.slane %v724, 1
        %v1026 = vsel %vm1008, %v1024, %v1025
        %v1027 = vrot.slane %v998, 1
        %v1028 = vrot.slane %v725, 1
        %v1029 = vsel %vm1008, %v1027, %v1028
        %v1030 = vrot.slane %v999, 1
        %v1031 = vrot.slane %v726, 1
        %v1032 = vsel %vm1008, %v1030, %v1031
        %v1033 = vrot.slane %v1000, 1
        %v1034 = vrot.slane %v727, 1
        %v1035 = vsel %vm1008, %v1033, %v1034
        %v1036 = vrot.slane %v1001, 1
        %v1037 = vrot.slane %v728, 1
        %v1038 = vsel %vm1008, %v1036, %v1037
        %v1039 = vrot.slane %v1002, 1
        %v1040 = vrot.slane %v729, 1
        %v1041 = vsel %vm1008, %v1039, %v1040
        %v1042 = vrot.slane %v1003, 1
        %v1043 = vrot.slane %v730, 1
        %v1044 = vsel %vm1008, %v1042, %v1043
        %v1045 = vrot.slane %v1004, 1
        %v1046 = vrot.slane %v731, 1
        %v1047 = vsel %vm1008, %v1045, %v1046
        %v1048 = vrot.slane %v1005, 1
        %v1049 = vrot.slane %v732, 1
        %v1050 = vsel %vm1008, %v1048, %v1049
        %v1051 = vrot.slane %v1006, 1
        %v1052 = vrot.slane %v733, 1
        %v1053 = vsel %vm1008, %v1051, %v1052
        %v1054 = vrot.slane %v1007, 1
        %v1055 = vrot.slane %v734, 1
        %v1056 = vsel %vm1008, %v1054, %v1055
        %1057 = vrot.lane.b32.xlu0 %v1011, 16
        %v1058 = vpop.permute.xlu0 %1057
        %1059 = vrot.lane.b32.xlu0 %v1014, 16
        %v1060 = vpop.permute.xlu0 %1059
        %1061 = vrot.lane.b32.xlu0 %v1017, 16
        %v1062 = vpop.permute.xlu0 %1061
        %1063 = vrot.lane.b32.xlu0 %v1020, 16
        %v1064 = vpop.permute.xlu0 %1063
        %1065 = vrot.lane.b32.xlu0 %v1023, 16
        %v1066 = vpop.permute.xlu0 %1065
        %1067 = vrot.lane.b32.xlu0 %v1026, 16
        %v1068 = vpop.permute.xlu0 %1067
        %1069 = vrot.lane.b32.xlu0 %v1029, 16
        %v1070 = vpop.permute.xlu0 %1069
        %1071 = vrot.lane.b32.xlu0 %v1032, 16
        %v1072 = vpop.permute.xlu0 %1071
        %1073 = vrot.lane.b32.xlu0 %v1035, 16
        %v1074 = vpop.permute.xlu0 %1073
        %1075 = vrot.lane.b32.xlu0 %v1038, 16
        %v1076 = vpop.permute.xlu0 %1075
        %1077 = vrot.lane.b32.xlu0 %v1041, 16
        %v1078 = vpop.permute.xlu0 %1077
        %1079 = vrot.lane.b32.xlu0 %v1044, 16
        %v1080 = vpop.permute.xlu0 %1079
        %1081 = vrot.lane.b32.xlu0 %v1047, 16
        %v1082 = vpop.permute.xlu0 %1081
        %1083 = vrot.lane.b32.xlu0 %v1050, 16
        %v1084 = vpop.permute.xlu0 %1083
        %1085 = vrot.lane.b32.xlu0 %v1053, 16
        %v1086 = vpop.permute.xlu0 %1085
        %1087 = vrot.lane.b32.xlu0 %v1056, 16
        %v1088 = vpop.permute.xlu0 %1087
        %v1121 = vunpack.c.l.b16 %v478
        %v1122 = vunpack.c.l.b16 %v479
        %v1123 = vunpack.c.l.b16 %v480
        %v1124 = vunpack.c.l.b16 %v481
        %v1125 = vunpack.c.l.b16 %v482
        %v1126 = vunpack.c.l.b16 %v483
        %v1127 = vunpack.c.l.b16 %v484
        %v1128 = vunpack.c.l.b16 %v485
        %v1129 = vunpack.c.l.b16 %v486
        %v1130 = vunpack.c.l.b16 %v487
        %v1131 = vunpack.c.l.b16 %v488
        %v1132 = vunpack.c.l.b16 %v489
        %v1133 = vunpack.c.l.b16 %v490
        %v1134 = vunpack.c.l.b16 %v491
        %v1135 = vunpack.c.l.b16 %v492
        %v1136 = vunpack.c.l.b16 %v493
        %v1137 = vunpack.c.l.b16 %v494
        %v1138 = vunpack.c.l.b16 %v495
        %v1139 = vunpack.c.l.b16 %v496
        %v1140 = vunpack.c.l.b16 %v497
        %v1141 = vunpack.c.l.b16 %v498
        %v1142 = vunpack.c.l.b16 %v499
        %v1143 = vunpack.c.l.b16 %v500
        %v1144 = vunpack.c.l.b16 %v501
        %v1145 = vunpack.c.l.b16 %v502
        %v1146 = vunpack.c.l.b16 %v503
        %v1147 = vunpack.c.l.b16 %v504
        %v1148 = vunpack.c.l.b16 %v505
        %v1149 = vunpack.c.l.b16 %v506
        %v1150 = vunpack.c.l.b16 %v507
        %v1151 = vunpack.c.l.b16 %v508
        %v1152 = vunpack.c.l.b16 %v509
        %v1153 = vpack.c.b16 %v1122, %v1121
        %v1154 = vpack.c.b16 %v1124, %v1123
        %v1155 = vpack.c.b16 %v1126, %v1125
        %v1156 = vpack.c.b16 %v1128, %v1127
        %v1157 = vpack.c.b16 %v1130, %v1129
        %v1158 = vpack.c.b16 %v1132, %v1131
        %v1159 = vpack.c.b16 %v1134, %v1133
        %v1160 = vpack.c.b16 %v1136, %v1135
        %v1161 = vpack.c.b16 %v1138, %v1137
        %v1162 = vpack.c.b16 %v1140, %v1139
        %v1163 = vpack.c.b16 %v1142, %v1141
        %v1164 = vpack.c.b16 %v1144, %v1143
        %v1165 = vpack.c.b16 %v1146, %v1145
        %v1166 = vpack.c.b16 %v1148, %v1147
        %v1167 = vpack.c.b16 %v1150, %v1149
        %v1168 = vpack.c.b16 %v1152, %v1151
        %1169 = vrot.lane.b32.xlu0 %v1153, 24
        %v1170 = vpop.permute.xlu0 %1169
        %1171 = vrot.lane.b32.xlu0 %v1154, 24
        %v1172 = vpop.permute.xlu0 %1171
        %1173 = vrot.lane.b32.xlu0 %v1155, 24
        %v1174 = vpop.permute.xlu0 %1173
        %1175 = vrot.lane.b32.xlu0 %v1156, 24
        %v1176 = vpop.permute.xlu0 %1175
        %1177 = vrot.lane.b32.xlu0 %v1157, 24
        %v1178 = vpop.permute.xlu0 %1177
        %1179 = vrot.lane.b32.xlu0 %v1158, 24
        %v1180 = vpop.permute.xlu0 %1179
        %1181 = vrot.lane.b32.xlu0 %v1159, 24
        %v1182 = vpop.permute.xlu0 %1181
        %1183 = vrot.lane.b32.xlu0 %v1160, 24
        %v1184 = vpop.permute.xlu0 %1183
        %1185 = vrot.lane.b32.xlu0 %v1161, 24
        %v1186 = vpop.permute.xlu0 %1185
        %1187 = vrot.lane.b32.xlu0 %v1162, 24
        %v1188 = vpop.permute.xlu0 %1187
        %1189 = vrot.lane.b32.xlu0 %v1163, 24
        %v1190 = vpop.permute.xlu0 %1189
        %1191 = vrot.lane.b32.xlu0 %v1164, 24
        %v1192 = vpop.permute.xlu0 %1191
        %1193 = vrot.lane.b32.xlu0 %v1165, 24
        %v1194 = vpop.permute.xlu0 %1193
        %1195 = vrot.lane.b32.xlu0 %v1166, 24
        %v1196 = vpop.permute.xlu0 %1195
        %1197 = vrot.lane.b32.xlu0 %v1167, 24
        %v1198 = vpop.permute.xlu0 %1197
        %1199 = vrot.lane.b32.xlu0 %v1168, 24
        %v1200 = vpop.permute.xlu0 %1199
        %v1217 = vunpack.c.l.b16 %v510
        %v1218 = vunpack.c.l.b16 %v511
        %v1219 = vunpack.c.l.b16 %v512
        %v1220 = vunpack.c.l.b16 %v513
        %v1221 = vunpack.c.l.b16 %v514
        %v1222 = vunpack.c.l.b16 %v515
        %v1223 = vunpack.c.l.b16 %v516
        %v1224 = vunpack.c.l.b16 %v517
        %v1225 = vunpack.c.l.b16 %v518
        %v1226 = vunpack.c.l.b16 %v519
        %v1227 = vunpack.c.l.b16 %v520
        %v1228 = vunpack.c.l.b16 %v521
        %v1229 = vunpack.c.l.b16 %v522
        %v1230 = vunpack.c.l.b16 %v523
        %v1231 = vunpack.c.l.b16 %v524
        %v1232 = vunpack.c.l.b16 %v525
        %v1233 = vpack.c.b16 %v1217, %v1217
        %v1234 = vpack.c.b16 %v1218, %v1218
        %v1235 = vpack.c.b16 %v1219, %v1219
        %v1236 = vpack.c.b16 %v1220, %v1220
        %v1237 = vpack.c.b16 %v1221, %v1221
        %v1238 = vpack.c.b16 %v1222, %v1222
        %v1239 = vpack.c.b16 %v1223, %v1223
        %v1240 = vpack.c.b16 %v1224, %v1224
        %v1241 = vpack.c.b16 %v1225, %v1225
        %v1242 = vpack.c.b16 %v1226, %v1226
        %v1243 = vpack.c.b16 %v1227, %v1227
        %v1244 = vpack.c.b16 %v1228, %v1228
        %v1245 = vpack.c.b16 %v1229, %v1229
        %v1246 = vpack.c.b16 %v1230, %v1230
        %v1247 = vpack.c.b16 %v1231, %v1231
        %v1248 = vpack.c.b16 %v1232, %v1232
        %v1250 = vshrl.u32 %v1153, 16
        %v1252 = vshll.u32 %v1153, 16
        %v1254 = vrot.slane %v1252, 1
        %v1255 = vor.u32 %v1250, %v1254
        %v1257 = vshll.u32 %v1233, 16
        %v1259 = vrot.slane %v1257, 1
        %v1260 = vsel %vm735, %v1255, %v1259
        %v1262 = vshrl.u32 %v1154, 16
        %v1264 = vshll.u32 %v1154, 16
        %v1266 = vrot.slane %v1264, 1
        %v1267 = vor.u32 %v1262, %v1266
        %v1269 = vshll.u32 %v1234, 16
        %v1271 = vrot.slane %v1269, 1
        %v1272 = vsel %vm735, %v1267, %v1271
        %v1274 = vshrl.u32 %v1155, 16
        %v1276 = vshll.u32 %v1155, 16
        %v1278 = vrot.slane %v1276, 1
        %v1279 = vor.u32 %v1274, %v1278
        %v1281 = vshll.u32 %v1235, 16
        %v1283 = vrot.slane %v1281, 1
        %v1284 = vsel %vm735, %v1279, %v1283
        %v1286 = vshrl.u32 %v1156, 16
        %v1288 = vshll.u32 %v1156, 16
        %v1290 = vrot.slane %v1288, 1
        %v1291 = vor.u32 %v1286, %v1290
        %v1293 = vshll.u32 %v1236, 16
        %v1295 = vrot.slane %v1293, 1
        %v1296 = vsel %vm735, %v1291, %v1295
        %v1298 = vshrl.u32 %v1157, 16
        %v1300 = vshll.u32 %v1157, 16
        %v1302 = vrot.slane %v1300, 1
        %v1303 = vor.u32 %v1298, %v1302
        %v1305 = vshll.u32 %v1237, 16
        %v1307 = vrot.slane %v1305, 1
        %v1308 = vsel %vm735, %v1303, %v1307
        %v1310 = vshrl.u32 %v1158, 16
        %v1312 = vshll.u32 %v1158, 16
        %v1314 = vrot.slane %v1312, 1
        %v1315 = vor.u32 %v1310, %v1314
        %v1317 = vshll.u32 %v1238, 16
        %v1319 = vrot.slane %v1317, 1
        %v1320 = vsel %vm735, %v1315, %v1319
        %v1322 = vshrl.u32 %v1159, 16
        %v1324 = vshll.u32 %v1159, 16
        %v1326 = vrot.slane %v1324, 1
        %v1327 = vor.u32 %v1322, %v1326
        %v1329 = vshll.u32 %v1239, 16
        %v1331 = vrot.slane %v1329, 1
        %v1332 = vsel %vm735, %v1327, %v1331
        %v1334 = vshrl.u32 %v1160, 16
        %v1336 = vshll.u32 %v1160, 16
        %v1338 = vrot.slane %v1336, 1
        %v1339 = vor.u32 %v1334, %v1338
        %v1341 = vshll.u32 %v1240, 16
        %v1343 = vrot.slane %v1341, 1
        %v1344 = vsel %vm735, %v1339, %v1343
        %v1346 = vshrl.u32 %v1161, 16
        %v1348 = vshll.u32 %v1161, 16
        %v1350 = vrot.slane %v1348, 1
        %v1351 = vor.u32 %v1346, %v1350
        %v1353 = vshll.u32 %v1241, 16
        %v1355 = vrot.slane %v1353, 1
        %v1356 = vsel %vm735, %v1351, %v1355
        %v1358 = vshrl.u32 %v1162, 16
        %v1360 = vshll.u32 %v1162, 16
        %v1362 = vrot.slane %v1360, 1
        %v1363 = vor.u32 %v1358, %v1362
        %v1365 = vshll.u32 %v1242, 16
        %v1367 = vrot.slane %v1365, 1
        %v1368 = vsel %vm735, %v1363, %v1367
        %v1370 = vshrl.u32 %v1163, 16
        %v1372 = vshll.u32 %v1163, 16
        %v1374 = vrot.slane %v1372, 1
        %v1375 = vor.u32 %v1370, %v1374
        %v1377 = vshll.u32 %v1243, 16
        %v1379 = vrot.slane %v1377, 1
        %v1380 = vsel %vm735, %v1375, %v1379
        %v1382 = vshrl.u32 %v1164, 16
        %v1384 = vshll.u32 %v1164, 16
        %v1386 = vrot.slane %v1384, 1
        %v1387 = vor.u32 %v1382, %v1386
        %v1389 = vshll.u32 %v1244, 16
        %v1391 = vrot.slane %v1389, 1
        %v1392 = vsel %vm735, %v1387, %v1391
        %v1394 = vshrl.u32 %v1165, 16
        %v1396 = vshll.u32 %v1165, 16
        %v1398 = vrot.slane %v1396, 1
        %v1399 = vor.u32 %v1394, %v1398
        %v1401 = vshll.u32 %v1245, 16
        %v1403 = vrot.slane %v1401, 1
        %v1404 = vsel %vm735, %v1399, %v1403
        %v1406 = vshrl.u32 %v1166, 16
        %v1408 = vshll.u32 %v1166, 16
        %v1410 = vrot.slane %v1408, 1
        %v1411 = vor.u32 %v1406, %v1410
        %v1413 = vshll.u32 %v1246, 16
        %v1415 = vrot.slane %v1413, 1
        %v1416 = vsel %vm735, %v1411, %v1415
        %v1418 = vshrl.u32 %v1167, 16
        %v1420 = vshll.u32 %v1167, 16
        %v1422 = vrot.slane %v1420, 1
        %v1423 = vor.u32 %v1418, %v1422
        %v1425 = vshll.u32 %v1247, 16
        %v1427 = vrot.slane %v1425, 1
        %v1428 = vsel %vm735, %v1423, %v1427
        %v1430 = vshrl.u32 %v1168, 16
        %v1432 = vshll.u32 %v1168, 16
        %v1434 = vrot.slane %v1432, 1
        %v1435 = vor.u32 %v1430, %v1434
        %v1437 = vshll.u32 %v1248, 16
        %v1439 = vrot.slane %v1437, 1
        %v1440 = vsel %vm735, %v1435, %v1439
        %1441 = vrot.lane.b32.xlu0 %v1260, 32
        %v1442 = vpop.permute.xlu0 %1441
        %1443 = vrot.lane.b32.xlu0 %v1272, 32
        %v1444 = vpop.permute.xlu0 %1443
        %1445 = vrot.lane.b32.xlu0 %v1284, 32
        %v1446 = vpop.permute.xlu0 %1445
        %1447 = vrot.lane.b32.xlu0 %v1296, 32
        %v1448 = vpop.permute.xlu0 %1447
        %1449 = vrot.lane.b32.xlu0 %v1308, 32
        %v1450 = vpop.permute.xlu0 %1449
        %1451 = vrot.lane.b32.xlu0 %v1320, 32
        %v1452 = vpop.permute.xlu0 %1451
        %1453 = vrot.lane.b32.xlu0 %v1332, 32
        %v1454 = vpop.permute.xlu0 %1453
        %1455 = vrot.lane.b32.xlu0 %v1344, 32
        %v1456 = vpop.permute.xlu0 %1455
        %1457 = vrot.lane.b32.xlu0 %v1356, 32
        %v1458 = vpop.permute.xlu0 %1457
        %1459 = vrot.lane.b32.xlu0 %v1368, 32
        %v1460 = vpop.permute.xlu0 %1459
        %1461 = vrot.lane.b32.xlu0 %v1380, 32
        %v1462 = vpop.permute.xlu0 %1461
        %1463 = vrot.lane.b32.xlu0 %v1392, 32
        %v1464 = vpop.permute.xlu0 %1463
        %1465 = vrot.lane.b32.xlu0 %v1404, 32
        %v1466 = vpop.permute.xlu0 %1465
        %1467 = vrot.lane.b32.xlu0 %v1416, 32
        %v1468 = vpop.permute.xlu0 %1467
        %1469 = vrot.lane.b32.xlu0 %v1428, 32
        %v1470 = vpop.permute.xlu0 %1469
        %1471 = vrot.lane.b32.xlu0 %v1440, 32
        %v1472 = vpop.permute.xlu0 %1471
        %v1489 = vunpack.c.l.b16 %v526
        %v1490 = vunpack.c.l.b16 %v527
        %v1491 = vunpack.c.l.b16 %v528
        %v1492 = vunpack.c.l.b16 %v529
        %v1493 = vunpack.c.l.b16 %v530
        %v1494 = vunpack.c.l.b16 %v531
        %v1495 = vunpack.c.l.b16 %v532
        %v1496 = vunpack.c.l.b16 %v533
        %v1497 = vunpack.c.l.b16 %v534
        %v1498 = vunpack.c.l.b16 %v535
        %v1499 = vunpack.c.l.b16 %v536
        %v1500 = vunpack.c.l.b16 %v537
        %v1501 = vunpack.c.l.b16 %v538
        %v1502 = vunpack.c.l.b16 %v539
        %v1503 = vunpack.c.l.b16 %v540
        %v1504 = vunpack.c.l.b16 %v541
        %v1505 = vpack.c.b16 %v1122, %v1489
        %v1506 = vpack.c.b16 %v1124, %v1490
        %v1507 = vpack.c.b16 %v1126, %v1491
        %v1508 = vpack.c.b16 %v1128, %v1492
        %v1509 = vpack.c.b16 %v1130, %v1493
        %v1510 = vpack.c.b16 %v1132, %v1494
        %v1511 = vpack.c.b16 %v1134, %v1495
        %v1512 = vpack.c.b16 %v1136, %v1496
        %v1513 = vpack.c.b16 %v1138, %v1497
        %v1514 = vpack.c.b16 %v1140, %v1498
        %v1515 = vpack.c.b16 %v1142, %v1499
        %v1516 = vpack.c.b16 %v1144, %v1500
        %v1517 = vpack.c.b16 %v1146, %v1501
        %v1518 = vpack.c.b16 %v1148, %v1502
        %v1519 = vpack.c.b16 %v1150, %v1503
        %v1520 = vpack.c.b16 %v1152, %v1504
        %v1521 = vrot.slane %v1505, 1
        %v1522 = vrot.slane %v1233, 1
        %v1523 = vsel %vm1008, %v1521, %v1522
        %v1524 = vrot.slane %v1506, 1
        %v1525 = vrot.slane %v1234, 1
        %v1526 = vsel %vm1008, %v1524, %v1525
        %v1527 = vrot.slane %v1507, 1
        %v1528 = vrot.slane %v1235, 1
        %v1529 = vsel %vm1008, %v1527, %v1528
        %v1530 = vrot.slane %v1508, 1
        %v1531 = vrot.slane %v1236, 1
        %v1532 = vsel %vm1008, %v1530, %v1531
        %v1533 = vrot.slane %v1509, 1
        %v1534 = vrot.slane %v1237, 1
        %v1535 = vsel %vm1008, %v1533, %v1534
        %v1536 = vrot.slane %v1510, 1
        %v1537 = vrot.slane %v1238, 1
        %v1538 = vsel %vm1008, %v1536, %v1537
        %v1539 = vrot.slane %v1511, 1
        %v1540 = vrot.slane %v1239, 1
        %v1541 = vsel %vm1008, %v1539, %v1540
        %v1542 = vrot.slane %v1512, 1
        %v1543 = vrot.slane %v1240, 1
        %v1544 = vsel %vm1008, %v1542, %v1543
        %v1545 = vrot.slane %v1513, 1
        %v1546 = vrot.slane %v1241, 1
        %v1547 = vsel %vm1008, %v1545, %v1546
        %v1548 = vrot.slane %v1514, 1
        %v1549 = vrot.slane %v1242, 1
        %v1550 = vsel %vm1008, %v1548, %v1549
        %v1551 = vrot.slane %v1515, 1
        %v1552 = vrot.slane %v1243, 1
        %v1553 = vsel %vm1008, %v1551, %v1552
        %v1554 = vrot.slane %v1516, 1
        %v1555 = vrot.slane %v1244, 1
        %v1556 = vsel %vm1008, %v1554, %v1555
        %v1557 = vrot.slane %v1517, 1
        %v1558 = vrot.slane %v1245, 1
        %v1559 = vsel %vm1008, %v1557, %v1558
        %v1560 = vrot.slane %v1518, 1
        %v1561 = vrot.slane %v1246, 1
        %v1562 = vsel %vm1008, %v1560, %v1561
        %v1563 = vrot.slane %v1519, 1
        %v1564 = vrot.slane %v1247, 1
        %v1565 = vsel %vm1008, %v1563, %v1564
        %v1566 = vrot.slane %v1520, 1
        %v1567 = vrot.slane %v1248, 1
        %v1568 = vsel %vm1008, %v1566, %v1567
        %1569 = vrot.lane.b32.xlu0 %v1523, 40
        %v1570 = vpop.permute.xlu0 %1569
        %1571 = vrot.lane.b32.xlu0 %v1526, 40
        %v1572 = vpop.permute.xlu0 %1571
        %1573 = vrot.lane.b32.xlu0 %v1529, 40
        %v1574 = vpop.permute.xlu0 %1573
        %1575 = vrot.lane.b32.xlu0 %v1532, 40
        %v1576 = vpop.permute.xlu0 %1575
        %1577 = vrot.lane.b32.xlu0 %v1535, 40
        %v1578 = vpop.permute.xlu0 %1577
        %1579 = vrot.lane.b32.xlu0 %v1538, 40
        %v1580 = vpop.permute.xlu0 %1579
        %1581 = vrot.lane.b32.xlu0 %v1541, 40
        %v1582 = vpop.permute.xlu0 %1581
        %1583 = vrot.lane.b32.xlu0 %v1544, 40
        %v1584 = vpop.permute.xlu0 %1583
        %1585 = vrot.lane.b32.xlu0 %v1547, 40
        %v1586 = vpop.permute.xlu0 %1585
        %1587 = vrot.lane.b32.xlu0 %v1550, 40
        %v1588 = vpop.permute.xlu0 %1587
        %1589 = vrot.lane.b32.xlu0 %v1553, 40
        %v1590 = vpop.permute.xlu0 %1589
        %1591 = vrot.lane.b32.xlu0 %v1556, 40
        %v1592 = vpop.permute.xlu0 %1591
        %1593 = vrot.lane.b32.xlu0 %v1559, 40
        %v1594 = vpop.permute.xlu0 %1593
        %1595 = vrot.lane.b32.xlu0 %v1562, 40
        %v1596 = vpop.permute.xlu0 %1595
        %1597 = vrot.lane.b32.xlu0 %v1565, 40
        %v1598 = vpop.permute.xlu0 %1597
        %1599 = vrot.lane.b32.xlu0 %v1568, 40
        %v1600 = vpop.permute.xlu0 %1599
        %v1633 = vunpack.c.l.b16 %v543
        %v1634 = vunpack.c.l.b16 %v544
        %v1635 = vunpack.c.l.b16 %v545
        %v1636 = vunpack.c.l.b16 %v546
        %v1637 = vunpack.c.l.b16 %v547
        %v1638 = vunpack.c.l.b16 %v548
        %v1639 = vunpack.c.l.b16 %v549
        %v1640 = vunpack.c.l.b16 %v550
        %v1641 = vunpack.c.l.b16 %v551
        %v1642 = vunpack.c.l.b16 %v552
        %v1643 = vunpack.c.l.b16 %v553
        %v1644 = vunpack.c.l.b16 %v554
        %v1645 = vunpack.c.l.b16 %v555
        %v1646 = vunpack.c.l.b16 %v556
        %v1647 = vunpack.c.l.b16 %v557
        %v1648 = vunpack.c.l.b16 %v558
        %v1649 = vunpack.c.l.b16 %v559
        %v1650 = vunpack.c.l.b16 %v560
        %v1651 = vunpack.c.l.b16 %v561
        %v1652 = vunpack.c.l.b16 %v562
        %v1653 = vunpack.c.l.b16 %v563
        %v1654 = vunpack.c.l.b16 %v564
        %v1655 = vunpack.c.l.b16 %v565
        %v1656 = vunpack.c.l.b16 %v566
        %v1657 = vunpack.c.l.b16 %v567
        %v1658 = vunpack.c.l.b16 %v568
        %v1659 = vunpack.c.l.b16 %v569
        %v1660 = vunpack.c.l.b16 %v570
        %v1661 = vunpack.c.l.b16 %v571
        %v1662 = vunpack.c.l.b16 %v572
        %v1663 = vunpack.c.l.b16 %v573
        %v1664 = vunpack.c.l.b16 %v574
        %v1665 = vpack.c.b16 %v1634, %v1633
        %v1666 = vpack.c.b16 %v1636, %v1635
        %v1667 = vpack.c.b16 %v1638, %v1637
        %v1668 = vpack.c.b16 %v1640, %v1639
        %v1669 = vpack.c.b16 %v1642, %v1641
        %v1670 = vpack.c.b16 %v1644, %v1643
        %v1671 = vpack.c.b16 %v1646, %v1645
        %v1672 = vpack.c.b16 %v1648, %v1647
        %v1673 = vpack.c.b16 %v1650, %v1649
        %v1674 = vpack.c.b16 %v1652, %v1651
        %v1675 = vpack.c.b16 %v1654, %v1653
        %v1676 = vpack.c.b16 %v1656, %v1655
        %v1677 = vpack.c.b16 %v1658, %v1657
        %v1678 = vpack.c.b16 %v1660, %v1659
        %v1679 = vpack.c.b16 %v1662, %v1661
        %v1680 = vpack.c.b16 %v1664, %v1663
        %1681 = vrot.lane.b32.xlu0 %v1665, 48
        %v1682 = vpop.permute.xlu0 %1681
        %1683 = vrot.lane.b32.xlu0 %v1666, 48
        %v1684 = vpop.permute.xlu0 %1683
        %1685 = vrot.lane.b32.xlu0 %v1667, 48
        %v1686 = vpop.permute.xlu0 %1685
        %1687 = vrot.lane.b32.xlu0 %v1668, 48
        %v1688 = vpop.permute.xlu0 %1687
        %1689 = vrot.lane.b32.xlu0 %v1669, 48
        %v1690 = vpop.permute.xlu0 %1689
        %1691 = vrot.lane.b32.xlu0 %v1670, 48
        %v1692 = vpop.permute.xlu0 %1691
        %1693 = vrot.lane.b32.xlu0 %v1671, 48
        %v1694 = vpop.permute.xlu0 %1693
        %1695 = vrot.lane.b32.xlu0 %v1672, 48
        %v1696 = vpop.permute.xlu0 %1695
        %1697 = vrot.lane.b32.xlu0 %v1673, 48
        %v1698 = vpop.permute.xlu0 %1697
        %1699 = vrot.lane.b32.xlu0 %v1674, 48
        %v1700 = vpop.permute.xlu0 %1699
        %1701 = vrot.lane.b32.xlu0 %v1675, 48
        %v1702 = vpop.permute.xlu0 %1701
        %1703 = vrot.lane.b32.xlu0 %v1676, 48
        %v1704 = vpop.permute.xlu0 %1703
        %1705 = vrot.lane.b32.xlu0 %v1677, 48
        %v1706 = vpop.permute.xlu0 %1705
        %1707 = vrot.lane.b32.xlu0 %v1678, 48
        %v1708 = vpop.permute.xlu0 %1707
        %1709 = vrot.lane.b32.xlu0 %v1679, 48
        %v1710 = vpop.permute.xlu0 %1709
        %1711 = vrot.lane.b32.xlu0 %v1680, 48
        %v1712 = vpop.permute.xlu0 %1711
        %v1729 = vunpack.c.l.b16 %v575
        %v1730 = vunpack.c.l.b16 %v576
        %v1731 = vunpack.c.l.b16 %v577
        %v1732 = vunpack.c.l.b16 %v578
        %v1733 = vunpack.c.l.b16 %v579
        %v1734 = vunpack.c.l.b16 %v580
        %v1735 = vunpack.c.l.b16 %v581
        %v1736 = vunpack.c.l.b16 %v582
        %v1737 = vunpack.c.l.b16 %v583
        %v1738 = vunpack.c.l.b16 %v584
        %v1739 = vunpack.c.l.b16 %v585
        %v1740 = vunpack.c.l.b16 %v586
        %v1741 = vunpack.c.l.b16 %v587
        %v1742 = vunpack.c.l.b16 %v588
        %v1743 = vunpack.c.l.b16 %v589
        %v1744 = vunpack.c.l.b16 %v590
        %v1745 = vpack.c.b16 %v1729, %v1729
        %v1746 = vpack.c.b16 %v1730, %v1730
        %v1747 = vpack.c.b16 %v1731, %v1731
        %v1748 = vpack.c.b16 %v1732, %v1732
        %v1749 = vpack.c.b16 %v1733, %v1733
        %v1750 = vpack.c.b16 %v1734, %v1734
        %v1751 = vpack.c.b16 %v1735, %v1735
        %v1752 = vpack.c.b16 %v1736, %v1736
        %v1753 = vpack.c.b16 %v1737, %v1737
        %v1754 = vpack.c.b16 %v1738, %v1738
        %v1755 = vpack.c.b16 %v1739, %v1739
        %v1756 = vpack.c.b16 %v1740, %v1740
        %v1757 = vpack.c.b16 %v1741, %v1741
        %v1758 = vpack.c.b16 %v1742, %v1742
        %v1759 = vpack.c.b16 %v1743, %v1743
        %v1760 = vpack.c.b16 %v1744, %v1744
        %v1762 = vshrl.u32 %v1665, 16
        %v1764 = vshll.u32 %v1665, 16
        %v1766 = vrot.slane %v1764, 1
        %v1767 = vor.u32 %v1762, %v1766
        %v1769 = vshll.u32 %v1745, 16
        %v1771 = vrot.slane %v1769, 1
        %v1772 = vsel %vm735, %v1767, %v1771
        %v1774 = vshrl.u32 %v1666, 16
        %v1776 = vshll.u32 %v1666, 16
        %v1778 = vrot.slane %v1776, 1
        %v1779 = vor.u32 %v1774, %v1778
        %v1781 = vshll.u32 %v1746, 16
        %v1783 = vrot.slane %v1781, 1
        %v1784 = vsel %vm735, %v1779, %v1783
        %v1786 = vshrl.u32 %v1667, 16
        %v1788 = vshll.u32 %v1667, 16
        %v1790 = vrot.slane %v1788, 1
        %v1791 = vor.u32 %v1786, %v1790
        %v1793 = vshll.u32 %v1747, 16
        %v1795 = vrot.slane %v1793, 1
        %v1796 = vsel %vm735, %v1791, %v1795
        %v1798 = vshrl.u32 %v1668, 16
        %v1800 = vshll.u32 %v1668, 16
        %v1802 = vrot.slane %v1800, 1
        %v1803 = vor.u32 %v1798, %v1802
        %v1805 = vshll.u32 %v1748, 16
        %v1807 = vrot.slane %v1805, 1
        %v1808 = vsel %vm735, %v1803, %v1807
        %v1810 = vshrl.u32 %v1669, 16
        %v1812 = vshll.u32 %v1669, 16
        %v1814 = vrot.slane %v1812, 1
        %v1815 = vor.u32 %v1810, %v1814
        %v1817 = vshll.u32 %v1749, 16
        %v1819 = vrot.slane %v1817, 1
        %v1820 = vsel %vm735, %v1815, %v1819
        %v1822 = vshrl.u32 %v1670, 16
        %v1824 = vshll.u32 %v1670, 16
        %v1826 = vrot.slane %v1824, 1
        %v1827 = vor.u32 %v1822, %v1826
        %v1829 = vshll.u32 %v1750, 16
        %v1831 = vrot.slane %v1829, 1
        %v1832 = vsel %vm735, %v1827, %v1831
        %v1834 = vshrl.u32 %v1671, 16
        %v1836 = vshll.u32 %v1671, 16
        %v1838 = vrot.slane %v1836, 1
        %v1839 = vor.u32 %v1834, %v1838
        %v1841 = vshll.u32 %v1751, 16
        %v1843 = vrot.slane %v1841, 1
        %v1844 = vsel %vm735, %v1839, %v1843
        %v1846 = vshrl.u32 %v1672, 16
        %v1848 = vshll.u32 %v1672, 16
        %v1850 = vrot.slane %v1848, 1
        %v1851 = vor.u32 %v1846, %v1850
        %v1853 = vshll.u32 %v1752, 16
        %v1855 = vrot.slane %v1853, 1
        %v1856 = vsel %vm735, %v1851, %v1855
        %v1858 = vshrl.u32 %v1673, 16
        %v1860 = vshll.u32 %v1673, 16
        %v1862 = vrot.slane %v1860, 1
        %v1863 = vor.u32 %v1858, %v1862
        %v1865 = vshll.u32 %v1753, 16
        %v1867 = vrot.slane %v1865, 1
        %v1868 = vsel %vm735, %v1863, %v1867
        %v1870 = vshrl.u32 %v1674, 16
        %v1872 = vshll.u32 %v1674, 16
        %v1874 = vrot.slane %v1872, 1
        %v1875 = vor.u32 %v1870, %v1874
        %v1877 = vshll.u32 %v1754, 16
        %v1879 = vrot.slane %v1877, 1
        %v1880 = vsel %vm735, %v1875, %v1879
        %v1882 = vshrl.u32 %v1675, 16
        %v1884 = vshll.u32 %v1675, 16
        %v1886 = vrot.slane %v1884, 1
        %v1887 = vor.u32 %v1882, %v1886
        %v1889 = vshll.u32 %v1755, 16
        %v1891 = vrot.slane %v1889, 1
        %v1892 = vsel %vm735, %v1887, %v1891
        %v1894 = vshrl.u32 %v1676, 16
        %v1896 = vshll.u32 %v1676, 16
        %v1898 = vrot.slane %v1896, 1
        %v1899 = vor.u32 %v1894, %v1898
        %v1901 = vshll.u32 %v1756, 16
        %v1903 = vrot.slane %v1901, 1
        %v1904 = vsel %vm735, %v1899, %v1903
        %v1906 = vshrl.u32 %v1677, 16
        %v1908 = vshll.u32 %v1677, 16
        %v1910 = vrot.slane %v1908, 1
        %v1911 = vor.u32 %v1906, %v1910
        %v1913 = vshll.u32 %v1757, 16
        %v1915 = vrot.slane %v1913, 1
        %v1916 = vsel %vm735, %v1911, %v1915
        %v1918 = vshrl.u32 %v1678, 16
        %v1920 = vshll.u32 %v1678, 16
        %v1922 = vrot.slane %v1920, 1
        %v1923 = vor.u32 %v1918, %v1922
        %v1925 = vshll.u32 %v1758, 16
        %v1927 = vrot.slane %v1925, 1
        %v1928 = vsel %vm735, %v1923, %v1927
        %v1930 = vshrl.u32 %v1679, 16
        %v1932 = vshll.u32 %v1679, 16
        %v1934 = vrot.slane %v1932, 1
        %v1935 = vor.u32 %v1930, %v1934
        %v1937 = vshll.u32 %v1759, 16
        %v1939 = vrot.slane %v1937, 1
        %v1940 = vsel %vm735, %v1935, %v1939
        %v1942 = vshrl.u32 %v1680, 16
        %v1944 = vshll.u32 %v1680, 16
        %v1946 = vrot.slane %v1944, 1
        %v1947 = vor.u32 %v1942, %v1946
        %v1949 = vshll.u32 %v1760, 16
        %v1951 = vrot.slane %v1949, 1
        %v1952 = vsel %vm735, %v1947, %v1951
        %1953 = vrot.lane.b32.xlu0 %v1772, 56
        %v1954 = vpop.permute.xlu0 %1953
        %1955 = vrot.lane.b32.xlu0 %v1784, 56
        %v1956 = vpop.permute.xlu0 %1955
        %1957 = vrot.lane.b32.xlu0 %v1796, 56
        %v1958 = vpop.permute.xlu0 %1957
        %1959 = vrot.lane.b32.xlu0 %v1808, 56
        %v1960 = vpop.permute.xlu0 %1959
        %1961 = vrot.lane.b32.xlu0 %v1820, 56
        %v1962 = vpop.permute.xlu0 %1961
        %1963 = vrot.lane.b32.xlu0 %v1832, 56
        %v1964 = vpop.permute.xlu0 %1963
        %1965 = vrot.lane.b32.xlu0 %v1844, 56
        %v1966 = vpop.permute.xlu0 %1965
        %1967 = vrot.lane.b32.xlu0 %v1856, 56
        %v1968 = vpop.permute.xlu0 %1967
        %1969 = vrot.lane.b32.xlu0 %v1868, 56
        %v1970 = vpop.permute.xlu0 %1969
        %1971 = vrot.lane.b32.xlu0 %v1880, 56
        %v1972 = vpop.permute.xlu0 %1971
        %1973 = vrot.lane.b32.xlu0 %v1892, 56
        %v1974 = vpop.permute.xlu0 %1973
        %1975 = vrot.lane.b32.xlu0 %v1904, 56
        %v1976 = vpop.permute.xlu0 %1975
        %1977 = vrot.lane.b32.xlu0 %v1916, 56
        %v1978 = vpop.permute.xlu0 %1977
        %1979 = vrot.lane.b32.xlu0 %v1928, 56
        %v1980 = vpop.permute.xlu0 %1979
        %1981 = vrot.lane.b32.xlu0 %v1940, 56
        %v1982 = vpop.permute.xlu0 %1981
        %1983 = vrot.lane.b32.xlu0 %v1952, 56
        %v1984 = vpop.permute.xlu0 %1983
        %v2001 = vunpack.c.l.b16 %v591
        %v2002 = vunpack.c.l.b16 %v592
        %v2003 = vunpack.c.l.b16 %v593
        %v2004 = vunpack.c.l.b16 %v594
        %v2005 = vunpack.c.l.b16 %v595
        %v2006 = vunpack.c.l.b16 %v596
        %v2007 = vunpack.c.l.b16 %v597
        %v2008 = vunpack.c.l.b16 %v598
        %v2009 = vunpack.c.l.b16 %v599
        %v2010 = vunpack.c.l.b16 %v600
        %v2011 = vunpack.c.l.b16 %v601
        %v2012 = vunpack.c.l.b16 %v602
        %v2013 = vunpack.c.l.b16 %v603
        %v2014 = vunpack.c.l.b16 %v604
        %v2015 = vunpack.c.l.b16 %v605
        %v2016 = vunpack.c.l.b16 %v606
        %v2017 = vpack.c.b16 %v1634, %v2001
        %v2018 = vpack.c.b16 %v1636, %v2002
        %v2019 = vpack.c.b16 %v1638, %v2003
        %v2020 = vpack.c.b16 %v1640, %v2004
        %v2021 = vpack.c.b16 %v1642, %v2005
        %v2022 = vpack.c.b16 %v1644, %v2006
        %v2023 = vpack.c.b16 %v1646, %v2007
        %v2024 = vpack.c.b16 %v1648, %v2008
        %v2025 = vpack.c.b16 %v1650, %v2009
        %v2026 = vpack.c.b16 %v1652, %v2010
        %v2027 = vpack.c.b16 %v1654, %v2011
        %v2028 = vpack.c.b16 %v1656, %v2012
        %v2029 = vpack.c.b16 %v1658, %v2013
        %v2030 = vpack.c.b16 %v1660, %v2014
        %v2031 = vpack.c.b16 %v1662, %v2015
        %v2032 = vpack.c.b16 %v1664, %v2016
        %v2033 = vrot.slane %v2017, 1
        %v2034 = vrot.slane %v1745, 1
        %v2035 = vsel %vm1008, %v2033, %v2034
        %v2036 = vrot.slane %v2018, 1
        %v2037 = vrot.slane %v1746, 1
        %v2038 = vsel %vm1008, %v2036, %v2037
        %v2039 = vrot.slane %v2019, 1
        %v2040 = vrot.slane %v1747, 1
        %v2041 = vsel %vm1008, %v2039, %v2040
        %v2042 = vrot.slane %v2020, 1
        %v2043 = vrot.slane %v1748, 1
        %v2044 = vsel %vm1008, %v2042, %v2043
        %v2045 = vrot.slane %v2021, 1
        %v2046 = vrot.slane %v1749, 1
        %v2047 = vsel %vm1008, %v2045, %v2046
        %v2048 = vrot.slane %v2022, 1
        %v2049 = vrot.slane %v1750, 1
        %v2050 = vsel %vm1008, %v2048, %v2049
        %v2051 = vrot.slane %v2023, 1
        %v2052 = vrot.slane %v1751, 1
        %v2053 = vsel %vm1008, %v2051, %v2052
        %v2054 = vrot.slane %v2024, 1
        %v2055 = vrot.slane %v1752, 1
        %v2056 = vsel %vm1008, %v2054, %v2055
        %v2057 = vrot.slane %v2025, 1
        %v2058 = vrot.slane %v1753, 1
        %v2059 = vsel %vm1008, %v2057, %v2058
        %v2060 = vrot.slane %v2026, 1
        %v2061 = vrot.slane %v1754, 1
        %v2062 = vsel %vm1008, %v2060, %v2061
        %v2063 = vrot.slane %v2027, 1
        %v2064 = vrot.slane %v1755, 1
        %v2065 = vsel %vm1008, %v2063, %v2064
        %v2066 = vrot.slane %v2028, 1
        %v2067 = vrot.slane %v1756, 1
        %v2068 = vsel %vm1008, %v2066, %v2067
        %v2069 = vrot.slane %v2029, 1
        %v2070 = vrot.slane %v1757, 1
        %v2071 = vsel %vm1008, %v2069, %v2070
        %v2072 = vrot.slane %v2030, 1
        %v2073 = vrot.slane %v1758, 1
        %v2074 = vsel %vm1008, %v2072, %v2073
        %v2075 = vrot.slane %v2031, 1
        %v2076 = vrot.slane %v1759, 1
        %v2077 = vsel %vm1008, %v2075, %v2076
        %v2078 = vrot.slane %v2032, 1
        %v2079 = vrot.slane %v1760, 1
        %v2080 = vsel %vm1008, %v2078, %v2079
        %2081 = vrot.lane.b32.xlu0 %v2035, 64
        %v2082 = vpop.permute.xlu0 %2081
        %2083 = vrot.lane.b32.xlu0 %v2038, 64
        %v2084 = vpop.permute.xlu0 %2083
        %2085 = vrot.lane.b32.xlu0 %v2041, 64
        %v2086 = vpop.permute.xlu0 %2085
        %2087 = vrot.lane.b32.xlu0 %v2044, 64
        %v2088 = vpop.permute.xlu0 %2087
        %2089 = vrot.lane.b32.xlu0 %v2047, 64
        %v2090 = vpop.permute.xlu0 %2089
        %2091 = vrot.lane.b32.xlu0 %v2050, 64
        %v2092 = vpop.permute.xlu0 %2091
        %2093 = vrot.lane.b32.xlu0 %v2053, 64
        %v2094 = vpop.permute.xlu0 %2093
        %2095 = vrot.lane.b32.xlu0 %v2056, 64
        %v2096 = vpop.permute.xlu0 %2095
        %2097 = vrot.lane.b32.xlu0 %v2059, 64
        %v2098 = vpop.permute.xlu0 %2097
        %2099 = vrot.lane.b32.xlu0 %v2062, 64
        %v2100 = vpop.permute.xlu0 %2099
        %2101 = vrot.lane.b32.xlu0 %v2065, 64
        %v2102 = vpop.permute.xlu0 %2101
        %2103 = vrot.lane.b32.xlu0 %v2068, 64
        %v2104 = vpop.permute.xlu0 %2103
        %2105 = vrot.lane.b32.xlu0 %v2071, 64
        %v2106 = vpop.permute.xlu0 %2105
        %2107 = vrot.lane.b32.xlu0 %v2074, 64
        %v2108 = vpop.permute.xlu0 %2107
        %2109 = vrot.lane.b32.xlu0 %v2077, 64
        %v2110 = vpop.permute.xlu0 %2109
        %2111 = vrot.lane.b32.xlu0 %v2080, 64
        %v2112 = vpop.permute.xlu0 %2111
        %vm2113 = vcmask 64512
        %v2115 = vsel %vm2113, %v671, %v929
        %v2117 = vsel %vm2113, %v672, %v931
        %v2119 = vsel %vm2113, %v673, %v933
        %v2121 = vsel %vm2113, %v674, %v935
        %v2123 = vsel %vm2113, %v675, %v937
        %v2125 = vsel %vm2113, %v676, %v939
        %v2127 = vsel %vm2113, %v677, %v941
        %v2129 = vsel %vm2113, %v678, %v943
        %v2131 = vsel %vm2113, %v679, %v945
        %v2133 = vsel %vm2113, %v680, %v947
        %v2135 = vsel %vm2113, %v681, %v949
        %v2137 = vsel %vm2113, %v682, %v951
        %v2139 = vsel %vm2113, %v683, %v953
        %v2141 = vsel %vm2113, %v684, %v955
        %v2143 = vsel %vm2113, %v685, %v957
        %v2145 = vsel %vm2113, %v686, %v959
        %vm2146 = vcmask 130048
        %v2148 = vsel %vm2146, %v2115, %v1058
        %v2150 = vsel %vm2146, %v2117, %v1060
        %v2152 = vsel %vm2146, %v2119, %v1062
        %v2154 = vsel %vm2146, %v2121, %v1064
        %v2156 = vsel %vm2146, %v2123, %v1066
        %v2158 = vsel %vm2146, %v2125, %v1068
        %v2160 = vsel %vm2146, %v2127, %v1070
        %v2162 = vsel %vm2146, %v2129, %v1072
        %v2164 = vsel %vm2146, %v2131, %v1074
        %v2166 = vsel %vm2146, %v2133, %v1076
        %v2168 = vsel %vm2146, %v2135, %v1078
        %v2170 = vsel %vm2146, %v2137, %v1080
        %v2172 = vsel %vm2146, %v2139, %v1082
        %v2174 = vsel %vm2146, %v2141, %v1084
        %v2176 = vsel %vm2146, %v2143, %v1086
        %v2178 = vsel %vm2146, %v2145, %v1088
        %vm2179 = vcmask 195584
        %v2181 = vsel %vm2179, %v2148, %v1170
        %v2183 = vsel %vm2179, %v2150, %v1172
        %v2185 = vsel %vm2179, %v2152, %v1174
        %v2187 = vsel %vm2179, %v2154, %v1176
        %v2189 = vsel %vm2179, %v2156, %v1178
        %v2191 = vsel %vm2179, %v2158, %v1180
        %v2193 = vsel %vm2179, %v2160, %v1182
        %v2195 = vsel %vm2179, %v2162, %v1184
        %v2197 = vsel %vm2179, %v2164, %v1186
        %v2199 = vsel %vm2179, %v2166, %v1188
        %v2201 = vsel %vm2179, %v2168, %v1190
        %v2203 = vsel %vm2179, %v2170, %v1192
        %v2205 = vsel %vm2179, %v2172, %v1194
        %v2207 = vsel %vm2179, %v2174, %v1196
        %v2209 = vsel %vm2179, %v2176, %v1198
        %v2211 = vsel %vm2179, %v2178, %v1200
        %vm2212 = vcmask 261120
        %v2214 = vsel %vm2212, %v2181, %v1442
        %v2216 = vsel %vm2212, %v2183, %v1444
        %v2218 = vsel %vm2212, %v2185, %v1446
        %v2220 = vsel %vm2212, %v2187, %v1448
        %v2222 = vsel %vm2212, %v2189, %v1450
        %v2224 = vsel %vm2212, %v2191, %v1452
        %v2226 = vsel %vm2212, %v2193, %v1454
        %v2228 = vsel %vm2212, %v2195, %v1456
        %v2230 = vsel %vm2212, %v2197, %v1458
        %v2232 = vsel %vm2212, %v2199, %v1460
        %v2234 = vsel %vm2212, %v2201, %v1462
        %v2236 = vsel %vm2212, %v2203, %v1464
        %v2238 = vsel %vm2212, %v2205, %v1466
        %v2240 = vsel %vm2212, %v2207, %v1468
        %v2242 = vsel %vm2212, %v2209, %v1470
        %v2244 = vsel %vm2212, %v2211, %v1472
        %vm2245 = vcmask 326656
        %v2247 = vsel %vm2245, %v2214, %v1570
        %v2249 = vsel %vm2245, %v2216, %v1572
        %v2251 = vsel %vm2245, %v2218, %v1574
        %v2253 = vsel %vm2245, %v2220, %v1576
        %v2255 = vsel %vm2245, %v2222, %v1578
        %v2257 = vsel %vm2245, %v2224, %v1580
        %v2259 = vsel %vm2245, %v2226, %v1582
        %v2261 = vsel %vm2245, %v2228, %v1584
        %v2263 = vsel %vm2245, %v2230, %v1586
        %v2265 = vsel %vm2245, %v2232, %v1588
        %v2267 = vsel %vm2245, %v2234, %v1590
        %v2269 = vsel %vm2245, %v2236, %v1592
        %v2271 = vsel %vm2245, %v2238, %v1594
        %v2273 = vsel %vm2245, %v2240, %v1596
        %v2275 = vsel %vm2245, %v2242, %v1598
        %v2277 = vsel %vm2245, %v2244, %v1600
        %vm2278 = vcmask 392192
        %v2280 = vsel %vm2278, %v2247, %v1682
        %v2282 = vsel %vm2278, %v2249, %v1684
        %v2284 = vsel %vm2278, %v2251, %v1686
        %v2286 = vsel %vm2278, %v2253, %v1688
        %v2288 = vsel %vm2278, %v2255, %v1690
        %v2290 = vsel %vm2278, %v2257, %v1692
        %v2292 = vsel %vm2278, %v2259, %v1694
        %v2294 = vsel %vm2278, %v2261, %v1696
        %v2296 = vsel %vm2278, %v2263, %v1698
        %v2298 = vsel %vm2278, %v2265, %v1700
        %v2300 = vsel %vm2278, %v2267, %v1702
        %v2302 = vsel %vm2278, %v2269, %v1704
        %v2304 = vsel %vm2278, %v2271, %v1706
        %v2306 = vsel %vm2278, %v2273, %v1708
        %v2308 = vsel %vm2278, %v2275, %v1710
        %v2310 = vsel %vm2278, %v2277, %v1712
        %vm2311 = vcmask 457728
        %v2313 = vsel %vm2311, %v2280, %v1954
        %v2315 = vsel %vm2311, %v2282, %v1956
        %v2317 = vsel %vm2311, %v2284, %v1958
        %v2319 = vsel %vm2311, %v2286, %v1960
        %v2321 = vsel %vm2311, %v2288, %v1962
        %v2323 = vsel %vm2311, %v2290, %v1964
        %v2325 = vsel %vm2311, %v2292, %v1966
        %v2327 = vsel %vm2311, %v2294, %v1968
        %v2329 = vsel %vm2311, %v2296, %v1970
        %v2331 = vsel %vm2311, %v2298, %v1972
        %v2333 = vsel %vm2311, %v2300, %v1974
        %v2335 = vsel %vm2311, %v2302, %v1976
        %v2337 = vsel %vm2311, %v2304, %v1978
        %v2339 = vsel %vm2311, %v2306, %v1980
        %v2341 = vsel %vm2311, %v2308, %v1982
        %v2343 = vsel %vm2311, %v2310, %v1984
        %vm2344 = vcmask 523264
        %v2346 = vsel %vm2344, %v2313, %v2082
        %v2348 = vsel %vm2344, %v2315, %v2084
        %v2350 = vsel %vm2344, %v2317, %v2086
        %v2352 = vsel %vm2344, %v2319, %v2088
        %v2354 = vsel %vm2344, %v2321, %v2090
        %v2356 = vsel %vm2344, %v2323, %v2092
        %v2358 = vsel %vm2344, %v2325, %v2094
        %v2360 = vsel %vm2344, %v2327, %v2096
        %v2362 = vsel %vm2344, %v2329, %v2098
        %v2364 = vsel %vm2344, %v2331, %v2100
        %v2366 = vsel %vm2344, %v2333, %v2102
        %v2368 = vsel %vm2344, %v2335, %v2104
        %v2370 = vsel %vm2344, %v2337, %v2106
        %v2372 = vsel %vm2344, %v2339, %v2108
        %v2374 = vsel %vm2344, %v2341, %v2110
        %v2376 = vsel %vm2344, %v2343, %v2112
        %v2377 = vld [vmem:[%s1] sm:$0xf]
        %v2378 = vld [vmem:[%s1 + $0x4] sm:$0xf]
        %v2379 = vld [vmem:[%s1 + $0x8] sm:$0xf]
        %v2380 = vld [vmem:[%s1 + $0xc] sm:$0xf]
        %v2381 = vld [vmem:[%s1 + $0x10] sm:$0xf]
        %v2382 = vld [vmem:[%s1 + $0x14] sm:$0xf]
        %v2383 = vld [vmem:[%s1 + $0x18] sm:$0xf]
        %v2384 = vld [vmem:[%s1 + $0x1c] sm:$0xf]
        %v2385 = vld [vmem:[%s1 + $0x20] sm:$0xf]
        %v2386 = vld [vmem:[%s2] sm:$0x1]
        %v2388 = vlaneseq
        %v2389 = vshrl.u32 %v2388, 7
        %v2390 = vsub.s32 0, %v2389
        %v2391 = vrot.slane %v2386, %v2390
        %v2402 = vunpack.c.l.b16 %v2377
        %v2403 = vunpack.c.l.b16 %v2378
        %v2404 = vunpack.c.l.b16 %v2379
        %v2405 = vunpack.c.l.b16 %v2380
        %v2406 = vunpack.c.l.b16 %v2381
        %v2407 = vunpack.c.l.b16 %v2382
        %v2408 = vunpack.c.l.b16 %v2383
        %v2409 = vunpack.c.l.b16 %v2384
        %v2410 = vunpack.c.l.b16 %v2385
        %v2411 = vpack.c.b16 %v2403, %v2402
        %v2412 = vpack.c.b16 %v2405, %v2404
        %v2413 = vpack.c.b16 %v2407, %v2406
        %v2414 = vpack.c.b16 %v2409, %v2408
        %v2415 = vpack.c.b16 %v2410, %v2410
        %vm2420 = vcmask 588800
        %v2421 = vsel %vm2420, %v2346, 0
        %v2423 = vsel %vm2420, %v2348, 0
        %v2425 = vsel %vm2420, %v2350, 0
        %v2427 = vsel %vm2420, %v2352, 0
        %v2429 = vsel %vm2420, %v2354, 0
        %v2431 = vsel %vm2420, %v2356, 0
        %v2433 = vsel %vm2420, %v2358, 0
        %v2435 = vsel %vm2420, %v2360, 0
        %v2437 = vsel %vm2420, %v2362, 0
        %v2439 = vsel %vm2420, %v2364, 0
        %v2441 = vsel %vm2420, %v2366, 0
        %v2443 = vsel %vm2420, %v2368, 0
        %v2445 = vsel %vm2420, %v2370, 0
        %v2447 = vsel %vm2420, %v2372, 0
        %v2449 = vsel %vm2420, %v2374, 0
        %v2451 = vsel %vm2420, %v2376, 0
        %vm2453 = vcmask 1043456
        %v2455 = vsel %vm2453, %v2415, 0
        %2457 = vmatprep.subr.bf16.mxu0 0
        %2458 = vmatpush1.bf16.msra.mxu0 0
        %2459 = vmatprep.subr.bf16.mxu0 0
        %2460 = vmatpush1.bf16.msra.mxu0 0
        %2461 = vmatprep.subr.bf16.mxu0 0
        %2462 = vmatpush1.bf16.msra.mxu0 0
        %2463 = vmatprep.subr.bf16.mxu0 0
        %2464 = vmatpush1.bf16.msra.mxu0 %v2455
        %2465 = vmatprep.subr.bf16.mxu0 0
        %2466 = vmatpush1.bf16.msra.mxu0 %v2414
        %2467 = vmatprep.subr.bf16.mxu0 0
        %2468 = vmatpush1.bf16.msra.mxu0 %v2413
        %2469 = vmatprep.subr.bf16.mxu0 0
        %2470 = vmatpush1.bf16.msra.mxu0 %v2412
        %2471 = vmatprep.subr.bf16.mxu0 0
        %2472 = vmatpush1.bf16.msra.mxu0 %v2411
        %2473 = vmatprep.subr.bf16.mxu0 0
        %2474 = vmatpush2.bf16.msra.mxu0 0
        %2475 = vmatprep.subr.bf16.mxu0 0
        %2476 = vmatpush2.bf16.msra.mxu0 0
        %2477 = vmatprep.subr.bf16.mxu0 0
        %2478 = vmatpush2.bf16.msra.mxu0 0
        %2479 = vmatprep.subr.bf16.mxu0 0
        %2480 = vmatpush2.bf16.msra.mxu0 0
        %2481 = vmatprep.subr.bf16.mxu0 0
        %2482 = vmatpush2.bf16.msra.mxu0 0
        %2483 = vmatprep.subr.bf16.mxu0 0
        %2484 = vmatpush2.bf16.msra.mxu0 0
        %2485 = vmatprep.subr.bf16.mxu0 0
        %2486 = vmatpush2.bf16.msra.mxu0 0
        %2487 = vmatprep.subr.bf16.mxu0 0
        %2488 = vmatpush2.bf16.msra.mxu0 0
        %2489 = vmatprep.mubr.bf16.mxu0 0
        %2490 = vmatmul.mubr.bf16.gmra.mxu0 %v2421
        %v2491 = vpop.f32.mrf.mxu0
        %v2492 = vadd.f32 %v2391, %v2491
        %v2493 = vpop.f32.mrf.mxu0
        %v2494 = vpop.f32.mrf.mxu0
        %v2495 = vadd.f32 %v2391, %v2494
        %v2496 = vpop.f32.mrf.mxu0
        %2497 = vmatprep.mubr.bf16.mxu0 0
        %2498 = vmatmul.mubr.bf16.gmra.mxu0 %v2423
        %v2499 = vpop.f32.mrf.mxu0
        %v2500 = vadd.f32 %v2391, %v2499
        %v2501 = vpop.f32.mrf.mxu0
        %v2502 = vpop.f32.mrf.mxu0
        %v2503 = vadd.f32 %v2391, %v2502
        %v2504 = vpop.f32.mrf.mxu0
        %2505 = vmatprep.mubr.bf16.mxu0 0
        %2506 = vmatmul.mubr.bf16.gmra.mxu0 %v2425
        %v2507 = vpop.f32.mrf.mxu0
        %v2508 = vadd.f32 %v2391, %v2507
        %v2509 = vpop.f32.mrf.mxu0
        %v2510 = vpop.f32.mrf.mxu0
        %v2511 = vadd.f32 %v2391, %v2510
        %v2512 = vpop.f32.mrf.mxu0
        %2513 = vmatprep.mubr.bf16.mxu0 0
        %2514 = vmatmul.mubr.bf16.gmra.mxu0 %v2427
        %v2515 = vpop.f32.mrf.mxu0
        %v2516 = vadd.f32 %v2391, %v2515
        %v2517 = vpop.f32.mrf.mxu0
        %v2518 = vpop.f32.mrf.mxu0
        %v2519 = vadd.f32 %v2391, %v2518
        %v2520 = vpop.f32.mrf.mxu0
        %2521 = vmatprep.mubr.bf16.mxu0 0
        %2522 = vmatmul.mubr.bf16.gmra.mxu0 %v2429
        %v2523 = vpop.f32.mrf.mxu0
        %v2524 = vadd.f32 %v2391, %v2523
        %v2525 = vpop.f32.mrf.mxu0
        %v2526 = vpop.f32.mrf.mxu0
        %v2527 = vadd.f32 %v2391, %v2526
        %v2528 = vpop.f32.mrf.mxu0
        %2529 = vmatprep.mubr.bf16.mxu0 0
        %2530 = vmatmul.mubr.bf16.gmra.mxu0 %v2431
        %v2531 = vpop.f32.mrf.mxu0
        %v2532 = vadd.f32 %v2391, %v2531
        %v2533 = vpop.f32.mrf.mxu0
        %v2534 = vpop.f32.mrf.mxu0
        %v2535 = vadd.f32 %v2391, %v2534
        %v2536 = vpop.f32.mrf.mxu0
        %2537 = vmatprep.mubr.bf16.mxu0 0
        %2538 = vmatmul.mubr.bf16.gmra.mxu0 %v2433
        %v2539 = vpop.f32.mrf.mxu0
        %v2540 = vadd.f32 %v2391, %v2539
        %v2541 = vpop.f32.mrf.mxu0
        %v2542 = vpop.f32.mrf.mxu0
        %v2543 = vadd.f32 %v2391, %v2542
        %v2544 = vpop.f32.mrf.mxu0
        %2545 = vmatprep.mubr.bf16.mxu0 0
        %2546 = vmatmul.mubr.bf16.gmra.mxu0 %v2435
        %v2547 = vpop.f32.mrf.mxu0
        %v2548 = vadd.f32 %v2391, %v2547
        %v2549 = vpop.f32.mrf.mxu0
        %v2550 = vpop.f32.mrf.mxu0
        %v2551 = vadd.f32 %v2391, %v2550
        %v2552 = vpop.f32.mrf.mxu0
        %2553 = vmatprep.mubr.bf16.mxu0 0
        %2554 = vmatmul.mubr.bf16.gmra.mxu0 %v2437
        %v2555 = vpop.f32.mrf.mxu0
        %v2556 = vadd.f32 %v2391, %v2555
        %v2557 = vpop.f32.mrf.mxu0
        %v2558 = vpop.f32.mrf.mxu0
        %v2559 = vadd.f32 %v2391, %v2558
        %v2560 = vpop.f32.mrf.mxu0
        %2561 = vmatprep.mubr.bf16.mxu0 0
        %2562 = vmatmul.mubr.bf16.gmra.mxu0 %v2439
        %v2563 = vpop.f32.mrf.mxu0
        %v2564 = vadd.f32 %v2391, %v2563
        %v2565 = vpop.f32.mrf.mxu0
        %v2566 = vpop.f32.mrf.mxu0
        %v2567 = vadd.f32 %v2391, %v2566
        %v2568 = vpop.f32.mrf.mxu0
        %2569 = vmatprep.mubr.bf16.mxu0 0
        %2570 = vmatmul.mubr.bf16.gmra.mxu0 %v2441
        %v2571 = vpop.f32.mrf.mxu0
        %v2572 = vadd.f32 %v2391, %v2571
        %v2573 = vpop.f32.mrf.mxu0
        %v2574 = vpop.f32.mrf.mxu0
        %v2575 = vadd.f32 %v2391, %v2574
        %v2576 = vpop.f32.mrf.mxu0
        %2577 = vmatprep.mubr.bf16.mxu0 0
        %2578 = vmatmul.mubr.bf16.gmra.mxu0 %v2443
        %v2579 = vpop.f32.mrf.mxu0
        %v2580 = vadd.f32 %v2391, %v2579
        %v2581 = vpop.f32.mrf.mxu0
        %v2582 = vpop.f32.mrf.mxu0
        %v2583 = vadd.f32 %v2391, %v2582
        %v2584 = vpop.f32.mrf.mxu0
        %2585 = vmatprep.mubr.bf16.mxu0 0
        %2586 = vmatmul.mubr.bf16.gmra.mxu0 %v2445
        %v2587 = vpop.f32.mrf.mxu0
        %v2588 = vadd.f32 %v2391, %v2587
        %v2589 = vpop.f32.mrf.mxu0
        %v2590 = vpop.f32.mrf.mxu0
        %v2591 = vadd.f32 %v2391, %v2590
        %v2592 = vpop.f32.mrf.mxu0
        %2593 = vmatprep.mubr.bf16.mxu0 0
        %2594 = vmatmul.mubr.bf16.gmra.mxu0 %v2447
        %v2595 = vpop.f32.mrf.mxu0
        %v2596 = vadd.f32 %v2391, %v2595
        %v2597 = vpop.f32.mrf.mxu0
        %v2598 = vpop.f32.mrf.mxu0
        %v2599 = vadd.f32 %v2391, %v2598
        %v2600 = vpop.f32.mrf.mxu0
        %2601 = vmatprep.mubr.bf16.mxu0 0
        %2602 = vmatmul.mubr.bf16.gmra.mxu0 %v2449
        %v2603 = vpop.f32.mrf.mxu0
        %v2604 = vadd.f32 %v2391, %v2603
        %v2605 = vpop.f32.mrf.mxu0
        %v2606 = vpop.f32.mrf.mxu0
        %v2607 = vadd.f32 %v2391, %v2606
        %v2608 = vpop.f32.mrf.mxu0
        %2609 = vmatprep.mubr.bf16.mxu0 0
        %2610 = vmatmul.mubr.bf16.gmra.mxu0 %v2451
        %v2611 = vpop.f32.mrf.mxu0
        %v2612 = vadd.f32 %v2391, %v2611
        %v2613 = vpop.f32.mrf.mxu0
        %v2614 = vpop.f32.mrf.mxu0
        %v2615 = vadd.f32 %v2391, %v2614
        %v2616 = vpop.f32.mrf.mxu0
        %2617 = vdwg.mxu0
        %v2618 = vmax.f32 %v2492, 0.0
        %v2619 = vmax.f32 %v2495, 0.0
        %v2620 = vmax.f32 %v2500, 0.0
        %v2621 = vmax.f32 %v2503, 0.0
        %v2622 = vmax.f32 %v2508, 0.0
        %v2623 = vmax.f32 %v2511, 0.0
        %v2624 = vmax.f32 %v2516, 0.0
        %v2625 = vmax.f32 %v2519, 0.0
        %v2626 = vmax.f32 %v2524, 0.0
        %v2627 = vmax.f32 %v2527, 0.0
        %v2628 = vmax.f32 %v2532, 0.0
        %v2629 = vmax.f32 %v2535, 0.0
        %v2630 = vmax.f32 %v2540, 0.0
        %v2631 = vmax.f32 %v2543, 0.0
        %v2632 = vmax.f32 %v2548, 0.0
        %v2633 = vmax.f32 %v2551, 0.0
        %v2634 = vmax.f32 %v2556, 0.0
        %v2635 = vmax.f32 %v2559, 0.0
        %v2636 = vmax.f32 %v2564, 0.0
        %v2637 = vmax.f32 %v2567, 0.0
        %v2638 = vmax.f32 %v2572, 0.0
        %v2639 = vmax.f32 %v2575, 0.0
        %v2640 = vmax.f32 %v2580, 0.0
        %v2641 = vmax.f32 %v2583, 0.0
        %v2642 = vmax.f32 %v2588, 0.0
        %v2643 = vmax.f32 %v2591, 0.0
        %v2644 = vmax.f32 %v2596, 0.0
        %v2645 = vmax.f32 %v2599, 0.0
        %v2646 = vmax.f32 %v2604, 0.0
        %v2647 = vmax.f32 %v2607, 0.0
        %v2648 = vmax.f32 %v2612, 0.0
        %v2649 = vmax.f32 %v2615, 0.0
        %v2650 = vpack.c.bf16 %v2619, %v2618
        %v2651 = vpack.c.bf16 %v2621, %v2620
        %v2652 = vpack.c.bf16 %v2623, %v2622
        %v2653 = vpack.c.bf16 %v2625, %v2624
        %v2654 = vpack.c.bf16 %v2627, %v2626
        %v2655 = vpack.c.bf16 %v2629, %v2628
        %v2656 = vpack.c.bf16 %v2631, %v2630
        %v2657 = vpack.c.bf16 %v2633, %v2632
        %v2658 = vpack.c.bf16 %v2635, %v2634
        %v2659 = vpack.c.bf16 %v2637, %v2636
        %v2660 = vpack.c.bf16 %v2639, %v2638
        %v2661 = vpack.c.bf16 %v2641, %v2640
        %v2662 = vpack.c.bf16 %v2643, %v2642
        %v2663 = vpack.c.bf16 %v2645, %v2644
        %v2664 = vpack.c.bf16 %v2647, %v2646
        %v2665 = vpack.c.bf16 %v2649, %v2648
        %v2666 = vld [vmem:[%s3] sm:$0xf]
        %v2667 = vld [vmem:[%s3 + $0x4] sm:$0xf]
        %v2668 = vld [vmem:[%s4] sm:$0x1]
        %v2670 = vlaneseq
        %v2671 = vshrl.u32 %v2670, 7
        %v2672 = vsub.s32 0, %v2671
        %v2673 = vrot.slane %v2668, %v2672
        %v2677 = vunpack.c.l.b16 %v2666
        %v2678 = vunpack.c.l.b16 %v2667
        %v2679 = vpack.c.b16 %v2678, %v2677
        %v2682 = vsel %vm2146, %v2650, 0
        %v2685 = vsel %vm2146, %v2651, 0
        %v2688 = vsel %vm2146, %v2652, 0
        %v2691 = vsel %vm2146, %v2653, 0
        %v2694 = vsel %vm2146, %v2654, 0
        %v2697 = vsel %vm2146, %v2655, 0
        %v2700 = vsel %vm2146, %v2656, 0
        %v2703 = vsel %vm2146, %v2657, 0
        %v2706 = vsel %vm2146, %v2658, 0
        %v2709 = vsel %vm2146, %v2659, 0
        %v2712 = vsel %vm2146, %v2660, 0
        %v2715 = vsel %vm2146, %v2661, 0
        %v2718 = vsel %vm2146, %v2662, 0
        %v2721 = vsel %vm2146, %v2663, 0
        %v2724 = vsel %vm2146, %v2664, 0
        %v2727 = vsel %vm2146, %v2665, 0
        %2729 = vmatprep.subr.bf16.mxu0 0
        %2730 = vmatpush1.bf16.msra.mxu0 0
        %2731 = vmatprep.subr.bf16.mxu0 0
        %2732 = vmatpush1.bf16.msra.mxu0 0
        %2733 = vmatprep.subr.bf16.mxu0 0
        %2734 = vmatpush1.bf16.msra.mxu0 0
        %2735 = vmatprep.subr.bf16.mxu0 0
        %2736 = vmatpush1.bf16.msra.mxu0 0
        %2737 = vmatprep.subr.bf16.mxu0 0
        %2738 = vmatpush1.bf16.msra.mxu0 0
        %2739 = vmatprep.subr.bf16.mxu0 0
        %2740 = vmatpush1.bf16.msra.mxu0 0
        %2741 = vmatprep.subr.bf16.mxu0 0
        %2742 = vmatpush1.bf16.msra.mxu0 0
        %2743 = vmatprep.subr.bf16.mxu0 0
        %2744 = vmatpush1.bf16.msra.mxu0 %v2679
        %2745 = vmatprep.subr.bf16.mxu0 0
        %2746 = vmatpush2.bf16.msra.mxu0 0
        %2747 = vmatprep.subr.bf16.mxu0 0
        %2748 = vmatpush2.bf16.msra.mxu0 0
        %2749 = vmatprep.subr.bf16.mxu0 0
        %2750 = vmatpush2.bf16.msra.mxu0 0
        %2751 = vmatprep.subr.bf16.mxu0 0
        %2752 = vmatpush2.bf16.msra.mxu0 0
        %2753 = vmatprep.subr.bf16.mxu0 0
        %2754 = vmatpush2.bf16.msra.mxu0 0
        %2755 = vmatprep.subr.bf16.mxu0 0
        %2756 = vmatpush2.bf16.msra.mxu0 0
        %2757 = vmatprep.subr.bf16.mxu0 0
        %2758 = vmatpush2.bf16.msra.mxu0 0
        %2759 = vmatprep.subr.bf16.mxu0 0
        %2760 = vmatpush2.bf16.msra.mxu0 0
        %2761 = vmatprep.mubr.bf16.mxu0 0
        %2762 = vmatmul.mubr.bf16.gmra.mxu0 %v2682
        %v2763 = vpop.f32.mrf.mxu0
        %v2764 = vadd.f32 %v2673, %v2763
        %v2765 = vpop.f32.mrf.mxu0
        %v2766 = vpop.f32.mrf.mxu0
        %v2767 = vadd.f32 %v2673, %v2766
        %v2768 = vpop.f32.mrf.mxu0
        %2769 = vmatprep.mubr.bf16.mxu0 0
        %2770 = vmatmul.mubr.bf16.gmra.mxu0 %v2685
        %v2771 = vpop.f32.mrf.mxu0
        %v2772 = vadd.f32 %v2673, %v2771
        %v2773 = vpop.f32.mrf.mxu0
        %v2774 = vpop.f32.mrf.mxu0
        %v2775 = vadd.f32 %v2673, %v2774
        %v2776 = vpop.f32.mrf.mxu0
        %2777 = vmatprep.mubr.bf16.mxu0 0
        %2778 = vmatmul.mubr.bf16.gmra.mxu0 %v2688
        %v2779 = vpop.f32.mrf.mxu0
        %v2780 = vadd.f32 %v2673, %v2779
        %v2781 = vpop.f32.mrf.mxu0
        %v2782 = vpop.f32.mrf.mxu0
        %v2783 = vadd.f32 %v2673, %v2782
        %v2784 = vpop.f32.mrf.mxu0
        %2785 = vmatprep.mubr.bf16.mxu0 0
        %2786 = vmatmul.mubr.bf16.gmra.mxu0 %v2691
        %v2787 = vpop.f32.mrf.mxu0
        %v2788 = vadd.f32 %v2673, %v2787
        %v2789 = vpop.f32.mrf.mxu0
        %v2790 = vpop.f32.mrf.mxu0
        %v2791 = vadd.f32 %v2673, %v2790
        %v2792 = vpop.f32.mrf.mxu0
        %2793 = vmatprep.mubr.bf16.mxu0 0
        %2794 = vmatmul.mubr.bf16.gmra.mxu0 %v2694
        %v2795 = vpop.f32.mrf.mxu0
        %v2796 = vadd.f32 %v2673, %v2795
        %v2797 = vpop.f32.mrf.mxu0
        %v2798 = vpop.f32.mrf.mxu0
        %v2799 = vadd.f32 %v2673, %v2798
        %v2800 = vpop.f32.mrf.mxu0
        %2801 = vmatprep.mubr.bf16.mxu0 0
        %2802 = vmatmul.mubr.bf16.gmra.mxu0 %v2697
        %v2803 = vpop.f32.mrf.mxu0
        %v2804 = vadd.f32 %v2673, %v2803
        %v2805 = vpop.f32.mrf.mxu0
        %v2806 = vpop.f32.mrf.mxu0
        %v2807 = vadd.f32 %v2673, %v2806
        %v2808 = vpop.f32.mrf.mxu0
        %2809 = vmatprep.mubr.bf16.mxu0 0
        %2810 = vmatmul.mubr.bf16.gmra.mxu0 %v2700
        %v2811 = vpop.f32.mrf.mxu0
        %v2812 = vadd.f32 %v2673, %v2811
        %v2813 = vpop.f32.mrf.mxu0
        %v2814 = vpop.f32.mrf.mxu0
        %v2815 = vadd.f32 %v2673, %v2814
        %v2816 = vpop.f32.mrf.mxu0
        %2817 = vmatprep.mubr.bf16.mxu0 0
        %2818 = vmatmul.mubr.bf16.gmra.mxu0 %v2703
        %v2819 = vpop.f32.mrf.mxu0
        %v2820 = vadd.f32 %v2673, %v2819
        %v2821 = vpop.f32.mrf.mxu0
        %v2822 = vpop.f32.mrf.mxu0
        %v2823 = vadd.f32 %v2673, %v2822
        %v2824 = vpop.f32.mrf.mxu0
        %2825 = vmatprep.mubr.bf16.mxu0 0
        %2826 = vmatmul.mubr.bf16.gmra.mxu0 %v2706
        %v2827 = vpop.f32.mrf.mxu0
        %v2828 = vadd.f32 %v2673, %v2827
        %v2829 = vpop.f32.mrf.mxu0
        %v2830 = vpop.f32.mrf.mxu0
        %v2831 = vadd.f32 %v2673, %v2830
        %v2832 = vpop.f32.mrf.mxu0
        %2833 = vmatprep.mubr.bf16.mxu0 0
        %2834 = vmatmul.mubr.bf16.gmra.mxu0 %v2709
        %v2835 = vpop.f32.mrf.mxu0
        %v2836 = vadd.f32 %v2673, %v2835
        %v2837 = vpop.f32.mrf.mxu0
        %v2838 = vpop.f32.mrf.mxu0
        %v2839 = vadd.f32 %v2673, %v2838
        %v2840 = vpop.f32.mrf.mxu0
        %2841 = vmatprep.mubr.bf16.mxu0 0
        %2842 = vmatmul.mubr.bf16.gmra.mxu0 %v2712
        %v2843 = vpop.f32.mrf.mxu0
        %v2844 = vadd.f32 %v2673, %v2843
        %v2845 = vpop.f32.mrf.mxu0
        %v2846 = vpop.f32.mrf.mxu0
        %v2847 = vadd.f32 %v2673, %v2846
        %v2848 = vpop.f32.mrf.mxu0
        %2849 = vmatprep.mubr.bf16.mxu0 0
        %2850 = vmatmul.mubr.bf16.gmra.mxu0 %v2715
        %v2851 = vpop.f32.mrf.mxu0
        %v2852 = vadd.f32 %v2673, %v2851
        %v2853 = vpop.f32.mrf.mxu0
        %v2854 = vpop.f32.mrf.mxu0
        %v2855 = vadd.f32 %v2673, %v2854
        %v2856 = vpop.f32.mrf.mxu0
        %2857 = vmatprep.mubr.bf16.mxu0 0
        %2858 = vmatmul.mubr.bf16.gmra.mxu0 %v2718
        %v2859 = vpop.f32.mrf.mxu0
        %v2860 = vadd.f32 %v2673, %v2859
        %v2861 = vpop.f32.mrf.mxu0
        %v2862 = vpop.f32.mrf.mxu0
        %v2863 = vadd.f32 %v2673, %v2862
        %v2864 = vpop.f32.mrf.mxu0
        %2865 = vmatprep.mubr.bf16.mxu0 0
        %2866 = vmatmul.mubr.bf16.gmra.mxu0 %v2721
        %v2867 = vpop.f32.mrf.mxu0
        %v2868 = vadd.f32 %v2673, %v2867
        %v2869 = vpop.f32.mrf.mxu0
        %v2870 = vpop.f32.mrf.mxu0
        %v2871 = vadd.f32 %v2673, %v2870
        %v2872 = vpop.f32.mrf.mxu0
        %2873 = vmatprep.mubr.bf16.mxu0 0
        %2874 = vmatmul.mubr.bf16.gmra.mxu0 %v2724
        %v2875 = vpop.f32.mrf.mxu0
        %v2876 = vadd.f32 %v2673, %v2875
        %v2877 = vpop.f32.mrf.mxu0
        %v2878 = vpop.f32.mrf.mxu0
        %v2879 = vadd.f32 %v2673, %v2878
        %v2880 = vpop.f32.mrf.mxu0
        %2881 = vmatprep.mubr.bf16.mxu0 0
        %2882 = vmatmul.mubr.bf16.gmra.mxu0 %v2727
        %v2883 = vpop.f32.mrf.mxu0
        %v2884 = vadd.f32 %v2673, %v2883
        %v2885 = vpop.f32.mrf.mxu0
        %v2886 = vpop.f32.mrf.mxu0
        %v2887 = vadd.f32 %v2673, %v2886
        %v2888 = vpop.f32.mrf.mxu0
        %2889 = vdwg.mxu0
        %v2890 = vmax.f32 %v2764, 0.0
        %v2891 = vmax.f32 %v2767, 0.0
        %v2892 = vmax.f32 %v2772, 0.0
        %v2893 = vmax.f32 %v2775, 0.0
        %v2894 = vmax.f32 %v2780, 0.0
        %v2895 = vmax.f32 %v2783, 0.0
        %v2896 = vmax.f32 %v2788, 0.0
        %v2897 = vmax.f32 %v2791, 0.0
        %v2898 = vmax.f32 %v2796, 0.0
        %v2899 = vmax.f32 %v2799, 0.0
        %v2900 = vmax.f32 %v2804, 0.0
        %v2901 = vmax.f32 %v2807, 0.0
        %v2902 = vmax.f32 %v2812, 0.0
        %v2903 = vmax.f32 %v2815, 0.0
        %v2904 = vmax.f32 %v2820, 0.0
        %v2905 = vmax.f32 %v2823, 0.0
        %v2906 = vmax.f32 %v2828, 0.0
        %v2907 = vmax.f32 %v2831, 0.0
        %v2908 = vmax.f32 %v2836, 0.0
        %v2909 = vmax.f32 %v2839, 0.0
        %v2910 = vmax.f32 %v2844, 0.0
        %v2911 = vmax.f32 %v2847, 0.0
        %v2912 = vmax.f32 %v2852, 0.0
        %v2913 = vmax.f32 %v2855, 0.0
        %v2914 = vmax.f32 %v2860, 0.0
        %v2915 = vmax.f32 %v2863, 0.0
        %v2916 = vmax.f32 %v2868, 0.0
        %v2917 = vmax.f32 %v2871, 0.0
        %v2918 = vmax.f32 %v2876, 0.0
        %v2919 = vmax.f32 %v2879, 0.0
        %v2920 = vmax.f32 %v2884, 0.0
        %v2921 = vmax.f32 %v2887, 0.0
        %v2922 = vpack.c.bf16 %v2891, %v2890
        %v2923 = vpack.c.bf16 %v2893, %v2892
        %v2924 = vpack.c.bf16 %v2895, %v2894
        %v2925 = vpack.c.bf16 %v2897, %v2896
        %v2926 = vpack.c.bf16 %v2899, %v2898
        %v2927 = vpack.c.bf16 %v2901, %v2900
        %v2928 = vpack.c.bf16 %v2903, %v2902
        %v2929 = vpack.c.bf16 %v2905, %v2904
        %v2930 = vpack.c.bf16 %v2907, %v2906
        %v2931 = vpack.c.bf16 %v2909, %v2908
        %v2932 = vpack.c.bf16 %v2911, %v2910
        %v2933 = vpack.c.bf16 %v2913, %v2912
        %v2934 = vpack.c.bf16 %v2915, %v2914
        %v2935 = vpack.c.bf16 %v2917, %v2916
        %v2936 = vpack.c.bf16 %v2919, %v2918
        %v2937 = vpack.c.bf16 %v2921, %v2920
        %v2938 = vpack.c.bf16 %v2767, %v2764
        %v2939 = vpack.c.bf16 %v2775, %v2772
        %v2940 = vpack.c.bf16 %v2783, %v2780
        %v2941 = vpack.c.bf16 %v2791, %v2788
        %v2942 = vpack.c.bf16 %v2799, %v2796
        %v2943 = vpack.c.bf16 %v2807, %v2804
        %v2944 = vpack.c.bf16 %v2815, %v2812
        %v2945 = vpack.c.bf16 %v2823, %v2820
        %v2946 = vpack.c.bf16 %v2831, %v2828
        %v2947 = vpack.c.bf16 %v2839, %v2836
        %v2948 = vpack.c.bf16 %v2847, %v2844
        %v2949 = vpack.c.bf16 %v2855, %v2852
        %v2950 = vpack.c.bf16 %v2863, %v2860
        %v2951 = vpack.c.bf16 %v2871, %v2868
        %v2952 = vpack.c.bf16 %v2879, %v2876
        %v2953 = vpack.c.bf16 %v2887, %v2884
        %v2955 = vsel %vm2113, %v2922, 0
        %v2958 = vsel %vm2113, %v2923, 0
        %v2961 = vsel %vm2113, %v2924, 0
        %v2964 = vsel %vm2113, %v2925, 0
        %v2967 = vsel %vm2113, %v2926, 0
        %v2970 = vsel %vm2113, %v2927, 0
        %v2973 = vsel %vm2113, %v2928, 0
        %v2976 = vsel %vm2113, %v2929, 0
        %v2979 = vsel %vm2113, %v2930, 0
        %v2982 = vsel %vm2113, %v2931, 0
        %v2985 = vsel %vm2113, %v2932, 0
        %v2988 = vsel %vm2113, %v2933, 0
        %v2991 = vsel %vm2113, %v2934, 0
        %v2994 = vsel %vm2113, %v2935, 0
        %v2997 = vsel %vm2113, %v2936, 0
        %v3000 = vsel %vm2113, %v2937, 0
        %3002 = vmatprep.subr.bf16.mxu0 0
        %3003 = vmatpush1.bf16.xpose.msra.mxu0 %v2976
        %3004 = vmatprep.subr.bf16.mxu0 0
        %3005 = vmatpush1.bf16.xpose.msra.mxu0 %v2973
        %3006 = vmatprep.subr.bf16.mxu0 0
        %3007 = vmatpush1.bf16.xpose.msra.mxu0 %v2970
        %3008 = vmatprep.subr.bf16.mxu0 0
        %3009 = vmatpush1.bf16.xpose.msra.mxu0 %v2967
        %3010 = vmatprep.subr.bf16.mxu0 0
        %3011 = vmatpush1.bf16.xpose.msra.mxu0 %v2964
        %3012 = vmatprep.subr.bf16.mxu0 0
        %3013 = vmatpush1.bf16.xpose.msra.mxu0 %v2961
        %3014 = vmatprep.subr.bf16.mxu0 0
        %3015 = vmatpush1.bf16.xpose.msra.mxu0 %v2958
        %3016 = vmatprep.subr.bf16.mxu0 0
        %3017 = vmatpush1.bf16.xpose.msra.mxu0 %v2955
        %3018 = vmatprep.subr.bf16.mxu0 0
        %3019 = vmatpush2.bf16.xpose.msra.mxu0 %v3000
        %3020 = vmatprep.subr.bf16.mxu0 0
        %3021 = vmatpush2.bf16.xpose.msra.mxu0 %v2997
        %3022 = vmatprep.subr.bf16.mxu0 0
        %3023 = vmatpush2.bf16.xpose.msra.mxu0 %v2994
        %3024 = vmatprep.subr.bf16.mxu0 0
        %3025 = vmatpush2.bf16.xpose.msra.mxu0 %v2991
        %3026 = vmatprep.subr.bf16.mxu0 0
        %3027 = vmatpush2.bf16.xpose.msra.mxu0 %v2988
        %3028 = vmatprep.subr.bf16.mxu0 0
        %3029 = vmatpush2.bf16.xpose.msra.mxu0 %v2985
        %3030 = vmatprep.subr.bf16.mxu0 0
        %3031 = vmatpush2.bf16.xpose.msra.mxu0 %v2982
        %3032 = vmatprep.subr.bf16.mxu0 0
        %3033 = vmatpush2.bf16.xpose.msra.mxu0 %v2979
        %3034 = vmatprep.mubr.bf16.mxu0 0
        %3035 = vmatmul.mubr.bf16.gmra.mxu0 %v2955
        %v3036 = vpop.f32.mrf.mxu0
        %v3037 = vadd.f32 0.0, %v3036
        %v3038 = vpop.f32.mrf.mxu0
        %v3039 = vadd.f32 0.0, %v3038
        %v3040 = vpop.f32.mrf.mxu0
        %v3041 = vadd.f32 0.0, %v3040
        %v3042 = vpop.f32.mrf.mxu0
        %v3043 = vadd.f32 0.0, %v3042
        %3044 = vmatprep.mubr.bf16.mxu0 0
        %3045 = vmatmul.mubr.bf16.gmra.mxu0 %v2958
        %v3046 = vpop.f32.mrf.mxu0
        %v3047 = vadd.f32 0.0, %v3046
        %v3048 = vpop.f32.mrf.mxu0
        %v3049 = vadd.f32 0.0, %v3048
        %v3050 = vpop.f32.mrf.mxu0
        %v3051 = vadd.f32 0.0, %v3050
        %v3052 = vpop.f32.mrf.mxu0
        %v3053 = vadd.f32 0.0, %v3052
        %3054 = vmatprep.mubr.bf16.mxu0 0
        %3055 = vmatmul.mubr.bf16.gmra.mxu0 %v2961
        %v3056 = vpop.f32.mrf.mxu0
        %v3057 = vadd.f32 0.0, %v3056
        %v3058 = vpop.f32.mrf.mxu0
        %v3059 = vadd.f32 0.0, %v3058
        %v3060 = vpop.f32.mrf.mxu0
        %v3061 = vadd.f32 0.0, %v3060
        %v3062 = vpop.f32.mrf.mxu0
        %v3063 = vadd.f32 0.0, %v3062
        %3064 = vmatprep.mubr.bf16.mxu0 0
        %3065 = vmatmul.mubr.bf16.gmra.mxu0 %v2964
        %v3066 = vpop.f32.mrf.mxu0
        %v3067 = vadd.f32 0.0, %v3066
        %v3068 = vpop.f32.mrf.mxu0
        %v3069 = vadd.f32 0.0, %v3068
        %v3070 = vpop.f32.mrf.mxu0
        %v3071 = vadd.f32 0.0, %v3070
        %v3072 = vpop.f32.mrf.mxu0
        %v3073 = vadd.f32 0.0, %v3072
        %3074 = vmatprep.mubr.bf16.mxu0 0
        %3075 = vmatmul.mubr.bf16.gmra.mxu0 %v2967
        %v3076 = vpop.f32.mrf.mxu0
        %v3077 = vadd.f32 0.0, %v3076
        %v3078 = vpop.f32.mrf.mxu0
        %v3079 = vadd.f32 0.0, %v3078
        %v3080 = vpop.f32.mrf.mxu0
        %v3081 = vadd.f32 0.0, %v3080
        %v3082 = vpop.f32.mrf.mxu0
        %v3083 = vadd.f32 0.0, %v3082
        %3084 = vmatprep.mubr.bf16.mxu0 0
        %3085 = vmatmul.mubr.bf16.gmra.mxu0 %v2970
        %v3086 = vpop.f32.mrf.mxu0
        %v3087 = vadd.f32 0.0, %v3086
        %v3088 = vpop.f32.mrf.mxu0
        %v3089 = vadd.f32 0.0, %v3088
        %v3090 = vpop.f32.mrf.mxu0
        %v3091 = vadd.f32 0.0, %v3090
        %v3092 = vpop.f32.mrf.mxu0
        %v3093 = vadd.f32 0.0, %v3092
        %3094 = vmatprep.mubr.bf16.mxu0 0
        %3095 = vmatmul.mubr.bf16.gmra.mxu0 %v2973
        %v3096 = vpop.f32.mrf.mxu0
        %v3097 = vadd.f32 0.0, %v3096
        %v3098 = vpop.f32.mrf.mxu0
        %v3099 = vadd.f32 0.0, %v3098
        %v3100 = vpop.f32.mrf.mxu0
        %v3101 = vadd.f32 0.0, %v3100
        %v3102 = vpop.f32.mrf.mxu0
        %v3103 = vadd.f32 0.0, %v3102
        %3104 = vmatprep.mubr.bf16.mxu0 0
        %3105 = vmatmul.mubr.bf16.gmra.mxu0 %v2976
        %v3106 = vpop.f32.mrf.mxu0
        %v3107 = vadd.f32 0.0, %v3106
        %v3108 = vpop.f32.mrf.mxu0
        %v3109 = vadd.f32 0.0, %v3108
        %v3110 = vpop.f32.mrf.mxu0
        %v3111 = vadd.f32 0.0, %v3110
        %v3112 = vpop.f32.mrf.mxu0
        %v3113 = vadd.f32 0.0, %v3112
        %3114 = vmatprep.mubr.bf16.mxu0 0
        %3115 = vmatmul.mubr.bf16.gmra.mxu0 %v2979
        %v3116 = vpop.f32.mrf.mxu0
        %v3117 = vadd.f32 0.0, %v3116
        %v3118 = vpop.f32.mrf.mxu0
        %v3119 = vadd.f32 0.0, %v3118
        %v3120 = vpop.f32.mrf.mxu0
        %v3121 = vadd.f32 0.0, %v3120
        %v3122 = vpop.f32.mrf.mxu0
        %v3123 = vadd.f32 0.0, %v3122
        %3124 = vmatprep.mubr.bf16.mxu0 0
        %3125 = vmatmul.mubr.bf16.gmra.mxu0 %v2982
        %v3126 = vpop.f32.mrf.mxu0
        %v3127 = vadd.f32 0.0, %v3126
        %v3128 = vpop.f32.mrf.mxu0
        %v3129 = vadd.f32 0.0, %v3128
        %v3130 = vpop.f32.mrf.mxu0
        %v3131 = vadd.f32 0.0, %v3130
        %v3132 = vpop.f32.mrf.mxu0
        %v3133 = vadd.f32 0.0, %v3132
        %3134 = vmatprep.mubr.bf16.mxu0 0
        %3135 = vmatmul.mubr.bf16.gmra.mxu0 %v2985
        %v3136 = vpop.f32.mrf.mxu0
        %v3137 = vadd.f32 0.0, %v3136
        %v3138 = vpop.f32.mrf.mxu0
        %v3139 = vadd.f32 0.0, %v3138
        %v3140 = vpop.f32.mrf.mxu0
        %v3141 = vadd.f32 0.0, %v3140
        %v3142 = vpop.f32.mrf.mxu0
        %v3143 = vadd.f32 0.0, %v3142
        %3144 = vmatprep.mubr.bf16.mxu0 0
        %3145 = vmatmul.mubr.bf16.gmra.mxu0 %v2988
        %v3146 = vpop.f32.mrf.mxu0
        %v3147 = vadd.f32 0.0, %v3146
        %v3148 = vpop.f32.mrf.mxu0
        %v3149 = vadd.f32 0.0, %v3148
        %v3150 = vpop.f32.mrf.mxu0
        %v3151 = vadd.f32 0.0, %v3150
        %v3152 = vpop.f32.mrf.mxu0
        %v3153 = vadd.f32 0.0, %v3152
        %3154 = vmatprep.mubr.bf16.mxu0 0
        %3155 = vmatmul.mubr.bf16.gmra.mxu0 %v2991
        %v3156 = vpop.f32.mrf.mxu0
        %v3157 = vadd.f32 0.0, %v3156
        %v3158 = vpop.f32.mrf.mxu0
        %v3159 = vadd.f32 0.0, %v3158
        %v3160 = vpop.f32.mrf.mxu0
        %v3161 = vadd.f32 0.0, %v3160
        %v3162 = vpop.f32.mrf.mxu0
        %v3163 = vadd.f32 0.0, %v3162
        %3164 = vmatprep.mubr.bf16.mxu0 0
        %3165 = vmatmul.mubr.bf16.gmra.mxu0 %v2994
        %v3166 = vpop.f32.mrf.mxu0
        %v3167 = vadd.f32 0.0, %v3166
        %v3168 = vpop.f32.mrf.mxu0
        %v3169 = vadd.f32 0.0, %v3168
        %v3170 = vpop.f32.mrf.mxu0
        %v3171 = vadd.f32 0.0, %v3170
        %v3172 = vpop.f32.mrf.mxu0
        %v3173 = vadd.f32 0.0, %v3172
        %3174 = vmatprep.mubr.bf16.mxu0 0
        %3175 = vmatmul.mubr.bf16.gmra.mxu0 %v2997
        %v3176 = vpop.f32.mrf.mxu0
        %v3177 = vadd.f32 0.0, %v3176
        %v3178 = vpop.f32.mrf.mxu0
        %v3179 = vadd.f32 0.0, %v3178
        %v3180 = vpop.f32.mrf.mxu0
        %v3181 = vadd.f32 0.0, %v3180
        %v3182 = vpop.f32.mrf.mxu0
        %v3183 = vadd.f32 0.0, %v3182
        %3184 = vmatprep.mubr.bf16.mxu0 0
        %3185 = vmatmul.mubr.bf16.gmra.mxu0 %v3000
        %v3186 = vpop.f32.mrf.mxu0
        %v3187 = vadd.f32 0.0, %v3186
        %v3188 = vpop.f32.mrf.mxu0
        %v3189 = vadd.f32 0.0, %v3188
        %v3190 = vpop.f32.mrf.mxu0
        %v3191 = vadd.f32 0.0, %v3190
        %v3192 = vpop.f32.mrf.mxu0
        %v3193 = vadd.f32 0.0, %v3192
        %3194 = vdwg.mxu0
        %v3195 = vmax.f32 %v3037, %v3039
        %3196 = vmax.xlane.f32.xlu0 %v3195
        %v3197 = vpop.xlane.xlu0 %3196
        %v3198 = vmax.f32 %v3041, %v3043
        %3199 = vmax.xlane.f32.xlu0 %v3198
        %v3200 = vpop.xlane.xlu0 %3199
        %v3201 = vmax.f32 %v3047, %v3049
        %3202 = vmax.xlane.f32.xlu0 %v3201
        %v3203 = vpop.xlane.xlu0 %3202
        %v3204 = vmax.f32 %v3051, %v3053
        %3205 = vmax.xlane.f32.xlu0 %v3204
        %v3206 = vpop.xlane.xlu0 %3205
        %v3207 = vmax.f32 %v3057, %v3059
        %3208 = vmax.xlane.f32.xlu0 %v3207
        %v3209 = vpop.xlane.xlu0 %3208
        %v3210 = vmax.f32 %v3061, %v3063
        %3211 = vmax.xlane.f32.xlu0 %v3210
        %v3212 = vpop.xlane.xlu0 %3211
        %v3213 = vmax.f32 %v3067, %v3069
        %3214 = vmax.xlane.f32.xlu0 %v3213
        %v3215 = vpop.xlane.xlu0 %3214
        %v3216 = vmax.f32 %v3071, %v3073
        %3217 = vmax.xlane.f32.xlu0 %v3216
        %v3218 = vpop.xlane.xlu0 %3217
        %v3219 = vmax.f32 %v3077, %v3079
        %3220 = vmax.xlane.f32.xlu0 %v3219
        %v3221 = vpop.xlane.xlu0 %3220
        %v3222 = vmax.f32 %v3081, %v3083
        %3223 = vmax.xlane.f32.xlu0 %v3222
        %v3224 = vpop.xlane.xlu0 %3223
        %v3225 = vmax.f32 %v3087, %v3089
        %3226 = vmax.xlane.f32.xlu0 %v3225
        %v3227 = vpop.xlane.xlu0 %3226
        %v3228 = vmax.f32 %v3091, %v3093
        %3229 = vmax.xlane.f32.xlu0 %v3228
        %v3230 = vpop.xlane.xlu0 %3229
        %v3231 = vmax.f32 %v3097, %v3099
        %3232 = vmax.xlane.f32.xlu0 %v3231
        %v3233 = vpop.xlane.xlu0 %3232
        %v3234 = vmax.f32 %v3101, %v3103
        %3235 = vmax.xlane.f32.xlu0 %v3234
        %v3236 = vpop.xlane.xlu0 %3235
        %v3237 = vmax.f32 %v3107, %v3109
        %3238 = vmax.xlane.f32.xlu0 %v3237
        %v3239 = vpop.xlane.xlu0 %3238
        %v3240 = vmax.f32 %v3111, %v3113
        %3241 = vmax.xlane.f32.xlu0 %v3240
        %v3242 = vpop.xlane.xlu0 %3241
        %v3243 = vmax.f32 %v3117, %v3119
        %3244 = vmax.xlane.f32.xlu0 %v3243
        %v3245 = vpop.xlane.xlu0 %3244
        %v3246 = vmax.f32 %v3121, %v3123
        %3247 = vmax.xlane.f32.xlu0 %v3246
        %v3248 = vpop.xlane.xlu0 %3247
        %v3249 = vmax.f32 %v3127, %v3129
        %3250 = vmax.xlane.f32.xlu0 %v3249
        %v3251 = vpop.xlane.xlu0 %3250
        %v3252 = vmax.f32 %v3131, %v3133
        %3253 = vmax.xlane.f32.xlu0 %v3252
        %v3254 = vpop.xlane.xlu0 %3253
        %v3255 = vmax.f32 %v3137, %v3139
        %3256 = vmax.xlane.f32.xlu0 %v3255
        %v3257 = vpop.xlane.xlu0 %3256
        %v3258 = vmax.f32 %v3141, %v3143
        %3259 = vmax.xlane.f32.xlu0 %v3258
        %v3260 = vpop.xlane.xlu0 %3259
        %v3261 = vmax.f32 %v3147, %v3149
        %3262 = vmax.xlane.f32.xlu0 %v3261
        %v3263 = vpop.xlane.xlu0 %3262
        %v3264 = vmax.f32 %v3151, %v3153
        %3265 = vmax.xlane.f32.xlu0 %v3264
        %v3266 = vpop.xlane.xlu0 %3265
        %v3267 = vmax.f32 %v3157, %v3159
        %3268 = vmax.xlane.f32.xlu0 %v3267
        %v3269 = vpop.xlane.xlu0 %3268
        %v3270 = vmax.f32 %v3161, %v3163
        %3271 = vmax.xlane.f32.xlu0 %v3270
        %v3272 = vpop.xlane.xlu0 %3271
        %v3273 = vmax.f32 %v3167, %v3169
        %3274 = vmax.xlane.f32.xlu0 %v3273
        %v3275 = vpop.xlane.xlu0 %3274
        %v3276 = vmax.f32 %v3171, %v3173
        %3277 = vmax.xlane.f32.xlu0 %v3276
        %v3278 = vpop.xlane.xlu0 %3277
        %v3279 = vmax.f32 %v3177, %v3179
        %3280 = vmax.xlane.f32.xlu0 %v3279
        %v3281 = vpop.xlane.xlu0 %3280
        %v3282 = vmax.f32 %v3181, %v3183
        %3283 = vmax.xlane.f32.xlu0 %v3282
        %v3284 = vpop.xlane.xlu0 %3283
        %v3285 = vmax.f32 %v3187, %v3189
        %3286 = vmax.xlane.f32.xlu0 %v3285
        %v3287 = vpop.xlane.xlu0 %3286
        %v3288 = vmax.f32 %v3191, %v3193
        %3289 = vmax.xlane.f32.xlu0 %v3288
        %v3290 = vpop.xlane.xlu0 %3289
        %v3291 = vsub.f32 %v3037, %v3197
        %v3292 = vsub.f32 %v3039, %v3197
        %v3293 = vsub.f32 %v3041, %v3200
        %v3294 = vsub.f32 %v3043, %v3200
        %v3295 = vsub.f32 %v3047, %v3203
        %v3296 = vsub.f32 %v3049, %v3203
        %v3297 = vsub.f32 %v3051, %v3206
        %v3298 = vsub.f32 %v3053, %v3206
        %v3299 = vsub.f32 %v3057, %v3209
        %v3300 = vsub.f32 %v3059, %v3209
        %v3301 = vsub.f32 %v3061, %v3212
        %v3302 = vsub.f32 %v3063, %v3212
        %v3303 = vsub.f32 %v3067, %v3215
        %v3304 = vsub.f32 %v3069, %v3215
        %v3305 = vsub.f32 %v3071, %v3218
        %v3306 = vsub.f32 %v3073, %v3218
        %v3307 = vsub.f32 %v3077, %v3221
        %v3308 = vsub.f32 %v3079, %v3221
        %v3309 = vsub.f32 %v3081, %v3224
        %v3310 = vsub.f32 %v3083, %v3224
        %v3311 = vsub.f32 %v3087, %v3227
        %v3312 = vsub.f32 %v3089, %v3227
        %v3313 = vsub.f32 %v3091, %v3230
        %v3314 = vsub.f32 %v3093, %v3230
        %v3315 = vsub.f32 %v3097, %v3233
        %v3316 = vsub.f32 %v3099, %v3233
        %v3317 = vsub.f32 %v3101, %v3236
        %v3318 = vsub.f32 %v3103, %v3236
        %v3319 = vsub.f32 %v3107, %v3239
        %v3320 = vsub.f32 %v3109, %v3239
        %v3321 = vsub.f32 %v3111, %v3242
        %v3322 = vsub.f32 %v3113, %v3242
        %v3323 = vsub.f32 %v3117, %v3245
        %v3324 = vsub.f32 %v3119, %v3245
        %v3325 = vsub.f32 %v3121, %v3248
        %v3326 = vsub.f32 %v3123, %v3248
        %v3327 = vsub.f32 %v3127, %v3251
        %v3328 = vsub.f32 %v3129, %v3251
        %v3329 = vsub.f32 %v3131, %v3254
        %v3330 = vsub.f32 %v3133, %v3254
        %v3331 = vsub.f32 %v3137, %v3257
        %v3332 = vsub.f32 %v3139, %v3257
        %v3333 = vsub.f32 %v3141, %v3260
        %v3334 = vsub.f32 %v3143, %v3260
        %v3335 = vsub.f32 %v3147, %v3263
        %v3336 = vsub.f32 %v3149, %v3263
        %v3337 = vsub.f32 %v3151, %v3266
        %v3338 = vsub.f32 %v3153, %v3266
        %v3339 = vsub.f32 %v3157, %v3269
        %v3340 = vsub.f32 %v3159, %v3269
        %v3341 = vsub.f32 %v3161, %v3272
        %v3342 = vsub.f32 %v3163, %v3272
        %v3343 = vsub.f32 %v3167, %v3275
        %v3344 = vsub.f32 %v3169, %v3275
        %v3345 = vsub.f32 %v3171, %v3278
        %v3346 = vsub.f32 %v3173, %v3278
        %v3347 = vsub.f32 %v3177, %v3281
        %v3348 = vsub.f32 %v3179, %v3281
        %v3349 = vsub.f32 %v3181, %v3284
        %v3350 = vsub.f32 %v3183, %v3284
        %v3351 = vsub.f32 %v3187, %v3287
        %v3352 = vsub.f32 %v3189, %v3287
        %v3353 = vsub.f32 %v3191, %v3290
        %v3354 = vsub.f32 %v3193, %v3290
        %v3355 = vmul.f32 %v3291, 1.442695
        %v3356 = vpow.pop %v3355
        %v3357 = vmul.f32 %v3292, 1.442695
        %v3358 = vpow.pop %v3357
        %v3359 = vmul.f32 %v3293, 1.442695
        %v3360 = vpow.pop %v3359
        %v3361 = vmul.f32 %v3294, 1.442695
        %v3362 = vpow.pop %v3361
        %v3363 = vmul.f32 %v3295, 1.442695
        %v3364 = vpow.pop %v3363
        %v3365 = vmul.f32 %v3296, 1.442695
        %v3366 = vpow.pop %v3365
        %v3367 = vmul.f32 %v3297, 1.442695
        %v3368 = vpow.pop %v3367
        %v3369 = vmul.f32 %v3298, 1.442695
        %v3370 = vpow.pop %v3369
        %v3371 = vmul.f32 %v3299, 1.442695
        %v3372 = vpow.pop %v3371
        %v3373 = vmul.f32 %v3300, 1.442695
        %v3374 = vpow.pop %v3373
        %v3375 = vmul.f32 %v3301, 1.442695
        %v3376 = vpow.pop %v3375
        %v3377 = vmul.f32 %v3302, 1.442695
        %v3378 = vpow.pop %v3377
        %v3379 = vmul.f32 %v3303, 1.442695
        %v3380 = vpow.pop %v3379
        %v3381 = vmul.f32 %v3304, 1.442695
        %v3382 = vpow.pop %v3381
        %v3383 = vmul.f32 %v3305, 1.442695
        %v3384 = vpow.pop %v3383
        %v3385 = vmul.f32 %v3306, 1.442695
        %v3386 = vpow.pop %v3385
        %v3387 = vmul.f32 %v3307, 1.442695
        %v3388 = vpow.pop %v3387
        %v3389 = vmul.f32 %v3308, 1.442695
        %v3390 = vpow.pop %v3389
        %v3391 = vmul.f32 %v3309, 1.442695
        %v3392 = vpow.pop %v3391
        %v3393 = vmul.f32 %v3310, 1.442695
        %v3394 = vpow.pop %v3393
        %v3395 = vmul.f32 %v3311, 1.442695
        %v3396 = vpow.pop %v3395
        %v3397 = vmul.f32 %v3312, 1.442695
        %v3398 = vpow.pop %v3397
        %v3399 = vmul.f32 %v3313, 1.442695
        %v3400 = vpow.pop %v3399
        %v3401 = vmul.f32 %v3314, 1.442695
        %v3402 = vpow.pop %v3401
        %v3403 = vmul.f32 %v3315, 1.442695
        %v3404 = vpow.pop %v3403
        %v3405 = vmul.f32 %v3316, 1.442695
        %v3406 = vpow.pop %v3405
        %v3407 = vmul.f32 %v3317, 1.442695
        %v3408 = vpow.pop %v3407
        %v3409 = vmul.f32 %v3318, 1.442695
        %v3410 = vpow.pop %v3409
        %v3411 = vmul.f32 %v3319, 1.442695
        %v3412 = vpow.pop %v3411
        %v3413 = vmul.f32 %v3320, 1.442695
        %v3414 = vpow.pop %v3413
        %v3415 = vmul.f32 %v3321, 1.442695
        %v3416 = vpow.pop %v3415
        %v3417 = vmul.f32 %v3322, 1.442695
        %v3418 = vpow.pop %v3417
        %v3419 = vmul.f32 %v3323, 1.442695
        %v3420 = vpow.pop %v3419
        %v3421 = vmul.f32 %v3324, 1.442695
        %v3422 = vpow.pop %v3421
        %v3423 = vmul.f32 %v3325, 1.442695
        %v3424 = vpow.pop %v3423
        %v3425 = vmul.f32 %v3326, 1.442695
        %v3426 = vpow.pop %v3425
        %v3427 = vmul.f32 %v3327, 1.442695
        %v3428 = vpow.pop %v3427
        %v3429 = vmul.f32 %v3328, 1.442695
        %v3430 = vpow.pop %v3429
        %v3431 = vmul.f32 %v3329, 1.442695
        %v3432 = vpow.pop %v3431
        %v3433 = vmul.f32 %v3330, 1.442695
        %v3434 = vpow.pop %v3433
        %v3435 = vmul.f32 %v3331, 1.442695
        %v3436 = vpow.pop %v3435
        %v3437 = vmul.f32 %v3332, 1.442695
        %v3438 = vpow.pop %v3437
        %v3439 = vmul.f32 %v3333, 1.442695
        %v3440 = vpow.pop %v3439
        %v3441 = vmul.f32 %v3334, 1.442695
        %v3442 = vpow.pop %v3441
        %v3443 = vmul.f32 %v3335, 1.442695
        %v3444 = vpow.pop %v3443
        %v3445 = vmul.f32 %v3336, 1.442695
        %v3446 = vpow.pop %v3445
        %v3447 = vmul.f32 %v3337, 1.442695
        %v3448 = vpow.pop %v3447
        %v3449 = vmul.f32 %v3338, 1.442695
        %v3450 = vpow.pop %v3449
        %v3451 = vmul.f32 %v3339, 1.442695
        %v3452 = vpow.pop %v3451
        %v3453 = vmul.f32 %v3340, 1.442695
        %v3454 = vpow.pop %v3453
        %v3455 = vmul.f32 %v3341, 1.442695
        %v3456 = vpow.pop %v3455
        %v3457 = vmul.f32 %v3342, 1.442695
        %v3458 = vpow.pop %v3457
        %v3459 = vmul.f32 %v3343, 1.442695
        %v3460 = vpow.pop %v3459
        %v3461 = vmul.f32 %v3344, 1.442695
        %v3462 = vpow.pop %v3461
        %v3463 = vmul.f32 %v3345, 1.442695
        %v3464 = vpow.pop %v3463
        %v3465 = vmul.f32 %v3346, 1.442695
        %v3466 = vpow.pop %v3465
        %v3467 = vmul.f32 %v3347, 1.442695
        %v3468 = vpow.pop %v3467
        %v3469 = vmul.f32 %v3348, 1.442695
        %v3470 = vpow.pop %v3469
        %v3471 = vmul.f32 %v3349, 1.442695
        %v3472 = vpow.pop %v3471
        %v3473 = vmul.f32 %v3350, 1.442695
        %v3474 = vpow.pop %v3473
        %v3475 = vmul.f32 %v3351, 1.442695
        %v3476 = vpow.pop %v3475
        %v3477 = vmul.f32 %v3352, 1.442695
        %v3478 = vpow.pop %v3477
        %v3479 = vmul.f32 %v3353, 1.442695
        %v3480 = vpow.pop %v3479
        %v3481 = vmul.f32 %v3354, 1.442695
        %v3482 = vpow.pop %v3481
        %v3483 = vadd.f32 %v3356, %v3358
        %3484 = vadd.xlane.f32.xlu0 %v3483
        %v3485 = vpop.xlane.xlu0 %3484
        %v3486 = vadd.f32 %v3360, %v3362
        %3487 = vadd.xlane.f32.xlu0 %v3486
        %v3488 = vpop.xlane.xlu0 %3487
        %v3489 = vadd.f32 %v3364, %v3366
        %3490 = vadd.xlane.f32.xlu0 %v3489
        %v3491 = vpop.xlane.xlu0 %3490
        %v3492 = vadd.f32 %v3368, %v3370
        %3493 = vadd.xlane.f32.xlu0 %v3492
        %v3494 = vpop.xlane.xlu0 %3493
        %v3495 = vadd.f32 %v3372, %v3374
        %3496 = vadd.xlane.f32.xlu0 %v3495
        %v3497 = vpop.xlane.xlu0 %3496
        %v3498 = vadd.f32 %v3376, %v3378
        %3499 = vadd.xlane.f32.xlu0 %v3498
        %v3500 = vpop.xlane.xlu0 %3499
        %v3501 = vadd.f32 %v3380, %v3382
        %3502 = vadd.xlane.f32.xlu0 %v3501
        %v3503 = vpop.xlane.xlu0 %3502
        %v3504 = vadd.f32 %v3384, %v3386
        %3505 = vadd.xlane.f32.xlu0 %v3504
        %v3506 = vpop.xlane.xlu0 %3505
        %v3507 = vadd.f32 %v3388, %v3390
        %3508 = vadd.xlane.f32.xlu0 %v3507
        %v3509 = vpop.xlane.xlu0 %3508
        %v3510 = vadd.f32 %v3392, %v3394
        %3511 = vadd.xlane.f32.xlu0 %v3510
        %v3512 = vpop.xlane.xlu0 %3511
        %v3513 = vadd.f32 %v3396, %v3398
        %3514 = vadd.xlane.f32.xlu0 %v3513
        %v3515 = vpop.xlane.xlu0 %3514
        %v3516 = vadd.f32 %v3400, %v3402
        %3517 = vadd.xlane.f32.xlu0 %v3516
        %v3518 = vpop.xlane.xlu0 %3517
        %v3519 = vadd.f32 %v3404, %v3406
        %3520 = vadd.xlane.f32.xlu0 %v3519
        %v3521 = vpop.xlane.xlu0 %3520
        %v3522 = vadd.f32 %v3408, %v3410
        %3523 = vadd.xlane.f32.xlu0 %v3522
        %v3524 = vpop.xlane.xlu0 %3523
        %v3525 = vadd.f32 %v3412, %v3414
        %3526 = vadd.xlane.f32.xlu0 %v3525
        %v3527 = vpop.xlane.xlu0 %3526
        %v3528 = vadd.f32 %v3416, %v3418
        %3529 = vadd.xlane.f32.xlu0 %v3528
        %v3530 = vpop.xlane.xlu0 %3529
        %v3531 = vadd.f32 %v3420, %v3422
        %3532 = vadd.xlane.f32.xlu0 %v3531
        %v3533 = vpop.xlane.xlu0 %3532
        %v3534 = vadd.f32 %v3424, %v3426
        %3535 = vadd.xlane.f32.xlu0 %v3534
        %v3536 = vpop.xlane.xlu0 %3535
        %v3537 = vadd.f32 %v3428, %v3430
        %3538 = vadd.xlane.f32.xlu0 %v3537
        %v3539 = vpop.xlane.xlu0 %3538
        %v3540 = vadd.f32 %v3432, %v3434
        %3541 = vadd.xlane.f32.xlu0 %v3540
        %v3542 = vpop.xlane.xlu0 %3541
        %v3543 = vadd.f32 %v3436, %v3438
        %3544 = vadd.xlane.f32.xlu0 %v3543
        %v3545 = vpop.xlane.xlu0 %3544
        %v3546 = vadd.f32 %v3440, %v3442
        %3547 = vadd.xlane.f32.xlu0 %v3546
        %v3548 = vpop.xlane.xlu0 %3547
        %v3549 = vadd.f32 %v3444, %v3446
        %3550 = vadd.xlane.f32.xlu0 %v3549
        %v3551 = vpop.xlane.xlu0 %3550
        %v3552 = vadd.f32 %v3448, %v3450
        %3553 = vadd.xlane.f32.xlu0 %v3552
        %v3554 = vpop.xlane.xlu0 %3553
        %v3555 = vadd.f32 %v3452, %v3454
        %3556 = vadd.xlane.f32.xlu0 %v3555
        %v3557 = vpop.xlane.xlu0 %3556
        %v3558 = vadd.f32 %v3456, %v3458
        %3559 = vadd.xlane.f32.xlu0 %v3558
        %v3560 = vpop.xlane.xlu0 %3559
        %v3561 = vadd.f32 %v3460, %v3462
        %3562 = vadd.xlane.f32.xlu0 %v3561
        %v3563 = vpop.xlane.xlu0 %3562
        %v3564 = vadd.f32 %v3464, %v3466
        %3565 = vadd.xlane.f32.xlu0 %v3564
        %v3566 = vpop.xlane.xlu0 %3565
        %v3567 = vadd.f32 %v3468, %v3470
        %3568 = vadd.xlane.f32.xlu0 %v3567
        %v3569 = vpop.xlane.xlu0 %3568
        %v3570 = vadd.f32 %v3472, %v3474
        %3571 = vadd.xlane.f32.xlu0 %v3570
        %v3572 = vpop.xlane.xlu0 %3571
        %v3573 = vadd.f32 %v3476, %v3478
        %3574 = vadd.xlane.f32.xlu0 %v3573
        %v3575 = vpop.xlane.xlu0 %3574
        %v3576 = vadd.f32 %v3480, %v3482
        %3577 = vadd.xlane.f32.xlu0 %v3576
        %v3578 = vpop.xlane.xlu0 %3577
        %v3579 = vrcp.pop %v3485
        %v3580 = vrcp.pop %v3488
        %v3581 = vrcp.pop %v3491
        %v3582 = vrcp.pop %v3494
        %v3583 = vrcp.pop %v3497
        %v3584 = vrcp.pop %v3500
        %v3585 = vrcp.pop %v3503
        %v3586 = vrcp.pop %v3506
        %v3587 = vrcp.pop %v3509
        %v3588 = vrcp.pop %v3512
        %v3589 = vrcp.pop %v3515
        %v3590 = vrcp.pop %v3518
        %v3591 = vrcp.pop %v3521
        %v3592 = vrcp.pop %v3524
        %v3593 = vrcp.pop %v3527
        %v3594 = vrcp.pop %v3530
        %v3595 = vrcp.pop %v3533
        %v3596 = vrcp.pop %v3536
        %v3597 = vrcp.pop %v3539
        %v3598 = vrcp.pop %v3542
        %v3599 = vrcp.pop %v3545
        %v3600 = vrcp.pop %v3548
        %v3601 = vrcp.pop %v3551
        %v3602 = vrcp.pop %v3554
        %v3603 = vrcp.pop %v3557
        %v3604 = vrcp.pop %v3560
        %v3605 = vrcp.pop %v3563
        %v3606 = vrcp.pop %v3566
        %v3607 = vrcp.pop %v3569
        %v3608 = vrcp.pop %v3572
        %v3609 = vrcp.pop %v3575
        %v3610 = vrcp.pop %v3578
        %v3611 = vmul.f32 %v3356, %v3579
        %v3612 = vmul.f32 %v3358, %v3579
        %v3613 = vmul.f32 %v3360, %v3580
        %v3614 = vmul.f32 %v3362, %v3580
        %v3615 = vmul.f32 %v3364, %v3581
        %v3616 = vmul.f32 %v3366, %v3581
        %v3617 = vmul.f32 %v3368, %v3582
        %v3618 = vmul.f32 %v3370, %v3582
        %v3619 = vmul.f32 %v3372, %v3583
        %v3620 = vmul.f32 %v3374, %v3583
        %v3621 = vmul.f32 %v3376, %v3584
        %v3622 = vmul.f32 %v3378, %v3584
        %v3623 = vmul.f32 %v3380, %v3585
        %v3624 = vmul.f32 %v3382, %v3585
        %v3625 = vmul.f32 %v3384, %v3586
        %v3626 = vmul.f32 %v3386, %v3586
        %v3627 = vmul.f32 %v3388, %v3587
        %v3628 = vmul.f32 %v3390, %v3587
        %v3629 = vmul.f32 %v3392, %v3588
        %v3630 = vmul.f32 %v3394, %v3588
        %v3631 = vmul.f32 %v3396, %v3589
        %v3632 = vmul.f32 %v3398, %v3589
        %v3633 = vmul.f32 %v3400, %v3590
        %v3634 = vmul.f32 %v3402, %v3590
        %v3635 = vmul.f32 %v3404, %v3591
        %v3636 = vmul.f32 %v3406, %v3591
        %v3637 = vmul.f32 %v3408, %v3592
        %v3638 = vmul.f32 %v3410, %v3592
        %v3639 = vmul.f32 %v3412, %v3593
        %v3640 = vmul.f32 %v3414, %v3593
        %v3641 = vmul.f32 %v3416, %v3594
        %v3642 = vmul.f32 %v3418, %v3594
        %v3643 = vmul.f32 %v3420, %v3595
        %v3644 = vmul.f32 %v3422, %v3595
        %v3645 = vmul.f32 %v3424, %v3596
        %v3646 = vmul.f32 %v3426, %v3596
        %v3647 = vmul.f32 %v3428, %v3597
        %v3648 = vmul.f32 %v3430, %v3597
        %v3649 = vmul.f32 %v3432, %v3598
        %v3650 = vmul.f32 %v3434, %v3598
        %v3651 = vmul.f32 %v3436, %v3599
        %v3652 = vmul.f32 %v3438, %v3599
        %v3653 = vmul.f32 %v3440, %v3600
        %v3654 = vmul.f32 %v3442, %v3600
        %v3655 = vmul.f32 %v3444, %v3601
        %v3656 = vmul.f32 %v3446, %v3601
        %v3657 = vmul.f32 %v3448, %v3602
        %v3658 = vmul.f32 %v3450, %v3602
        %v3659 = vmul.f32 %v3452, %v3603
        %v3660 = vmul.f32 %v3454, %v3603
        %v3661 = vmul.f32 %v3456, %v3604
        %v3662 = vmul.f32 %v3458, %v3604
        %v3663 = vmul.f32 %v3460, %v3605
        %v3664 = vmul.f32 %v3462, %v3605
        %v3665 = vmul.f32 %v3464, %v3606
        %v3666 = vmul.f32 %v3466, %v3606
        %v3667 = vmul.f32 %v3468, %v3607
        %v3668 = vmul.f32 %v3470, %v3607
        %v3669 = vmul.f32 %v3472, %v3608
        %v3670 = vmul.f32 %v3474, %v3608
        %v3671 = vmul.f32 %v3476, %v3609
        %v3672 = vmul.f32 %v3478, %v3609
        %v3673 = vmul.f32 %v3480, %v3610
        %v3674 = vmul.f32 %v3482, %v3610
        %v3675 = vpack.c.bf16 %v3613, %v3611
        %v3676 = vpack.c.bf16 %v3614, %v3612
        %v3677 = vpack.c.bf16 %v3617, %v3615
        %v3678 = vpack.c.bf16 %v3618, %v3616
        %v3679 = vpack.c.bf16 %v3621, %v3619
        %v3680 = vpack.c.bf16 %v3622, %v3620
        %v3681 = vpack.c.bf16 %v3625, %v3623
        %v3682 = vpack.c.bf16 %v3626, %v3624
        %v3683 = vpack.c.bf16 %v3629, %v3627
        %v3684 = vpack.c.bf16 %v3630, %v3628
        %v3685 = vpack.c.bf16 %v3633, %v3631
        %v3686 = vpack.c.bf16 %v3634, %v3632
        %v3687 = vpack.c.bf16 %v3637, %v3635
        %v3688 = vpack.c.bf16 %v3638, %v3636
        %v3689 = vpack.c.bf16 %v3641, %v3639
        %v3690 = vpack.c.bf16 %v3642, %v3640
        %v3691 = vpack.c.bf16 %v3645, %v3643
        %v3692 = vpack.c.bf16 %v3646, %v3644
        %v3693 = vpack.c.bf16 %v3649, %v3647
        %v3694 = vpack.c.bf16 %v3650, %v3648
        %v3695 = vpack.c.bf16 %v3653, %v3651
        %v3696 = vpack.c.bf16 %v3654, %v3652
        %v3697 = vpack.c.bf16 %v3657, %v3655
        %v3698 = vpack.c.bf16 %v3658, %v3656
        %v3699 = vpack.c.bf16 %v3661, %v3659
        %v3700 = vpack.c.bf16 %v3662, %v3660
        %v3701 = vpack.c.bf16 %v3665, %v3663
        %v3702 = vpack.c.bf16 %v3666, %v3664
        %v3703 = vpack.c.bf16 %v3669, %v3667
        %v3704 = vpack.c.bf16 %v3670, %v3668
        %v3705 = vpack.c.bf16 %v3673, %v3671
        %v3706 = vpack.c.bf16 %v3674, %v3672
        %3723 = vrot.lane.b32.xlu0 %v2938, 120
        %v3724 = vpop.permute.xlu0 %3723
        %3725 = vrot.lane.b32.xlu0 %v2939, 120
        %v3726 = vpop.permute.xlu0 %3725
        %3727 = vrot.lane.b32.xlu0 %v2940, 120
        %v3728 = vpop.permute.xlu0 %3727
        %3729 = vrot.lane.b32.xlu0 %v2941, 120
        %v3730 = vpop.permute.xlu0 %3729
        %3731 = vrot.lane.b32.xlu0 %v2942, 120
        %v3732 = vpop.permute.xlu0 %3731
        %3733 = vrot.lane.b32.xlu0 %v2943, 120
        %v3734 = vpop.permute.xlu0 %3733
        %3735 = vrot.lane.b32.xlu0 %v2944, 120
        %v3736 = vpop.permute.xlu0 %3735
        %3737 = vrot.lane.b32.xlu0 %v2945, 120
        %v3738 = vpop.permute.xlu0 %3737
        %3739 = vrot.lane.b32.xlu0 %v2946, 120
        %v3740 = vpop.permute.xlu0 %3739
        %3741 = vrot.lane.b32.xlu0 %v2947, 120
        %v3742 = vpop.permute.xlu0 %3741
        %3743 = vrot.lane.b32.xlu0 %v2948, 120
        %v3744 = vpop.permute.xlu0 %3743
        %3745 = vrot.lane.b32.xlu0 %v2949, 120
        %v3746 = vpop.permute.xlu0 %3745
        %3747 = vrot.lane.b32.xlu0 %v2950, 120
        %v3748 = vpop.permute.xlu0 %3747
        %3749 = vrot.lane.b32.xlu0 %v2951, 120
        %v3750 = vpop.permute.xlu0 %3749
        %3751 = vrot.lane.b32.xlu0 %v2952, 120
        %v3752 = vpop.permute.xlu0 %3751
        %3753 = vrot.lane.b32.xlu0 %v2953, 120
        %v3754 = vpop.permute.xlu0 %3753
        %3771 = vmatprep.subr.bf16.mxu0 0
        %3772 = vmatpush1.bf16.msra.mxu0 %v3738
        %3773 = vmatprep.subr.bf16.mxu0 0
        %3774 = vmatpush1.bf16.msra.mxu0 %v3736
        %3775 = vmatprep.subr.bf16.mxu0 0
        %3776 = vmatpush1.bf16.msra.mxu0 %v3734
        %3777 = vmatprep.subr.bf16.mxu0 0
        %3778 = vmatpush1.bf16.msra.mxu0 %v3732
        %3779 = vmatprep.subr.bf16.mxu0 0
        %3780 = vmatpush1.bf16.msra.mxu0 %v3730
        %3781 = vmatprep.subr.bf16.mxu0 0
        %3782 = vmatpush1.bf16.msra.mxu0 %v3728
        %3783 = vmatprep.subr.bf16.mxu0 0
        %3784 = vmatpush1.bf16.msra.mxu0 %v3726
        %3785 = vmatprep.subr.bf16.mxu0 0
        %3786 = vmatpush1.bf16.msra.mxu0 %v3724
        %3787 = vmatprep.subr.bf16.mxu0 0
        %3788 = vmatpush2.bf16.msra.mxu0 %v3754
        %3789 = vmatprep.subr.bf16.mxu0 0
        %3790 = vmatpush2.bf16.msra.mxu0 %v3752
        %3791 = vmatprep.subr.bf16.mxu0 0
        %3792 = vmatpush2.bf16.msra.mxu0 %v3750
        %3793 = vmatprep.subr.bf16.mxu0 0
        %3794 = vmatpush2.bf16.msra.mxu0 %v3748
        %3795 = vmatprep.subr.bf16.mxu0 0
        %3796 = vmatpush2.bf16.msra.mxu0 %v3746
        %3797 = vmatprep.subr.bf16.mxu0 0
        %3798 = vmatpush2.bf16.msra.mxu0 %v3744
        %3799 = vmatprep.subr.bf16.mxu0 0
        %3800 = vmatpush2.bf16.msra.mxu0 %v3742
        %3801 = vmatprep.subr.bf16.mxu0 0
        %3802 = vmatpush2.bf16.msra.mxu0 %v3740
        %3803 = vmatprep.mubr.bf16.mxu0 %v3676
        %3804 = vmatmul.mubr.bf16.gmra.mxu0 %v3675
        %v3805 = vpop.f32.mrf.mxu0
        %v3806 = vadd.f32 0.0, %v3805
        %v3807 = vpop.f32.mrf.mxu0
        %v3808 = vpop.f32.mrf.mxu0
        %v3809 = vadd.f32 0.0, %v3808
        %v3810 = vpop.f32.mrf.mxu0
        %3811 = vmatprep.mubr.bf16.mxu0 %v3678
        %3812 = vmatmul.mubr.bf16.gmra.mxu0 %v3677
        %v3813 = vpop.f32.mrf.mxu0
        %v3814 = vadd.f32 0.0, %v3813
        %v3815 = vpop.f32.mrf.mxu0
        %v3816 = vpop.f32.mrf.mxu0
        %v3817 = vadd.f32 0.0, %v3816
        %v3818 = vpop.f32.mrf.mxu0
        %3819 = vmatprep.mubr.bf16.mxu0 %v3680
        %3820 = vmatmul.mubr.bf16.gmra.mxu0 %v3679
        %v3821 = vpop.f32.mrf.mxu0
        %v3822 = vadd.f32 0.0, %v3821
        %v3823 = vpop.f32.mrf.mxu0
        %v3824 = vpop.f32.mrf.mxu0
        %v3825 = vadd.f32 0.0, %v3824
        %v3826 = vpop.f32.mrf.mxu0
        %3827 = vmatprep.mubr.bf16.mxu0 %v3682
        %3828 = vmatmul.mubr.bf16.gmra.mxu0 %v3681
        %v3829 = vpop.f32.mrf.mxu0
        %v3830 = vadd.f32 0.0, %v3829
        %v3831 = vpop.f32.mrf.mxu0
        %v3832 = vpop.f32.mrf.mxu0
        %v3833 = vadd.f32 0.0, %v3832
        %v3834 = vpop.f32.mrf.mxu0
        %3835 = vmatprep.mubr.bf16.mxu0 %v3684
        %3836 = vmatmul.mubr.bf16.gmra.mxu0 %v3683
        %v3837 = vpop.f32.mrf.mxu0
        %v3838 = vadd.f32 0.0, %v3837
        %v3839 = vpop.f32.mrf.mxu0
        %v3840 = vpop.f32.mrf.mxu0
        %v3841 = vadd.f32 0.0, %v3840
        %v3842 = vpop.f32.mrf.mxu0
        %3843 = vmatprep.mubr.bf16.mxu0 %v3686
        %3844 = vmatmul.mubr.bf16.gmra.mxu0 %v3685
        %v3845 = vpop.f32.mrf.mxu0
        %v3846 = vadd.f32 0.0, %v3845
        %v3847 = vpop.f32.mrf.mxu0
        %v3848 = vpop.f32.mrf.mxu0
        %v3849 = vadd.f32 0.0, %v3848
        %v3850 = vpop.f32.mrf.mxu0
        %3851 = vmatprep.mubr.bf16.mxu0 %v3688
        %3852 = vmatmul.mubr.bf16.gmra.mxu0 %v3687
        %v3853 = vpop.f32.mrf.mxu0
        %v3854 = vadd.f32 0.0, %v3853
        %v3855 = vpop.f32.mrf.mxu0
        %v3856 = vpop.f32.mrf.mxu0
        %v3857 = vadd.f32 0.0, %v3856
        %v3858 = vpop.f32.mrf.mxu0
        %3859 = vmatprep.mubr.bf16.mxu0 %v3690
        %3860 = vmatmul.mubr.bf16.gmra.mxu0 %v3689
        %v3861 = vpop.f32.mrf.mxu0
        %v3862 = vadd.f32 0.0, %v3861
        %v3863 = vpop.f32.mrf.mxu0
        %v3864 = vpop.f32.mrf.mxu0
        %v3865 = vadd.f32 0.0, %v3864
        %v3866 = vpop.f32.mrf.mxu0
        %3867 = vmatprep.mubr.bf16.mxu0 %v3692
        %3868 = vmatmul.mubr.bf16.gmra.mxu0 %v3691
        %v3869 = vpop.f32.mrf.mxu0
        %v3870 = vadd.f32 0.0, %v3869
        %v3871 = vpop.f32.mrf.mxu0
        %v3872 = vpop.f32.mrf.mxu0
        %v3873 = vadd.f32 0.0, %v3872
        %v3874 = vpop.f32.mrf.mxu0
        %3875 = vmatprep.mubr.bf16.mxu0 %v3694
        %3876 = vmatmul.mubr.bf16.gmra.mxu0 %v3693
        %v3877 = vpop.f32.mrf.mxu0
        %v3878 = vadd.f32 0.0, %v3877
        %v3879 = vpop.f32.mrf.mxu0
        %v3880 = vpop.f32.mrf.mxu0
        %v3881 = vadd.f32 0.0, %v3880
        %v3882 = vpop.f32.mrf.mxu0
        %3883 = vmatprep.mubr.bf16.mxu0 %v3696
        %3884 = vmatmul.mubr.bf16.gmra.mxu0 %v3695
        %v3885 = vpop.f32.mrf.mxu0
        %v3886 = vadd.f32 0.0, %v3885
        %v3887 = vpop.f32.mrf.mxu0
        %v3888 = vpop.f32.mrf.mxu0
        %v3889 = vadd.f32 0.0, %v3888
        %v3890 = vpop.f32.mrf.mxu0
        %3891 = vmatprep.mubr.bf16.mxu0 %v3698
        %3892 = vmatmul.mubr.bf16.gmra.mxu0 %v3697
        %v3893 = vpop.f32.mrf.mxu0
        %v3894 = vadd.f32 0.0, %v3893
        %v3895 = vpop.f32.mrf.mxu0
        %v3896 = vpop.f32.mrf.mxu0
        %v3897 = vadd.f32 0.0, %v3896
        %v3898 = vpop.f32.mrf.mxu0
        %3899 = vmatprep.mubr.bf16.mxu0 %v3700
        %3900 = vmatmul.mubr.bf16.gmra.mxu0 %v3699
        %v3901 = vpop.f32.mrf.mxu0
        %v3902 = vadd.f32 0.0, %v3901
        %v3903 = vpop.f32.mrf.mxu0
        %v3904 = vpop.f32.mrf.mxu0
        %v3905 = vadd.f32 0.0, %v3904
        %v3906 = vpop.f32.mrf.mxu0
        %3907 = vmatprep.mubr.bf16.mxu0 %v3702
        %3908 = vmatmul.mubr.bf16.gmra.mxu0 %v3701
        %v3909 = vpop.f32.mrf.mxu0
        %v3910 = vadd.f32 0.0, %v3909
        %v3911 = vpop.f32.mrf.mxu0
        %v3912 = vpop.f32.mrf.mxu0
        %v3913 = vadd.f32 0.0, %v3912
        %v3914 = vpop.f32.mrf.mxu0
        %3915 = vmatprep.mubr.bf16.mxu0 %v3704
        %3916 = vmatmul.mubr.bf16.gmra.mxu0 %v3703
        %v3917 = vpop.f32.mrf.mxu0
        %v3918 = vadd.f32 0.0, %v3917
        %v3919 = vpop.f32.mrf.mxu0
        %v3920 = vpop.f32.mrf.mxu0
        %v3921 = vadd.f32 0.0, %v3920
        %v3922 = vpop.f32.mrf.mxu0
        %3923 = vmatprep.mubr.bf16.mxu0 %v3706
        %3924 = vmatmul.mubr.bf16.gmra.mxu0 %v3705
        %v3925 = vpop.f32.mrf.mxu0
        %v3926 = vadd.f32 0.0, %v3925
        %v3927 = vpop.f32.mrf.mxu0
        %v3928 = vpop.f32.mrf.mxu0
        %v3929 = vadd.f32 0.0, %v3928
        %v3930 = vpop.f32.mrf.mxu0
        %3931 = vdwg.mxu0
        %v3932 = vpack.c.bf16 %v3809, %v3806
        %v3933 = vpack.c.bf16 %v3817, %v3814
        %v3934 = vpack.c.bf16 %v3825, %v3822
        %v3935 = vpack.c.bf16 %v3833, %v3830
        %v3936 = vpack.c.bf16 %v3841, %v3838
        %v3937 = vpack.c.bf16 %v3849, %v3846
        %v3938 = vpack.c.bf16 %v3857, %v3854
        %v3939 = vpack.c.bf16 %v3865, %v3862
        %v3940 = vpack.c.bf16 %v3873, %v3870
        %v3941 = vpack.c.bf16 %v3881, %v3878
        %v3942 = vpack.c.bf16 %v3889, %v3886
        %v3943 = vpack.c.bf16 %v3897, %v3894
        %v3944 = vpack.c.bf16 %v3905, %v3902
        %v3945 = vpack.c.bf16 %v3913, %v3910
        %v3946 = vpack.c.bf16 %v3921, %v3918
        %v3947 = vpack.c.bf16 %v3929, %v3926
        %v3948 = vld [vmem:[%s5] sm:$0xf]
        %v3949 = vld [vmem:[%s6] sm:$0x1]
        %v3951 = vlaneseq
        %v3952 = vshrl.u32 %v3951, 7
        %v3953 = vsub.s32 0, %v3952
        %v3954 = vrot.slane %v3949, %v3953
        %v3957 = vsel %vm2113, %v3932, 0
        %v3960 = vsel %vm2113, %v3933, 0
        %v3963 = vsel %vm2113, %v3934, 0
        %v3966 = vsel %vm2113, %v3935, 0
        %v3969 = vsel %vm2113, %v3936, 0
        %v3972 = vsel %vm2113, %v3937, 0
        %v3975 = vsel %vm2113, %v3938, 0
        %v3978 = vsel %vm2113, %v3939, 0
        %v3981 = vsel %vm2113, %v3940, 0
        %v3984 = vsel %vm2113, %v3941, 0
        %v3987 = vsel %vm2113, %v3942, 0
        %v3990 = vsel %vm2113, %v3943, 0
        %v3993 = vsel %vm2113, %v3944, 0
        %v3996 = vsel %vm2113, %v3945, 0
        %v3999 = vsel %vm2113, %v3946, 0
        %v4002 = vsel %vm2113, %v3947, 0
        %v4005 = vsel %vm2453, %v3948, 0
        %4007 = vmatprep.subr.bf16.mxu0 0
        %4008 = vmatpush1.bf16.msra.mxu0 0
        %4009 = vmatprep.subr.bf16.mxu0 0
        %4010 = vmatpush1.bf16.msra.mxu0 0
        %4011 = vmatprep.subr.bf16.mxu0 0
        %4012 = vmatpush1.bf16.msra.mxu0 0
        %4013 = vmatprep.subr.bf16.mxu0 0
        %4014 = vmatpush1.bf16.msra.mxu0 0
        %4015 = vmatprep.subr.bf16.mxu0 0
        %4016 = vmatpush1.bf16.msra.mxu0 0
        %4017 = vmatprep.subr.bf16.mxu0 0
        %4018 = vmatpush1.bf16.msra.mxu0 0
        %4019 = vmatprep.subr.bf16.mxu0 0
        %4020 = vmatpush1.bf16.msra.mxu0 0
        %4021 = vmatprep.subr.bf16.mxu0 0
        %4022 = vmatpush1.bf16.msra.mxu0 %v4005
        %4023 = vmatprep.subr.bf16.mxu0 0
        %4024 = vmatpush2.bf16.msra.mxu0 0
        %4025 = vmatprep.subr.bf16.mxu0 0
        %4026 = vmatpush2.bf16.msra.mxu0 0
        %4027 = vmatprep.subr.bf16.mxu0 0
        %4028 = vmatpush2.bf16.msra.mxu0 0
        %4029 = vmatprep.subr.bf16.mxu0 0
        %4030 = vmatpush2.bf16.msra.mxu0 0
        %4031 = vmatprep.subr.bf16.mxu0 0
        %4032 = vmatpush2.bf16.msra.mxu0 0
        %4033 = vmatprep.subr.bf16.mxu0 0
        %4034 = vmatpush2.bf16.msra.mxu0 0
        %4035 = vmatprep.subr.bf16.mxu0 0
        %4036 = vmatpush2.bf16.msra.mxu0 0
        %4037 = vmatprep.subr.bf16.mxu0 0
        %4038 = vmatpush2.bf16.msra.mxu0 0
        %4039 = vmatprep.mubr.bf16.mxu0 0
        %4040 = vmatmul.mubr.bf16.gmra.mxu0 %v3957
        %v4041 = vpop.f32.mrf.mxu0
        %v4042 = vadd.f32 %v3954, %v4041
        %v4043 = vpop.f32.mrf.mxu0
        %v4044 = vpop.f32.mrf.mxu0
        %v4045 = vadd.f32 %v3954, %v4044
        %v4046 = vpop.f32.mrf.mxu0
        %4047 = vmatprep.mubr.bf16.mxu0 0
        %4048 = vmatmul.mubr.bf16.gmra.mxu0 %v3960
        %v4049 = vpop.f32.mrf.mxu0
        %v4050 = vadd.f32 %v3954, %v4049
        %v4051 = vpop.f32.mrf.mxu0
        %v4052 = vpop.f32.mrf.mxu0
        %v4053 = vadd.f32 %v3954, %v4052
        %v4054 = vpop.f32.mrf.mxu0
        %4055 = vmatprep.mubr.bf16.mxu0 0
        %4056 = vmatmul.mubr.bf16.gmra.mxu0 %v3963
        %v4057 = vpop.f32.mrf.mxu0
        %v4058 = vadd.f32 %v3954, %v4057
        %v4059 = vpop.f32.mrf.mxu0
        %v4060 = vpop.f32.mrf.mxu0
        %v4061 = vadd.f32 %v3954, %v4060
        %v4062 = vpop.f32.mrf.mxu0
        %4063 = vmatprep.mubr.bf16.mxu0 0
        %4064 = vmatmul.mubr.bf16.gmra.mxu0 %v3966
        %v4065 = vpop.f32.mrf.mxu0
        %v4066 = vadd.f32 %v3954, %v4065
        %v4067 = vpop.f32.mrf.mxu0
        %v4068 = vpop.f32.mrf.mxu0
        %v4069 = vadd.f32 %v3954, %v4068
        %v4070 = vpop.f32.mrf.mxu0
        %4071 = vmatprep.mubr.bf16.mxu0 0
        %4072 = vmatmul.mubr.bf16.gmra.mxu0 %v3969
        %v4073 = vpop.f32.mrf.mxu0
        %v4074 = vadd.f32 %v3954, %v4073
        %v4075 = vpop.f32.mrf.mxu0
        %v4076 = vpop.f32.mrf.mxu0
        %v4077 = vadd.f32 %v3954, %v4076
        %v4078 = vpop.f32.mrf.mxu0
        %4079 = vmatprep.mubr.bf16.mxu0 0
        %4080 = vmatmul.mubr.bf16.gmra.mxu0 %v3972
        %v4081 = vpop.f32.mrf.mxu0
        %v4082 = vadd.f32 %v3954, %v4081
        %v4083 = vpop.f32.mrf.mxu0
        %v4084 = vpop.f32.mrf.mxu0
        %v4085 = vadd.f32 %v3954, %v4084
        %v4086 = vpop.f32.mrf.mxu0
        %4087 = vmatprep.mubr.bf16.mxu0 0
        %4088 = vmatmul.mubr.bf16.gmra.mxu0 %v3975
        %v4089 = vpop.f32.mrf.mxu0
        %v4090 = vadd.f32 %v3954, %v4089
        %v4091 = vpop.f32.mrf.mxu0
        %v4092 = vpop.f32.mrf.mxu0
        %v4093 = vadd.f32 %v3954, %v4092
        %v4094 = vpop.f32.mrf.mxu0
        %4095 = vmatprep.mubr.bf16.mxu0 0
        %4096 = vmatmul.mubr.bf16.gmra.mxu0 %v3978
        %v4097 = vpop.f32.mrf.mxu0
        %v4098 = vadd.f32 %v3954, %v4097
        %v4099 = vpop.f32.mrf.mxu0
        %v4100 = vpop.f32.mrf.mxu0
        %v4101 = vadd.f32 %v3954, %v4100
        %v4102 = vpop.f32.mrf.mxu0
        %4103 = vmatprep.mubr.bf16.mxu0 0
        %4104 = vmatmul.mubr.bf16.gmra.mxu0 %v3981
        %v4105 = vpop.f32.mrf.mxu0
        %v4106 = vadd.f32 %v3954, %v4105
        %v4107 = vpop.f32.mrf.mxu0
        %v4108 = vpop.f32.mrf.mxu0
        %v4109 = vadd.f32 %v3954, %v4108
        %v4110 = vpop.f32.mrf.mxu0
        %4111 = vmatprep.mubr.bf16.mxu0 0
        %4112 = vmatmul.mubr.bf16.gmra.mxu0 %v3984
        %v4113 = vpop.f32.mrf.mxu0
        %v4114 = vadd.f32 %v3954, %v4113
        %v4115 = vpop.f32.mrf.mxu0
        %v4116 = vpop.f32.mrf.mxu0
        %v4117 = vadd.f32 %v3954, %v4116
        %v4118 = vpop.f32.mrf.mxu0
        %4119 = vmatprep.mubr.bf16.mxu0 0
        %4120 = vmatmul.mubr.bf16.gmra.mxu0 %v3987
        %v4121 = vpop.f32.mrf.mxu0
        %v4122 = vadd.f32 %v3954, %v4121
        %v4123 = vpop.f32.mrf.mxu0
        %v4124 = vpop.f32.mrf.mxu0
        %v4125 = vadd.f32 %v3954, %v4124
        %v4126 = vpop.f32.mrf.mxu0
        %4127 = vmatprep.mubr.bf16.mxu0 0
        %4128 = vmatmul.mubr.bf16.gmra.mxu0 %v3990
        %v4129 = vpop.f32.mrf.mxu0
        %v4130 = vadd.f32 %v3954, %v4129
        %v4131 = vpop.f32.mrf.mxu0
        %v4132 = vpop.f32.mrf.mxu0
        %v4133 = vadd.f32 %v3954, %v4132
        %v4134 = vpop.f32.mrf.mxu0
        %4135 = vmatprep.mubr.bf16.mxu0 0
        %4136 = vmatmul.mubr.bf16.gmra.mxu0 %v3993
        %v4137 = vpop.f32.mrf.mxu0
        %v4138 = vadd.f32 %v3954, %v4137
        %v4139 = vpop.f32.mrf.mxu0
        %v4140 = vpop.f32.mrf.mxu0
        %v4141 = vadd.f32 %v3954, %v4140
        %v4142 = vpop.f32.mrf.mxu0
        %4143 = vmatprep.mubr.bf16.mxu0 0
        %4144 = vmatmul.mubr.bf16.gmra.mxu0 %v3996
        %v4145 = vpop.f32.mrf.mxu0
        %v4146 = vadd.f32 %v3954, %v4145
        %v4147 = vpop.f32.mrf.mxu0
        %v4148 = vpop.f32.mrf.mxu0
        %v4149 = vadd.f32 %v3954, %v4148
        %v4150 = vpop.f32.mrf.mxu0
        %4151 = vmatprep.mubr.bf16.mxu0 0
        %4152 = vmatmul.mubr.bf16.gmra.mxu0 %v3999
        %v4153 = vpop.f32.mrf.mxu0
        %v4154 = vadd.f32 %v3954, %v4153
        %v4155 = vpop.f32.mrf.mxu0
        %v4156 = vpop.f32.mrf.mxu0
        %v4157 = vadd.f32 %v3954, %v4156
        %v4158 = vpop.f32.mrf.mxu0
        %4159 = vmatprep.mubr.bf16.mxu0 0
        %4160 = vmatmul.mubr.bf16.gmra.mxu0 %v4002
        %v4161 = vpop.f32.mrf.mxu0
        %v4162 = vadd.f32 %v3954, %v4161
        %v4163 = vpop.f32.mrf.mxu0
        %v4164 = vpop.f32.mrf.mxu0
        %v4165 = vadd.f32 %v3954, %v4164
        %v4166 = vpop.f32.mrf.mxu0
        %4167 = vdwg.mxu0
        %v4168 = vpack.c.bf16 %v4045, %v4042
        %v4169 = vpack.c.bf16 %v4053, %v4050
        %v4170 = vpack.c.bf16 %v4061, %v4058
        %v4171 = vpack.c.bf16 %v4069, %v4066
        %v4172 = vpack.c.bf16 %v4077, %v4074
        %v4173 = vpack.c.bf16 %v4085, %v4082
        %v4174 = vpack.c.bf16 %v4093, %v4090
        %v4175 = vpack.c.bf16 %v4101, %v4098
        %v4176 = vpack.c.bf16 %v4109, %v4106
        %v4177 = vpack.c.bf16 %v4117, %v4114
        %v4178 = vpack.c.bf16 %v4125, %v4122
        %v4179 = vpack.c.bf16 %v4133, %v4130
        %v4180 = vpack.c.bf16 %v4141, %v4138
        %v4181 = vpack.c.bf16 %v4149, %v4146
        %v4182 = vpack.c.bf16 %v4157, %v4154
        %v4183 = vpack.c.bf16 %v4165, %v4162
        %v4184 = vld [vmem:[%s7] sm:$0xf]
        %v4185 = vld [vmem:[%s7 + $0x4] sm:$0xf]
        %v4186 = vld [vmem:[%s8] sm:$0xf]
        %v4187 = vld [vmem:[%s8 + $0x4] sm:$0xf]
        %v4190 = vunpack.c.l.b16 %v4186
        %v4191 = vunpack.c.l.b16 %v4187
        %v4192 = vpack.c.b16 %v4191, %v4190
        %4194 = vmatprep.subr.bf16.mxu0 0
        %4195 = vmatpush1.bf16.msra.mxu0 0
        %4196 = vmatprep.subr.bf16.mxu0 0
        %4197 = vmatpush1.bf16.msra.mxu0 0
        %4198 = vmatprep.subr.bf16.mxu0 0
        %4199 = vmatpush1.bf16.msra.mxu0 0
        %4200 = vmatprep.subr.bf16.mxu0 0
        %4201 = vmatpush1.bf16.msra.mxu0 0
        %4202 = vmatprep.subr.bf16.mxu0 0
        %4203 = vmatpush1.bf16.msra.mxu0 0
        %4204 = vmatprep.subr.bf16.mxu0 0
        %4205 = vmatpush1.bf16.msra.mxu0 0
        %4206 = vmatprep.subr.bf16.mxu0 0
        %4207 = vmatpush1.bf16.msra.mxu0 0
        %4208 = vmatprep.subr.bf16.mxu0 0
        %4209 = vmatpush1.bf16.msra.mxu0 %v4192
        %4210 = vmatprep.subr.bf16.mxu0 0
        %4211 = vmatpush2.bf16.msra.mxu0 0
        %4212 = vmatprep.subr.bf16.mxu0 0
        %4213 = vmatpush2.bf16.msra.mxu0 0
        %4214 = vmatprep.subr.bf16.mxu0 0
        %4215 = vmatpush2.bf16.msra.mxu0 0
        %4216 = vmatprep.subr.bf16.mxu0 0
        %4217 = vmatpush2.bf16.msra.mxu0 0
        %4218 = vmatprep.subr.bf16.mxu0 0
        %4219 = vmatpush2.bf16.msra.mxu0 0
        %4220 = vmatprep.subr.bf16.mxu0 0
        %4221 = vmatpush2.bf16.msra.mxu0 0
        %4222 = vmatprep.subr.bf16.mxu0 0
        %4223 = vmatpush2.bf16.msra.mxu0 0
        %4224 = vmatprep.subr.bf16.mxu0 0
        %4225 = vmatpush2.bf16.msra.mxu0 0
        %4226 = vmatprep.mubr.bf16.mxu0 0
        %4227 = vmatmul.mubr.bf16.gmra.mxu0 %v2682
        %v4228 = vpop.f32.mrf.mxu0
        %v4229 = vadd.f32 0.0, %v4228
        %v4230 = vpop.f32.mrf.mxu0
        %v4231 = vpop.f32.mrf.mxu0
        %v4232 = vadd.f32 0.0, %v4231
        %v4233 = vpop.f32.mrf.mxu0
        %4234 = vmatprep.mubr.bf16.mxu0 0
        %4235 = vmatmul.mubr.bf16.gmra.mxu0 %v2685
        %v4236 = vpop.f32.mrf.mxu0
        %v4237 = vadd.f32 0.0, %v4236
        %v4238 = vpop.f32.mrf.mxu0
        %v4239 = vpop.f32.mrf.mxu0
        %v4240 = vadd.f32 0.0, %v4239
        %v4241 = vpop.f32.mrf.mxu0
        %4242 = vmatprep.mubr.bf16.mxu0 0
        %4243 = vmatmul.mubr.bf16.gmra.mxu0 %v2688
        %v4244 = vpop.f32.mrf.mxu0
        %v4245 = vadd.f32 0.0, %v4244
        %v4246 = vpop.f32.mrf.mxu0
        %v4247 = vpop.f32.mrf.mxu0
        %v4248 = vadd.f32 0.0, %v4247
        %v4249 = vpop.f32.mrf.mxu0
        %4250 = vmatprep.mubr.bf16.mxu0 0
        %4251 = vmatmul.mubr.bf16.gmra.mxu0 %v2691
        %v4252 = vpop.f32.mrf.mxu0
        %v4253 = vadd.f32 0.0, %v4252
        %v4254 = vpop.f32.mrf.mxu0
        %v4255 = vpop.f32.mrf.mxu0
        %v4256 = vadd.f32 0.0, %v4255
        %v4257 = vpop.f32.mrf.mxu0
        %4258 = vmatprep.mubr.bf16.mxu0 0
        %4259 = vmatmul.mubr.bf16.gmra.mxu0 %v2694
        %v4260 = vpop.f32.mrf.mxu0
        %v4261 = vadd.f32 0.0, %v4260
        %v4262 = vpop.f32.mrf.mxu0
        %v4263 = vpop.f32.mrf.mxu0
        %v4264 = vadd.f32 0.0, %v4263
        %v4265 = vpop.f32.mrf.mxu0
        %4266 = vmatprep.mubr.bf16.mxu0 0
        %4267 = vmatmul.mubr.bf16.gmra.mxu0 %v2697
        %v4268 = vpop.f32.mrf.mxu0
        %v4269 = vadd.f32 0.0, %v4268
        %v4270 = vpop.f32.mrf.mxu0
        %v4271 = vpop.f32.mrf.mxu0
        %v4272 = vadd.f32 0.0, %v4271
        %v4273 = vpop.f32.mrf.mxu0
        %4274 = vmatprep.mubr.bf16.mxu0 0
        %4275 = vmatmul.mubr.bf16.gmra.mxu0 %v2700
        %v4276 = vpop.f32.mrf.mxu0
        %v4277 = vadd.f32 0.0, %v4276
        %v4278 = vpop.f32.mrf.mxu0
        %v4279 = vpop.f32.mrf.mxu0
        %v4280 = vadd.f32 0.0, %v4279
        %v4281 = vpop.f32.mrf.mxu0
        %4282 = vmatprep.mubr.bf16.mxu0 0
        %4283 = vmatmul.mubr.bf16.gmra.mxu0 %v2703
        %v4284 = vpop.f32.mrf.mxu0
        %v4285 = vadd.f32 0.0, %v4284
        %v4286 = vpop.f32.mrf.mxu0
        %v4287 = vpop.f32.mrf.mxu0
        %v4288 = vadd.f32 0.0, %v4287
        %v4289 = vpop.f32.mrf.mxu0
        %4290 = vmatprep.mubr.bf16.mxu0 0
        %4291 = vmatmul.mubr.bf16.gmra.mxu0 %v2706
        %v4292 = vpop.f32.mrf.mxu0
        %v4293 = vadd.f32 0.0, %v4292
        %v4294 = vpop.f32.mrf.mxu0
        %v4295 = vpop.f32.mrf.mxu0
        %v4296 = vadd.f32 0.0, %v4295
        %v4297 = vpop.f32.mrf.mxu0
        %4298 = vmatprep.mubr.bf16.mxu0 0
        %4299 = vmatmul.mubr.bf16.gmra.mxu0 %v2709
        %v4300 = vpop.f32.mrf.mxu0
        %v4301 = vadd.f32 0.0, %v4300
        %v4302 = vpop.f32.mrf.mxu0
        %v4303 = vpop.f32.mrf.mxu0
        %v4304 = vadd.f32 0.0, %v4303
        %v4305 = vpop.f32.mrf.mxu0
        %4306 = vmatprep.mubr.bf16.mxu0 0
        %4307 = vmatmul.mubr.bf16.gmra.mxu0 %v2712
        %v4308 = vpop.f32.mrf.mxu0
        %v4309 = vadd.f32 0.0, %v4308
        %v4310 = vpop.f32.mrf.mxu0
        %v4311 = vpop.f32.mrf.mxu0
        %v4312 = vadd.f32 0.0, %v4311
        %v4313 = vpop.f32.mrf.mxu0
        %4314 = vmatprep.mubr.bf16.mxu0 0
        %4315 = vmatmul.mubr.bf16.gmra.mxu0 %v2715
        %v4316 = vpop.f32.mrf.mxu0
        %v4317 = vadd.f32 0.0, %v4316
        %v4318 = vpop.f32.mrf.mxu0
        %v4319 = vpop.f32.mrf.mxu0
        %v4320 = vadd.f32 0.0, %v4319
        %v4321 = vpop.f32.mrf.mxu0
        %4322 = vmatprep.mubr.bf16.mxu0 0
        %4323 = vmatmul.mubr.bf16.gmra.mxu0 %v2718
        %v4324 = vpop.f32.mrf.mxu0
        %v4325 = vadd.f32 0.0, %v4324
        %v4326 = vpop.f32.mrf.mxu0
        %v4327 = vpop.f32.mrf.mxu0
        %v4328 = vadd.f32 0.0, %v4327
        %v4329 = vpop.f32.mrf.mxu0
        %4330 = vmatprep.mubr.bf16.mxu0 0
        %4331 = vmatmul.mubr.bf16.gmra.mxu0 %v2721
        %v4332 = vpop.f32.mrf.mxu0
        %v4333 = vadd.f32 0.0, %v4332
        %v4334 = vpop.f32.mrf.mxu0
        %v4335 = vpop.f32.mrf.mxu0
        %v4336 = vadd.f32 0.0, %v4335
        %v4337 = vpop.f32.mrf.mxu0
        %4338 = vmatprep.mubr.bf16.mxu0 0
        %4339 = vmatmul.mubr.bf16.gmra.mxu0 %v2724
        %v4340 = vpop.f32.mrf.mxu0
        %v4341 = vadd.f32 0.0, %v4340
        %v4342 = vpop.f32.mrf.mxu0
        %v4343 = vpop.f32.mrf.mxu0
        %v4344 = vadd.f32 0.0, %v4343
        %v4345 = vpop.f32.mrf.mxu0
        %4346 = vmatprep.mubr.bf16.mxu0 0
        %4347 = vmatmul.mubr.bf16.gmra.mxu0 %v2727
        %v4348 = vpop.f32.mrf.mxu0
        %v4349 = vadd.f32 0.0, %v4348
        %v4350 = vpop.f32.mrf.mxu0
        %v4351 = vpop.f32.mrf.mxu0
        %v4352 = vadd.f32 0.0, %v4351
        %v4353 = vpop.f32.mrf.mxu0
        %4354 = vdwg.mxu0
        %v4357 = vunpack.c.l.b16 %v4184
        %v4358 = vunpack.c.l.b16 %v4185
        %v4359 = vpack.c.b16 %v4358, %v4357
        %v4362 = vsel %vm2146, %v4168, 0
        %v4365 = vsel %vm2146, %v4169, 0
        %v4368 = vsel %vm2146, %v4170, 0
        %v4371 = vsel %vm2146, %v4171, 0
        %v4374 = vsel %vm2146, %v4172, 0
        %v4377 = vsel %vm2146, %v4173, 0
        %v4380 = vsel %vm2146, %v4174, 0
        %v4383 = vsel %vm2146, %v4175, 0
        %v4386 = vsel %vm2146, %v4176, 0
        %v4389 = vsel %vm2146, %v4177, 0
        %v4392 = vsel %vm2146, %v4178, 0
        %v4395 = vsel %vm2146, %v4179, 0
        %v4398 = vsel %vm2146, %v4180, 0
        %v4401 = vsel %vm2146, %v4181, 0
        %v4404 = vsel %vm2146, %v4182, 0
        %v4407 = vsel %vm2146, %v4183, 0
        %4409 = vmatprep.subr.bf16.mxu0 0
        %4410 = vmatpush1.bf16.msra.mxu0 0
        %4411 = vmatprep.subr.bf16.mxu0 0
        %4412 = vmatpush1.bf16.msra.mxu0 0
        %4413 = vmatprep.subr.bf16.mxu0 0
        %4414 = vmatpush1.bf16.msra.mxu0 0
        %4415 = vmatprep.subr.bf16.mxu0 0
        %4416 = vmatpush1.bf16.msra.mxu0 0
        %4417 = vmatprep.subr.bf16.mxu0 0
        %4418 = vmatpush1.bf16.msra.mxu0 0
        %4419 = vmatprep.subr.bf16.mxu0 0
        %4420 = vmatpush1.bf16.msra.mxu0 0
        %4421 = vmatprep.subr.bf16.mxu0 0
        %4422 = vmatpush1.bf16.msra.mxu0 0
        %4423 = vmatprep.subr.bf16.mxu0 0
        %4424 = vmatpush1.bf16.msra.mxu0 %v4359
        %4425 = vmatprep.subr.bf16.mxu0 0
        %4426 = vmatpush2.bf16.msra.mxu0 0
        %4427 = vmatprep.subr.bf16.mxu0 0
        %4428 = vmatpush2.bf16.msra.mxu0 0
        %4429 = vmatprep.subr.bf16.mxu0 0
        %4430 = vmatpush2.bf16.msra.mxu0 0
        %4431 = vmatprep.subr.bf16.mxu0 0
        %4432 = vmatpush2.bf16.msra.mxu0 0
        %4433 = vmatprep.subr.bf16.mxu0 0
        %4434 = vmatpush2.bf16.msra.mxu0 0
        %4435 = vmatprep.subr.bf16.mxu0 0
        %4436 = vmatpush2.bf16.msra.mxu0 0
        %4437 = vmatprep.subr.bf16.mxu0 0
        %4438 = vmatpush2.bf16.msra.mxu0 0
        %4439 = vmatprep.subr.bf16.mxu0 0
        %4440 = vmatpush2.bf16.msra.mxu0 0
        %4441 = vmatprep.mubr.bf16.mxu0 0
        %4442 = vmatmul.mubr.bf16.gmra.mxu0 %v4362
        %v4443 = vpop.f32.mrf.mxu0
        %v4444 = vadd.f32 %v4229, %v4443
        %v4445 = vpop.f32.mrf.mxu0
        %v4446 = vpop.f32.mrf.mxu0
        %v4447 = vadd.f32 %v4232, %v4446
        %v4448 = vpop.f32.mrf.mxu0
        %4449 = vmatprep.mubr.bf16.mxu0 0
        %4450 = vmatmul.mubr.bf16.gmra.mxu0 %v4365
        %v4451 = vpop.f32.mrf.mxu0
        %v4452 = vadd.f32 %v4237, %v4451
        %v4453 = vpop.f32.mrf.mxu0
        %v4454 = vpop.f32.mrf.mxu0
        %v4455 = vadd.f32 %v4240, %v4454
        %v4456 = vpop.f32.mrf.mxu0
        %4457 = vmatprep.mubr.bf16.mxu0 0
        %4458 = vmatmul.mubr.bf16.gmra.mxu0 %v4368
        %v4459 = vpop.f32.mrf.mxu0
        %v4460 = vadd.f32 %v4245, %v4459
        %v4461 = vpop.f32.mrf.mxu0
        %v4462 = vpop.f32.mrf.mxu0
        %v4463 = vadd.f32 %v4248, %v4462
        %v4464 = vpop.f32.mrf.mxu0
        %4465 = vmatprep.mubr.bf16.mxu0 0
        %4466 = vmatmul.mubr.bf16.gmra.mxu0 %v4371
        %v4467 = vpop.f32.mrf.mxu0
        %v4468 = vadd.f32 %v4253, %v4467
        %v4469 = vpop.f32.mrf.mxu0
        %v4470 = vpop.f32.mrf.mxu0
        %v4471 = vadd.f32 %v4256, %v4470
        %v4472 = vpop.f32.mrf.mxu0
        %4473 = vmatprep.mubr.bf16.mxu0 0
        %4474 = vmatmul.mubr.bf16.gmra.mxu0 %v4374
        %v4475 = vpop.f32.mrf.mxu0
        %v4476 = vadd.f32 %v4261, %v4475
        %v4477 = vpop.f32.mrf.mxu0
        %v4478 = vpop.f32.mrf.mxu0
        %v4479 = vadd.f32 %v4264, %v4478
        %v4480 = vpop.f32.mrf.mxu0
        %4481 = vmatprep.mubr.bf16.mxu0 0
        %4482 = vmatmul.mubr.bf16.gmra.mxu0 %v4377
        %v4483 = vpop.f32.mrf.mxu0
        %v4484 = vadd.f32 %v4269, %v4483
        %v4485 = vpop.f32.mrf.mxu0
        %v4486 = vpop.f32.mrf.mxu0
        %v4487 = vadd.f32 %v4272, %v4486
        %v4488 = vpop.f32.mrf.mxu0
        %4489 = vmatprep.mubr.bf16.mxu0 0
        %4490 = vmatmul.mubr.bf16.gmra.mxu0 %v4380
        %v4491 = vpop.f32.mrf.mxu0
        %v4492 = vadd.f32 %v4277, %v4491
        %v4493 = vpop.f32.mrf.mxu0
        %v4494 = vpop.f32.mrf.mxu0
        %v4495 = vadd.f32 %v4280, %v4494
        %v4496 = vpop.f32.mrf.mxu0
        %4497 = vmatprep.mubr.bf16.mxu0 0
        %4498 = vmatmul.mubr.bf16.gmra.mxu0 %v4383
        %v4499 = vpop.f32.mrf.mxu0
        %v4500 = vadd.f32 %v4285, %v4499
        %v4501 = vpop.f32.mrf.mxu0
        %v4502 = vpop.f32.mrf.mxu0
        %v4503 = vadd.f32 %v4288, %v4502
        %v4504 = vpop.f32.mrf.mxu0
        %4505 = vmatprep.mubr.bf16.mxu0 0
        %4506 = vmatmul.mubr.bf16.gmra.mxu0 %v4386
        %v4507 = vpop.f32.mrf.mxu0
        %v4508 = vadd.f32 %v4293, %v4507
        %v4509 = vpop.f32.mrf.mxu0
        %v4510 = vpop.f32.mrf.mxu0
        %v4511 = vadd.f32 %v4296, %v4510
        %v4512 = vpop.f32.mrf.mxu0
        %4513 = vmatprep.mubr.bf16.mxu0 0
        %4514 = vmatmul.mubr.bf16.gmra.mxu0 %v4389
        %v4515 = vpop.f32.mrf.mxu0
        %v4516 = vadd.f32 %v4301, %v4515
        %v4517 = vpop.f32.mrf.mxu0
        %v4518 = vpop.f32.mrf.mxu0
        %v4519 = vadd.f32 %v4304, %v4518
        %v4520 = vpop.f32.mrf.mxu0
        %4521 = vmatprep.mubr.bf16.mxu0 0
        %4522 = vmatmul.mubr.bf16.gmra.mxu0 %v4392
        %v4523 = vpop.f32.mrf.mxu0
        %v4524 = vadd.f32 %v4309, %v4523
        %v4525 = vpop.f32.mrf.mxu0
        %v4526 = vpop.f32.mrf.mxu0
        %v4527 = vadd.f32 %v4312, %v4526
        %v4528 = vpop.f32.mrf.mxu0
        %4529 = vmatprep.mubr.bf16.mxu0 0
        %4530 = vmatmul.mubr.bf16.gmra.mxu0 %v4395
        %v4531 = vpop.f32.mrf.mxu0
        %v4532 = vadd.f32 %v4317, %v4531
        %v4533 = vpop.f32.mrf.mxu0
        %v4534 = vpop.f32.mrf.mxu0
        %v4535 = vadd.f32 %v4320, %v4534
        %v4536 = vpop.f32.mrf.mxu0
        %4537 = vmatprep.mubr.bf16.mxu0 0
        %4538 = vmatmul.mubr.bf16.gmra.mxu0 %v4398
        %v4539 = vpop.f32.mrf.mxu0
        %v4540 = vadd.f32 %v4325, %v4539
        %v4541 = vpop.f32.mrf.mxu0
        %v4542 = vpop.f32.mrf.mxu0
        %v4543 = vadd.f32 %v4328, %v4542
        %v4544 = vpop.f32.mrf.mxu0
        %4545 = vmatprep.mubr.bf16.mxu0 0
        %4546 = vmatmul.mubr.bf16.gmra.mxu0 %v4401
        %v4547 = vpop.f32.mrf.mxu0
        %v4548 = vadd.f32 %v4333, %v4547
        %v4549 = vpop.f32.mrf.mxu0
        %v4550 = vpop.f32.mrf.mxu0
        %v4551 = vadd.f32 %v4336, %v4550
        %v4552 = vpop.f32.mrf.mxu0
        %4553 = vmatprep.mubr.bf16.mxu0 0
        %4554 = vmatmul.mubr.bf16.gmra.mxu0 %v4404
        %v4555 = vpop.f32.mrf.mxu0
        %v4556 = vadd.f32 %v4341, %v4555
        %v4557 = vpop.f32.mrf.mxu0
        %v4558 = vpop.f32.mrf.mxu0
        %v4559 = vadd.f32 %v4344, %v4558
        %v4560 = vpop.f32.mrf.mxu0
        %4561 = vmatprep.mubr.bf16.mxu0 0
        %4562 = vmatmul.mubr.bf16.gmra.mxu0 %v4407
        %v4563 = vpop.f32.mrf.mxu0
        %v4564 = vadd.f32 %v4349, %v4563
        %v4565 = vpop.f32.mrf.mxu0
        %v4566 = vpop.f32.mrf.mxu0
        %v4567 = vadd.f32 %v4352, %v4566
        %v4568 = vpop.f32.mrf.mxu0
        %4569 = vdwg.mxu0
        %v4570 = vld [vmem:[%s9] sm:$0x1]
        %v4572 = vlaneseq
        %v4573 = vshrl.u32 %v4572, 7
        %v4574 = vsub.s32 0, %v4573
        %v4575 = vrot.slane %v4570, %v4574
        %v4577 = vadd.f32 %v4444, %v4575
        %v4578 = vadd.f32 %v4447, %v4575
        %v4579 = vadd.f32 %v4452, %v4575
        %v4580 = vadd.f32 %v4455, %v4575
        %v4581 = vadd.f32 %v4460, %v4575
        %v4582 = vadd.f32 %v4463, %v4575
        %v4583 = vadd.f32 %v4468, %v4575
        %v4584 = vadd.f32 %v4471, %v4575
        %v4585 = vadd.f32 %v4476, %v4575
        %v4586 = vadd.f32 %v4479, %v4575
        %v4587 = vadd.f32 %v4484, %v4575
        %v4588 = vadd.f32 %v4487, %v4575
        %v4589 = vadd.f32 %v4492, %v4575
        %v4590 = vadd.f32 %v4495, %v4575
        %v4591 = vadd.f32 %v4500, %v4575
        %v4592 = vadd.f32 %v4503, %v4575
        %v4593 = vadd.f32 %v4508, %v4575
        %v4594 = vadd.f32 %v4511, %v4575
        %v4595 = vadd.f32 %v4516, %v4575
        %v4596 = vadd.f32 %v4519, %v4575
        %v4597 = vadd.f32 %v4524, %v4575
        %v4598 = vadd.f32 %v4527, %v4575
        %v4599 = vadd.f32 %v4532, %v4575
        %v4600 = vadd.f32 %v4535, %v4575
        %v4601 = vadd.f32 %v4540, %v4575
        %v4602 = vadd.f32 %v4543, %v4575
        %v4603 = vadd.f32 %v4548, %v4575
        %v4604 = vadd.f32 %v4551, %v4575
        %v4605 = vadd.f32 %v4556, %v4575
        %v4606 = vadd.f32 %v4559, %v4575
        %v4607 = vadd.f32 %v4564, %v4575
        %v4608 = vadd.f32 %v4567, %v4575
        %v4609 = vmax.f32 %v4577, 0.0
        %v4610 = vmax.f32 %v4578, 0.0
        %v4611 = vmax.f32 %v4579, 0.0
        %v4612 = vmax.f32 %v4580, 0.0
        %v4613 = vmax.f32 %v4581, 0.0
        %v4614 = vmax.f32 %v4582, 0.0
        %v4615 = vmax.f32 %v4583, 0.0
        %v4616 = vmax.f32 %v4584, 0.0
        %v4617 = vmax.f32 %v4585, 0.0
        %v4618 = vmax.f32 %v4586, 0.0
        %v4619 = vmax.f32 %v4587, 0.0
        %v4620 = vmax.f32 %v4588, 0.0
        %v4621 = vmax.f32 %v4589, 0.0
        %v4622 = vmax.f32 %v4590, 0.0
        %v4623 = vmax.f32 %v4591, 0.0
        %v4624 = vmax.f32 %v4592, 0.0
        %v4625 = vmax.f32 %v4593, 0.0
        %v4626 = vmax.f32 %v4594, 0.0
        %v4627 = vmax.f32 %v4595, 0.0
        %v4628 = vmax.f32 %v4596, 0.0
        %v4629 = vmax.f32 %v4597, 0.0
        %v4630 = vmax.f32 %v4598, 0.0
        %v4631 = vmax.f32 %v4599, 0.0
        %v4632 = vmax.f32 %v4600, 0.0
        %v4633 = vmax.f32 %v4601, 0.0
        %v4634 = vmax.f32 %v4602, 0.0
        %v4635 = vmax.f32 %v4603, 0.0
        %v4636 = vmax.f32 %v4604, 0.0
        %v4637 = vmax.f32 %v4605, 0.0
        %v4638 = vmax.f32 %v4606, 0.0
        %v4639 = vmax.f32 %v4607, 0.0
        %v4640 = vmax.f32 %v4608, 0.0
        %vm4641 = vcmask 125952
        %4642 = vst.msk [vmem:[#allocation2] sm:$0xf] %vm4641, 0
        %4643 = vst.msk [vmem:[#allocation2 + $0x4] sm:$0xf] %vm4641, 0
        %vm4644 = vcmask 122880
        %4645 = vst.msk [vmem:[#allocation2 + $0x8] sm:$0x1] %vm4644, 0
        %s4646 = scalar_lea.vmem [#allocation2], 204
        %4647 = vst.msk [vmem:[%s4646] sm:$0xf] %vm4641, 0
        %4648 = vst.msk [vmem:[%s4646 + $0x4] sm:$0xf] %vm4641, 0
        %4649 = vst.msk [vmem:[%s4646 + $0x8] sm:$0x1] %vm4644, 0
        %s4650 = scalar_lea.vmem [#allocation2], 12
        %vm4651 = vcmask 122880
        %vm4652 = vsmask.f32 256
        %vm4653 = vmand %vm4651, %vm4652
        %v4654 = vld [vmem:[%s4650] sm:$0x1]
        %v4655 = vsel %vm4653, 0, %v4654
        %4656 = vst [vmem:[%s4650] sm:$0x1] %v4655
        %v4657 = vld [vmem:[%s4650 + $0xc] sm:$0x1]
        %v4658 = vsel %vm4653, 0, %v4657
        %4659 = vst [vmem:[%s4650 + $0xc] sm:$0x1] %v4658
        %v4660 = vld [vmem:[%s4650 + $0x18] sm:$0x1]
        %v4661 = vsel %vm4653, 0, %v4660
        %4662 = vst [vmem:[%s4650 + $0x18] sm:$0x1] %v4661
        %v4663 = vld [vmem:[%s4650 + $0x24] sm:$0x1]
        %v4664 = vsel %vm4653, 0, %v4663
        %4665 = vst [vmem:[%s4650 + $0x24] sm:$0x1] %v4664
        %v4666 = vld [vmem:[%s4650 + $0x30] sm:$0x1]
        %v4667 = vsel %vm4653, 0, %v4666
        %4668 = vst [vmem:[%s4650 + $0x30] sm:$0x1] %v4667
        %v4669 = vld [vmem:[%s4650 + $0x3c] sm:$0x1]
        %v4670 = vsel %vm4653, 0, %v4669
        %4671 = vst [vmem:[%s4650 + $0x3c] sm:$0x1] %v4670
        %v4672 = vld [vmem:[%s4650 + $0x48] sm:$0x1]
        %v4673 = vsel %vm4653, 0, %v4672
        %4674 = vst [vmem:[%s4650 + $0x48] sm:$0x1] %v4673
        %v4675 = vld [vmem:[%s4650 + $0x54] sm:$0x1]
        %v4676 = vsel %vm4653, 0, %v4675
        %4677 = vst [vmem:[%s4650 + $0x54] sm:$0x1] %v4676
        %v4678 = vld [vmem:[%s4650 + $0x60] sm:$0x1]
        %v4679 = vsel %vm4653, 0, %v4678
        %4680 = vst [vmem:[%s4650 + $0x60] sm:$0x1] %v4679
        %v4681 = vld [vmem:[%s4650 + $0x6c] sm:$0x1]
        %v4682 = vsel %vm4653, 0, %v4681
        %4683 = vst [vmem:[%s4650 + $0x6c] sm:$0x1] %v4682
        %v4684 = vld [vmem:[%s4650 + $0x78] sm:$0x1]
        %v4685 = vsel %vm4653, 0, %v4684
        %4686 = vst [vmem:[%s4650 + $0x78] sm:$0x1] %v4685
        %v4687 = vld [vmem:[%s4650 + $0x84] sm:$0x1]
        %v4688 = vsel %vm4653, 0, %v4687
        %4689 = vst [vmem:[%s4650 + $0x84] sm:$0x1] %v4688
        %v4690 = vld [vmem:[%s4650 + $0x90] sm:$0x1]
        %v4691 = vsel %vm4653, 0, %v4690
        %4692 = vst [vmem:[%s4650 + $0x90] sm:$0x1] %v4691
        %v4693 = vld [vmem:[%s4650 + $0x9c] sm:$0x1]
        %v4694 = vsel %vm4653, 0, %v4693
        %4695 = vst [vmem:[%s4650 + $0x9c] sm:$0x1] %v4694
        %v4696 = vld [vmem:[%s4650 + $0xa8] sm:$0x1]
        %v4697 = vsel %vm4653, 0, %v4696
        %4698 = vst [vmem:[%s4650 + $0xa8] sm:$0x1] %v4697
        %v4699 = vld [vmem:[%s4650 + $0xb4] sm:$0x1]
        %v4700 = vsel %vm4653, 0, %v4699
        %4701 = vst [vmem:[%s4650 + $0xb4] sm:$0x1] %v4700
        %vm4702 = vsmask.f32 7938
        %vm4703 = vmand %vm4651, %vm4702
        %v4704 = vld [vmem:[%s4650 + $0x8] sm:$0x1]
        %v4705 = vsel %vm4703, 0, %v4704
        %4706 = vst [vmem:[%s4650 + $0x8] sm:$0x1] %v4705
        %v4707 = vld [vmem:[%s4650 + $0x14] sm:$0x1]
        %v4708 = vsel %vm4703, 0, %v4707
        %4709 = vst [vmem:[%s4650 + $0x14] sm:$0x1] %v4708
        %v4710 = vld [vmem:[%s4650 + $0x20] sm:$0x1]
        %v4711 = vsel %vm4703, 0, %v4710
        %4712 = vst [vmem:[%s4650 + $0x20] sm:$0x1] %v4711
        %v4713 = vld [vmem:[%s4650 + $0x2c] sm:$0x1]
        %v4714 = vsel %vm4703, 0, %v4713
        %4715 = vst [vmem:[%s4650 + $0x2c] sm:$0x1] %v4714
        %v4716 = vld [vmem:[%s4650 + $0x38] sm:$0x1]
        %v4717 = vsel %vm4703, 0, %v4716
        %4718 = vst [vmem:[%s4650 + $0x38] sm:$0x1] %v4717
        %v4719 = vld [vmem:[%s4650 + $0x44] sm:$0x1]
        %v4720 = vsel %vm4703, 0, %v4719
        %4721 = vst [vmem:[%s4650 + $0x44] sm:$0x1] %v4720
        %v4722 = vld [vmem:[%s4650 + $0x50] sm:$0x1]
        %v4723 = vsel %vm4703, 0, %v4722
        %4724 = vst [vmem:[%s4650 + $0x50] sm:$0x1] %v4723
        %v4725 = vld [vmem:[%s4650 + $0x5c] sm:$0x1]
        %v4726 = vsel %vm4703, 0, %v4725
        %4727 = vst [vmem:[%s4650 + $0x5c] sm:$0x1] %v4726
        %v4728 = vld [vmem:[%s4650 + $0x68] sm:$0x1]
        %v4729 = vsel %vm4703, 0, %v4728
        %4730 = vst [vmem:[%s4650 + $0x68] sm:$0x1] %v4729
        %v4731 = vld [vmem:[%s4650 + $0x74] sm:$0x1]
        %v4732 = vsel %vm4703, 0, %v4731
        %4733 = vst [vmem:[%s4650 + $0x74] sm:$0x1] %v4732
        %v4734 = vld [vmem:[%s4650 + $0x80] sm:$0x1]
        %v4735 = vsel %vm4703, 0, %v4734
        %4736 = vst [vmem:[%s4650 + $0x80] sm:$0x1] %v4735
        %v4737 = vld [vmem:[%s4650 + $0x8c] sm:$0x1]
        %v4738 = vsel %vm4703, 0, %v4737
        %4739 = vst [vmem:[%s4650 + $0x8c] sm:$0x1] %v4738
        %v4740 = vld [vmem:[%s4650 + $0x98] sm:$0x1]
        %v4741 = vsel %vm4703, 0, %v4740
        %4742 = vst [vmem:[%s4650 + $0x98] sm:$0x1] %v4741
        %v4743 = vld [vmem:[%s4650 + $0xa4] sm:$0x1]
        %v4744 = vsel %vm4703, 0, %v4743
        %4745 = vst [vmem:[%s4650 + $0xa4] sm:$0x1] %v4744
        %v4746 = vld [vmem:[%s4650 + $0xb0] sm:$0x1]
        %v4747 = vsel %vm4703, 0, %v4746
        %4748 = vst [vmem:[%s4650 + $0xb0] sm:$0x1] %v4747
        %v4749 = vld [vmem:[%s4650 + $0xbc] sm:$0x1]
        %v4750 = vsel %vm4703, 0, %v4749
        %4751 = vst [vmem:[%s4650 + $0xbc] sm:$0x1] %v4750
        %v4752 = vpack.c.bf16 %v4610, %v4609
        %v4753 = vpack.c.bf16 %v4612, %v4611
        %v4754 = vpack.c.bf16 %v4614, %v4613
        %v4755 = vpack.c.bf16 %v4616, %v4615
        %v4756 = vpack.c.bf16 %v4618, %v4617
        %v4757 = vpack.c.bf16 %v4620, %v4619
        %v4758 = vpack.c.bf16 %v4622, %v4621
        %v4759 = vpack.c.bf16 %v4624, %v4623
        %v4760 = vpack.c.bf16 %v4626, %v4625
        %v4761 = vpack.c.bf16 %v4628, %v4627
        %v4762 = vpack.c.bf16 %v4630, %v4629
        %v4763 = vpack.c.bf16 %v4632, %v4631
        %v4764 = vpack.c.bf16 %v4634, %v4633
        %v4765 = vpack.c.bf16 %v4636, %v4635
        %v4766 = vpack.c.bf16 %v4638, %v4637
        %v4767 = vpack.c.bf16 %v4640, %v4639
        %v4784 = vunpack.c.l.b16 %v4752
        %v4785 = vunpack.c.h.b16 %v4752
        %v4786 = vunpack.c.l.b16 %v4753
        %v4787 = vunpack.c.h.b16 %v4753
        %v4788 = vunpack.c.l.b16 %v4754
        %v4789 = vunpack.c.h.b16 %v4754
        %v4790 = vunpack.c.l.b16 %v4755
        %v4791 = vunpack.c.h.b16 %v4755
        %v4792 = vunpack.c.l.b16 %v4756
        %v4793 = vunpack.c.h.b16 %v4756
        %v4794 = vunpack.c.l.b16 %v4757
        %v4795 = vunpack.c.h.b16 %v4757
        %v4796 = vunpack.c.l.b16 %v4758
        %v4797 = vunpack.c.h.b16 %v4758
        %v4798 = vunpack.c.l.b16 %v4759
        %v4799 = vunpack.c.h.b16 %v4759
        %v4800 = vunpack.c.l.b16 %v4760
        %v4801 = vunpack.c.h.b16 %v4760
        %v4802 = vunpack.c.l.b16 %v4761
        %v4803 = vunpack.c.h.b16 %v4761
        %v4804 = vunpack.c.l.b16 %v4762
        %v4805 = vunpack.c.h.b16 %v4762
        %v4806 = vunpack.c.l.b16 %v4763
        %v4807 = vunpack.c.h.b16 %v4763
        %v4808 = vunpack.c.l.b16 %v4764
        %v4809 = vunpack.c.h.b16 %v4764
        %v4810 = vunpack.c.l.b16 %v4765
        %v4811 = vunpack.c.h.b16 %v4765
        %v4812 = vunpack.c.l.b16 %v4766
        %v4813 = vunpack.c.h.b16 %v4766
        %v4814 = vunpack.c.l.b16 %v4767
        %v4815 = vunpack.c.h.b16 %v4767
        %v4816 = vpack.c.b16 %v4784, %v4784
        %v4817 = vpack.c.b16 %v4785, %v4785
        %v4818 = vpack.c.b16 %v4786, %v4786
        %v4819 = vpack.c.b16 %v4787, %v4787
        %v4820 = vpack.c.b16 %v4788, %v4788
        %v4821 = vpack.c.b16 %v4789, %v4789
        %v4822 = vpack.c.b16 %v4790, %v4790
        %v4823 = vpack.c.b16 %v4791, %v4791
        %v4824 = vpack.c.b16 %v4792, %v4792
        %v4825 = vpack.c.b16 %v4793, %v4793
        %v4826 = vpack.c.b16 %v4794, %v4794
        %v4827 = vpack.c.b16 %v4795, %v4795
        %v4828 = vpack.c.b16 %v4796, %v4796
        %v4829 = vpack.c.b16 %v4797, %v4797
        %v4830 = vpack.c.b16 %v4798, %v4798
        %v4831 = vpack.c.b16 %v4799, %v4799
        %v4832 = vpack.c.b16 %v4800, %v4800
        %v4833 = vpack.c.b16 %v4801, %v4801
        %v4834 = vpack.c.b16 %v4802, %v4802
        %v4835 = vpack.c.b16 %v4803, %v4803
        %v4836 = vpack.c.b16 %v4804, %v4804
        %v4837 = vpack.c.b16 %v4805, %v4805
        %v4838 = vpack.c.b16 %v4806, %v4806
        %v4839 = vpack.c.b16 %v4807, %v4807
        %v4840 = vpack.c.b16 %v4808, %v4808
        %v4841 = vpack.c.b16 %v4809, %v4809
        %v4842 = vpack.c.b16 %v4810, %v4810
        %v4843 = vpack.c.b16 %v4811, %v4811
        %v4844 = vpack.c.b16 %v4812, %v4812
        %v4845 = vpack.c.b16 %v4813, %v4813
        %v4846 = vpack.c.b16 %v4814, %v4814
        %v4847 = vpack.c.b16 %v4815, %v4815
        %vm4848 = vsmask.f32 4368
        %vm4849 = vmor %vm4652, %vm4848
        %v4851 = vshrl.u32 %v4816, 16
        %v4853 = vrot.slane %v4851, 7
        %v4854 = vshll.u32 %v4816, 16
        %v4856 = vor.u32 %v4853, %v4854
        %v4857 = vrot.slane %v4853, 4
        %v4859 = vshrl.u32 %v4817, 16
        %v4861 = vrot.slane %v4859, 7
        %v4862 = vshll.u32 %v4817, 16
        %v4864 = vor.u32 %v4861, %v4862
        %v4865 = vsel %vm4849, %v4857, %v4864
        %v4866 = vrot.slane %v4861, 4
        %v4868 = vshrl.u32 %v4818, 16
        %v4870 = vrot.slane %v4868, 7
        %v4871 = vshll.u32 %v4818, 16
        %v4873 = vor.u32 %v4870, %v4871
        %v4874 = vrot.slane %v4870, 4
        %v4876 = vshrl.u32 %v4819, 16
        %v4878 = vrot.slane %v4876, 7
        %v4879 = vshll.u32 %v4819, 16
        %v4881 = vor.u32 %v4878, %v4879
        %v4882 = vsel %vm4849, %v4874, %v4881
        %v4883 = vrot.slane %v4878, 4
        %v4885 = vshrl.u32 %v4820, 16
        %v4887 = vrot.slane %v4885, 7
        %v4888 = vshll.u32 %v4820, 16
        %v4890 = vor.u32 %v4887, %v4888
        %v4891 = vrot.slane %v4887, 4
        %v4893 = vshrl.u32 %v4821, 16
        %v4895 = vrot.slane %v4893, 7
        %v4896 = vshll.u32 %v4821, 16
        %v4898 = vor.u32 %v4895, %v4896
        %v4899 = vsel %vm4849, %v4891, %v4898
        %v4900 = vrot.slane %v4895, 4
        %v4902 = vshrl.u32 %v4822, 16
        %v4904 = vrot.slane %v4902, 7
        %v4905 = vshll.u32 %v4822, 16
        %v4907 = vor.u32 %v4904, %v4905
        %v4908 = vrot.slane %v4904, 4
        %v4910 = vshrl.u32 %v4823, 16
        %v4912 = vrot.slane %v4910, 7
        %v4913 = vshll.u32 %v4823, 16
        %v4915 = vor.u32 %v4912, %v4913
        %v4916 = vsel %vm4849, %v4908, %v4915
        %v4917 = vrot.slane %v4912, 4
        %v4919 = vshrl.u32 %v4824, 16
        %v4921 = vrot.slane %v4919, 7
        %v4922 = vshll.u32 %v4824, 16
        %v4924 = vor.u32 %v4921, %v4922
        %v4925 = vrot.slane %v4921, 4
        %v4927 = vshrl.u32 %v4825, 16
        %v4929 = vrot.slane %v4927, 7
        %v4930 = vshll.u32 %v4825, 16
        %v4932 = vor.u32 %v4929, %v4930
        %v4933 = vsel %vm4849, %v4925, %v4932
        %v4934 = vrot.slane %v4929, 4
        %v4936 = vshrl.u32 %v4826, 16
        %v4938 = vrot.slane %v4936, 7
        %v4939 = vshll.u32 %v4826, 16
        %v4941 = vor.u32 %v4938, %v4939
        %v4942 = vrot.slane %v4938, 4
        %v4944 = vshrl.u32 %v4827, 16
        %v4946 = vrot.slane %v4944, 7
        %v4947 = vshll.u32 %v4827, 16
        %v4949 = vor.u32 %v4946, %v4947
        %v4950 = vsel %vm4849, %v4942, %v4949
        %v4951 = vrot.slane %v4946, 4
        %v4953 = vshrl.u32 %v4828, 16
        %v4955 = vrot.slane %v4953, 7
        %v4956 = vshll.u32 %v4828, 16
        %v4958 = vor.u32 %v4955, %v4956
        %v4959 = vrot.slane %v4955, 4
        %v4961 = vshrl.u32 %v4829, 16
        %v4963 = vrot.slane %v4961, 7
        %v4964 = vshll.u32 %v4829, 16
        %v4966 = vor.u32 %v4963, %v4964
        %v4967 = vsel %vm4849, %v4959, %v4966
        %v4968 = vrot.slane %v4963, 4
        %v4970 = vshrl.u32 %v4830, 16
        %v4972 = vrot.slane %v4970, 7
        %v4973 = vshll.u32 %v4830, 16
        %v4975 = vor.u32 %v4972, %v4973
        %v4976 = vrot.slane %v4972, 4
        %v4978 = vshrl.u32 %v4831, 16
        %v4980 = vrot.slane %v4978, 7
        %v4981 = vshll.u32 %v4831, 16
        %v4983 = vor.u32 %v4980, %v4981
        %v4984 = vsel %vm4849, %v4976, %v4983
        %v4985 = vrot.slane %v4980, 4
        %v4987 = vshrl.u32 %v4832, 16
        %v4989 = vrot.slane %v4987, 7
        %v4990 = vshll.u32 %v4832, 16
        %v4992 = vor.u32 %v4989, %v4990
        %v4993 = vrot.slane %v4989, 4
        %v4995 = vshrl.u32 %v4833, 16
        %v4997 = vrot.slane %v4995, 7
        %v4998 = vshll.u32 %v4833, 16
        %v5000 = vor.u32 %v4997, %v4998
        %v5001 = vsel %vm4849, %v4993, %v5000
        %v5002 = vrot.slane %v4997, 4
        %v5004 = vshrl.u32 %v4834, 16
        %v5006 = vrot.slane %v5004, 7
        %v5007 = vshll.u32 %v4834, 16
        %v5009 = vor.u32 %v5006, %v5007
        %v5010 = vrot.slane %v5006, 4
        %v5012 = vshrl.u32 %v4835, 16
        %v5014 = vrot.slane %v5012, 7
        %v5015 = vshll.u32 %v4835, 16
        %v5017 = vor.u32 %v5014, %v5015
        %v5018 = vsel %vm4849, %v5010, %v5017
        %v5019 = vrot.slane %v5014, 4
        %v5021 = vshrl.u32 %v4836, 16
        %v5023 = vrot.slane %v5021, 7
        %v5024 = vshll.u32 %v4836, 16
        %v5026 = vor.u32 %v5023, %v5024
        %v5027 = vrot.slane %v5023, 4
        %v5029 = vshrl.u32 %v4837, 16
        %v5031 = vrot.slane %v5029, 7
        %v5032 = vshll.u32 %v4837, 16
        %v5034 = vor.u32 %v5031, %v5032
        %v5035 = vsel %vm4849, %v5027, %v5034
        %v5036 = vrot.slane %v5031, 4
        %v5038 = vshrl.u32 %v4838, 16
        %v5040 = vrot.slane %v5038, 7
        %v5041 = vshll.u32 %v4838, 16
        %v5043 = vor.u32 %v5040, %v5041
        %v5044 = vrot.slane %v5040, 4
        %v5046 = vshrl.u32 %v4839, 16
        %v5048 = vrot.slane %v5046, 7
        %v5049 = vshll.u32 %v4839, 16
        %v5051 = vor.u32 %v5048, %v5049
        %v5052 = vsel %vm4849, %v5044, %v5051
        %v5053 = vrot.slane %v5048, 4
        %v5055 = vshrl.u32 %v4840, 16
        %v5057 = vrot.slane %v5055, 7
        %v5058 = vshll.u32 %v4840, 16
        %v5060 = vor.u32 %v5057, %v5058
        %v5061 = vrot.slane %v5057, 4
        %v5063 = vshrl.u32 %v4841, 16
        %v5065 = vrot.slane %v5063, 7
        %v5066 = vshll.u32 %v4841, 16
        %v5068 = vor.u32 %v5065, %v5066
        %v5069 = vsel %vm4849, %v5061, %v5068
        %v5070 = vrot.slane %v5065, 4
        %v5072 = vshrl.u32 %v4842, 16
        %v5074 = vrot.slane %v5072, 7
        %v5075 = vshll.u32 %v4842, 16
        %v5077 = vor.u32 %v5074, %v5075
        %v5078 = vrot.slane %v5074, 4
        %v5080 = vshrl.u32 %v4843, 16
        %v5082 = vrot.slane %v5080, 7
        %v5083 = vshll.u32 %v4843, 16
        %v5085 = vor.u32 %v5082, %v5083
        %v5086 = vsel %vm4849, %v5078, %v5085
        %v5087 = vrot.slane %v5082, 4
        %v5089 = vshrl.u32 %v4844, 16
        %v5091 = vrot.slane %v5089, 7
        %v5092 = vshll.u32 %v4844, 16
        %v5094 = vor.u32 %v5091, %v5092
        %v5095 = vrot.slane %v5091, 4
        %v5097 = vshrl.u32 %v4845, 16
        %v5099 = vrot.slane %v5097, 7
        %v5100 = vshll.u32 %v4845, 16
        %v5102 = vor.u32 %v5099, %v5100
        %v5103 = vsel %vm4849, %v5095, %v5102
        %v5104 = vrot.slane %v5099, 4
        %v5106 = vshrl.u32 %v4846, 16
        %v5108 = vrot.slane %v5106, 7
        %v5109 = vshll.u32 %v4846, 16
        %v5111 = vor.u32 %v5108, %v5109
        %v5112 = vrot.slane %v5108, 4
        %v5114 = vshrl.u32 %v4847, 16
        %v5116 = vrot.slane %v5114, 7
        %v5117 = vshll.u32 %v4847, 16
        %v5119 = vor.u32 %v5116, %v5117
        %v5120 = vsel %vm4849, %v5112, %v5119
        %v5121 = vrot.slane %v5116, 4
        %vm5170 = vcmask 125952
        %vm5171 = vmand %vm5170, %vm4702
        %v5172 = vld [vmem:[%s4650] sm:$0xf]
        %v5173 = vsel %vm5171, %v4856, %v5172
        %5174 = vst [vmem:[%s4650] sm:$0xf] %v5173
        %5175 = vst.msk [vmem:[%s4650 + $0x4] sm:$0xf] %vm4641, %v4865
        %v5176 = vld [vmem:[%s4650 + $0x8] sm:$0x1]
        %v5177 = vsel %vm4653, %v4866, %v5176
        %5178 = vst [vmem:[%s4650 + $0x8] sm:$0x1] %v5177
        %v5179 = vld [vmem:[%s4650 + $0xc] sm:$0xf]
        %v5180 = vsel %vm5171, %v4873, %v5179
        %5181 = vst [vmem:[%s4650 + $0xc] sm:$0xf] %v5180
        %5182 = vst.msk [vmem:[%s4650 + $0x10] sm:$0xf] %vm4641, %v4882
        %v5183 = vld [vmem:[%s4650 + $0x14] sm:$0x1]
        %v5184 = vsel %vm4653, %v4883, %v5183
        %5185 = vst [vmem:[%s4650 + $0x14] sm:$0x1] %v5184
        %v5186 = vld [vmem:[%s4650 + $0x18] sm:$0xf]
        %v5187 = vsel %vm5171, %v4890, %v5186
        %5188 = vst [vmem:[%s4650 + $0x18] sm:$0xf] %v5187
        %5189 = vst.msk [vmem:[%s4650 + $0x1c] sm:$0xf] %vm4641, %v4899
        %v5190 = vld [vmem:[%s4650 + $0x20] sm:$0x1]
        %v5191 = vsel %vm4653, %v4900, %v5190
        %5192 = vst [vmem:[%s4650 + $0x20] sm:$0x1] %v5191
        %v5193 = vld [vmem:[%s4650 + $0x24] sm:$0xf]
        %v5194 = vsel %vm5171, %v4907, %v5193
        %5195 = vst [vmem:[%s4650 + $0x24] sm:$0xf] %v5194
        %5196 = vst.msk [vmem:[%s4650 + $0x28] sm:$0xf] %vm4641, %v4916
        %v5197 = vld [vmem:[%s4650 + $0x2c] sm:$0x1]
        %v5198 = vsel %vm4653, %v4917, %v5197
        %5199 = vst [vmem:[%s4650 + $0x2c] sm:$0x1] %v5198
        %v5200 = vld [vmem:[%s4650 + $0x30] sm:$0xf]
        %v5201 = vsel %vm5171, %v4924, %v5200
        %5202 = vst [vmem:[%s4650 + $0x30] sm:$0xf] %v5201
        %5203 = vst.msk [vmem:[%s4650 + $0x34] sm:$0xf] %vm4641, %v4933
        %v5204 = vld [vmem:[%s4650 + $0x38] sm:$0x1]
        %v5205 = vsel %vm4653, %v4934, %v5204
        %5206 = vst [vmem:[%s4650 + $0x38] sm:$0x1] %v5205
        %v5207 = vld [vmem:[%s4650 + $0x3c] sm:$0xf]
        %v5208 = vsel %vm5171, %v4941, %v5207
        %5209 = vst [vmem:[%s4650 + $0x3c] sm:$0xf] %v5208
        %5210 = vst.msk [vmem:[%s4650 + $0x40] sm:$0xf] %vm4641, %v4950
        %v5211 = vld [vmem:[%s4650 + $0x44] sm:$0x1]
        %v5212 = vsel %vm4653, %v4951, %v5211
        %5213 = vst [vmem:[%s4650 + $0x44] sm:$0x1] %v5212
        %v5214 = vld [vmem:[%s4650 + $0x48] sm:$0xf]
        %v5215 = vsel %vm5171, %v4958, %v5214
        %5216 = vst [vmem:[%s4650 + $0x48] sm:$0xf] %v5215
        %5217 = vst.msk [vmem:[%s4650 + $0x4c] sm:$0xf] %vm4641, %v4967
        %v5218 = vld [vmem:[%s4650 + $0x50] sm:$0x1]
        %v5219 = vsel %vm4653, %v4968, %v5218
        %5220 = vst [vmem:[%s4650 + $0x50] sm:$0x1] %v5219
        %v5221 = vld [vmem:[%s4650 + $0x54] sm:$0xf]
        %v5222 = vsel %vm5171, %v4975, %v5221
        %5223 = vst [vmem:[%s4650 + $0x54] sm:$0xf] %v5222
        %5224 = vst.msk [vmem:[%s4650 + $0x58] sm:$0xf] %vm4641, %v4984
        %v5225 = vld [vmem:[%s4650 + $0x5c] sm:$0x1]
        %v5226 = vsel %vm4653, %v4985, %v5225
        %5227 = vst [vmem:[%s4650 + $0x5c] sm:$0x1] %v5226
        %v5228 = vld [vmem:[%s4650 + $0x60] sm:$0xf]
        %v5229 = vsel %vm5171, %v4992, %v5228
        %5230 = vst [vmem:[%s4650 + $0x60] sm:$0xf] %v5229
        %5231 = vst.msk [vmem:[%s4650 + $0x64] sm:$0xf] %vm4641, %v5001
        %v5232 = vld [vmem:[%s4650 + $0x68] sm:$0x1]
        %v5233 = vsel %vm4653, %v5002, %v5232
        %5234 = vst [vmem:[%s4650 + $0x68] sm:$0x1] %v5233
        %v5235 = vld [vmem:[%s4650 + $0x6c] sm:$0xf]
        %v5236 = vsel %vm5171, %v5009, %v5235
        %5237 = vst [vmem:[%s4650 + $0x6c] sm:$0xf] %v5236
        %5238 = vst.msk [vmem:[%s4650 + $0x70] sm:$0xf] %vm4641, %v5018
        %v5239 = vld [vmem:[%s4650 + $0x74] sm:$0x1]
        %v5240 = vsel %vm4653, %v5019, %v5239
        %5241 = vst [vmem:[%s4650 + $0x74] sm:$0x1] %v5240
        %v5242 = vld [vmem:[%s4650 + $0x78] sm:$0xf]
        %v5243 = vsel %vm5171, %v5026, %v5242
        %5244 = vst [vmem:[%s4650 + $0x78] sm:$0xf] %v5243
        %5245 = vst.msk [vmem:[%s4650 + $0x7c] sm:$0xf] %vm4641, %v5035
        %v5246 = vld [vmem:[%s4650 + $0x80] sm:$0x1]
        %v5247 = vsel %vm4653, %v5036, %v5246
        %5248 = vst [vmem:[%s4650 + $0x80] sm:$0x1] %v5247
        %v5249 = vld [vmem:[%s4650 + $0x84] sm:$0xf]
        %v5250 = vsel %vm5171, %v5043, %v5249
        %5251 = vst [vmem:[%s4650 + $0x84] sm:$0xf] %v5250
        %5252 = vst.msk [vmem:[%s4650 + $0x88] sm:$0xf] %vm4641, %v5052
        %v5253 = vld [vmem:[%s4650 + $0x8c] sm:$0x1]
        %v5254 = vsel %vm4653, %v5053, %v5253
        %5255 = vst [vmem:[%s4650 + $0x8c] sm:$0x1] %v5254
        %v5256 = vld [vmem:[%s4650 + $0x90] sm:$0xf]
        %v5257 = vsel %vm5171, %v5060, %v5256
        %5258 = vst [vmem:[%s4650 + $0x90] sm:$0xf] %v5257
        %5259 = vst.msk [vmem:[%s4650 + $0x94] sm:$0xf] %vm4641, %v5069
        %v5260 = vld [vmem:[%s4650 + $0x98] sm:$0x1]
        %v5261 = vsel %vm4653, %v5070, %v5260
        %5262 = vst [vmem:[%s4650 + $0x98] sm:$0x1] %v5261
        %v5263 = vld [vmem:[%s4650 + $0x9c] sm:$0xf]
        %v5264 = vsel %vm5171, %v5077, %v5263
        %5265 = vst [vmem:[%s4650 + $0x9c] sm:$0xf] %v5264
        %5266 = vst.msk [vmem:[%s4650 + $0xa0] sm:$0xf] %vm4641, %v5086
        %v5267 = vld [vmem:[%s4650 + $0xa4] sm:$0x1]
        %v5268 = vsel %vm4653, %v5087, %v5267
        %5269 = vst [vmem:[%s4650 + $0xa4] sm:$0x1] %v5268
        %v5270 = vld [vmem:[%s4650 + $0xa8] sm:$0xf]
        %v5271 = vsel %vm5171, %v5094, %v5270
        %5272 = vst [vmem:[%s4650 + $0xa8] sm:$0xf] %v5271
        %5273 = vst.msk [vmem:[%s4650 + $0xac] sm:$0xf] %vm4641, %v5103
        %v5274 = vld [vmem:[%s4650 + $0xb0] sm:$0x1]
        %v5275 = vsel %vm4653, %v5104, %v5274
        %5276 = vst [vmem:[%s4650 + $0xb0] sm:$0x1] %v5275
        %v5277 = vld [vmem:[%s4650 + $0xb4] sm:$0xf]
        %v5278 = vsel %vm5171, %v5111, %v5277
        %5279 = vst [vmem:[%s4650 + $0xb4] sm:$0xf] %v5278
        %5280 = vst.msk [vmem:[%s4650 + $0xb8] sm:$0xf] %vm4641, %v5120
        %v5281 = vld [vmem:[%s4650 + $0xbc] sm:$0x1]
        %v5282 = vsel %vm4653, %v5121, %v5281
        %5283 = vst [vmem:[%s4650 + $0xbc] sm:$0x1] %v5282
        %v5284 = vld [vmem:[#allocation2] sm:$0xf]
        %v5285 = vld [vmem:[#allocation2 + $0x4] sm:$0xf]
        %v5286 = vld [vmem:[#allocation2 + $0xc] sm:$0xf]
        %v5287 = vld [vmem:[#allocation2 + $0x10] sm:$0xf]
        %v5288 = vld [vmem:[#allocation2 + $0x18] sm:$0xf]
        %v5289 = vld [vmem:[#allocation2 + $0x1c] sm:$0xf]
        %v5290 = vld [vmem:[#allocation2 + $0x24] sm:$0xf]
        %v5291 = vld [vmem:[#allocation2 + $0x28] sm:$0xf]
        %v5292 = vld [vmem:[#allocation2 + $0x30] sm:$0xf]
        %v5293 = vld [vmem:[#allocation2 + $0x34] sm:$0xf]
        %v5294 = vld [vmem:[#allocation2 + $0x3c] sm:$0xf]
        %v5295 = vld [vmem:[#allocation2 + $0x40] sm:$0xf]
        %v5296 = vld [vmem:[#allocation2 + $0x48] sm:$0xf]
        %v5297 = vld [vmem:[#allocation2 + $0x4c] sm:$0xf]
        %v5298 = vld [vmem:[#allocation2 + $0x54] sm:$0xf]
        %v5299 = vld [vmem:[#allocation2 + $0x58] sm:$0xf]
        %v5300 = vld [vmem:[#allocation2 + $0x60] sm:$0xf]
        %v5301 = vld [vmem:[#allocation2 + $0x64] sm:$0xf]
        %v5302 = vld [vmem:[#allocation2 + $0x6c] sm:$0xf]
        %v5303 = vld [vmem:[#allocation2 + $0x70] sm:$0xf]
        %v5304 = vld [vmem:[#allocation2 + $0x78] sm:$0xf]
        %v5305 = vld [vmem:[#allocation2 + $0x7c] sm:$0xf]
        %v5306 = vld [vmem:[#allocation2 + $0x84] sm:$0xf]
        %v5307 = vld [vmem:[#allocation2 + $0x88] sm:$0xf]
        %v5308 = vld [vmem:[#allocation2 + $0x90] sm:$0xf]
        %v5309 = vld [vmem:[#allocation2 + $0x94] sm:$0xf]
        %v5310 = vld [vmem:[#allocation2 + $0x9c] sm:$0xf]
        %v5311 = vld [vmem:[#allocation2 + $0xa0] sm:$0xf]
        %v5312 = vld [vmem:[#allocation2 + $0xa8] sm:$0xf]
        %v5313 = vld [vmem:[#allocation2 + $0xac] sm:$0xf]
        %v5314 = vld [vmem:[#allocation2 + $0xb4] sm:$0xf]
        %v5315 = vld [vmem:[#allocation2 + $0xb8] sm:$0xf]
        %v5316 = vld [vmem:[#allocation2 + $0x8] sm:$0x1]
        %v5317 = vld [vmem:[#allocation2 + $0x14] sm:$0x1]
        %v5318 = vld [vmem:[#allocation2 + $0x20] sm:$0x1]
        %v5319 = vld [vmem:[#allocation2 + $0x2c] sm:$0x1]
        %v5320 = vld [vmem:[#allocation2 + $0x38] sm:$0x1]
        %v5321 = vld [vmem:[#allocation2 + $0x44] sm:$0x1]
        %v5322 = vld [vmem:[#allocation2 + $0x50] sm:$0x1]
        %v5323 = vld [vmem:[#allocation2 + $0x5c] sm:$0x1]
        %v5324 = vld [vmem:[#allocation2 + $0x68] sm:$0x1]
        %v5325 = vld [vmem:[#allocation2 + $0x74] sm:$0x1]
        %v5326 = vld [vmem:[#allocation2 + $0x80] sm:$0x1]
        %v5327 = vld [vmem:[#allocation2 + $0x8c] sm:$0x1]
        %v5328 = vld [vmem:[#allocation2 + $0x98] sm:$0x1]
        %v5329 = vld [vmem:[#allocation2 + $0xa4] sm:$0x1]
        %v5330 = vld [vmem:[#allocation2 + $0xb0] sm:$0x1]
        %v5331 = vld [vmem:[#allocation2 + $0xbc] sm:$0x1]
        %v5332 = vld [vmem:[#allocation2] sm:$0xe]
        %v5333 = vld [vmem:[#allocation2 + $0xc] sm:$0xe]
        %v5334 = vld [vmem:[#allocation2 + $0x18] sm:$0xe]
        %v5335 = vld [vmem:[#allocation2 + $0x24] sm:$0xe]
        %v5336 = vld [vmem:[#allocation2 + $0x30] sm:$0xe]
        %v5337 = vld [vmem:[#allocation2 + $0x3c] sm:$0xe]
        %v5338 = vld [vmem:[#allocation2 + $0x48] sm:$0xe]
        %v5339 = vld [vmem:[#allocation2 + $0x54] sm:$0xe]
        %v5340 = vld [vmem:[#allocation2 + $0x60] sm:$0xe]
        %v5341 = vld [vmem:[#allocation2 + $0x6c] sm:$0xe]
        %v5342 = vld [vmem:[#allocation2 + $0x78] sm:$0xe]
        %v5343 = vld [vmem:[#allocation2 + $0x84] sm:$0xe]
        %v5344 = vld [vmem:[#allocation2 + $0x90] sm:$0xe]
        %v5345 = vld [vmem:[#allocation2 + $0x9c] sm:$0xe]
        %v5346 = vld [vmem:[#allocation2 + $0xa8] sm:$0xe]
        %v5347 = vld [vmem:[#allocation2 + $0xb4] sm:$0xe]
        %v5348 = vld [vmem:[%s4650] sm:$0xf]
        %v5349 = vld [vmem:[%s4650 + $0x4] sm:$0xf]
        %v5350 = vld [vmem:[%s4650 + $0xc] sm:$0xf]
        %v5351 = vld [vmem:[%s4650 + $0x10] sm:$0xf]
        %v5352 = vld [vmem:[%s4650 + $0x18] sm:$0xf]
        %v5353 = vld [vmem:[%s4650 + $0x1c] sm:$0xf]
        %v5354 = vld [vmem:[%s4650 + $0x24] sm:$0xf]
        %v5355 = vld [vmem:[%s4650 + $0x28] sm:$0xf]
        %v5356 = vld [vmem:[%s4650 + $0x30] sm:$0xf]
        %v5357 = vld [vmem:[%s4650 + $0x34] sm:$0xf]
        %v5358 = vld [vmem:[%s4650 + $0x3c] sm:$0xf]
        %v5359 = vld [vmem:[%s4650 + $0x40] sm:$0xf]
        %v5360 = vld [vmem:[%s4650 + $0x48] sm:$0xf]
        %v5361 = vld [vmem:[%s4650 + $0x4c] sm:$0xf]
        %v5362 = vld [vmem:[%s4650 + $0x54] sm:$0xf]
        %v5363 = vld [vmem:[%s4650 + $0x58] sm:$0xf]
        %v5364 = vld [vmem:[%s4650 + $0x60] sm:$0xf]
        %v5365 = vld [vmem:[%s4650 + $0x64] sm:$0xf]
        %v5366 = vld [vmem:[%s4650 + $0x6c] sm:$0xf]
        %v5367 = vld [vmem:[%s4650 + $0x70] sm:$0xf]
        %v5368 = vld [vmem:[%s4650 + $0x78] sm:$0xf]
        %v5369 = vld [vmem:[%s4650 + $0x7c] sm:$0xf]
        %v5370 = vld [vmem:[%s4650 + $0x84] sm:$0xf]
        %v5371 = vld [vmem:[%s4650 + $0x88] sm:$0xf]
        %v5372 = vld [vmem:[%s4650 + $0x90] sm:$0xf]
        %v5373 = vld [vmem:[%s4650 + $0x94] sm:$0xf]
        %v5374 = vld [vmem:[%s4650 + $0x9c] sm:$0xf]
        %v5375 = vld [vmem:[%s4650 + $0xa0] sm:$0xf]
        %v5376 = vld [vmem:[%s4650 + $0xa8] sm:$0xf]
        %v5377 = vld [vmem:[%s4650 + $0xac] sm:$0xf]
        %v5378 = vld [vmem:[%s4650 + $0xb4] sm:$0xf]
        %v5379 = vld [vmem:[%s4650 + $0xb8] sm:$0xf]
        %v5380 = vld [vmem:[%s4650 + $0x8] sm:$0x1]
        %v5381 = vld [vmem:[%s4650 + $0x14] sm:$0x1]
        %v5382 = vld [vmem:[%s4650 + $0x20] sm:$0x1]
        %v5383 = vld [vmem:[%s4650 + $0x2c] sm:$0x1]
        %v5384 = vld [vmem:[%s4650 + $0x38] sm:$0x1]
        %v5385 = vld [vmem:[%s4650 + $0x44] sm:$0x1]
        %v5386 = vld [vmem:[%s4650 + $0x50] sm:$0x1]
        %v5387 = vld [vmem:[%s4650 + $0x5c] sm:$0x1]
        %v5388 = vld [vmem:[%s4650 + $0x68] sm:$0x1]
        %v5389 = vld [vmem:[%s4650 + $0x74] sm:$0x1]
        %v5390 = vld [vmem:[%s4650 + $0x80] sm:$0x1]
        %v5391 = vld [vmem:[%s4650 + $0x8c] sm:$0x1]
        %v5392 = vld [vmem:[%s4650 + $0x98] sm:$0x1]
        %v5393 = vld [vmem:[%s4650 + $0xa4] sm:$0x1]
        %v5394 = vld [vmem:[%s4650 + $0xb0] sm:$0x1]
        %v5395 = vld [vmem:[%s4650 + $0xbc] sm:$0x1]
        %v5396 = vld [vmem:[%s4650] sm:$0xe]
        %v5397 = vld [vmem:[%s4650 + $0xc] sm:$0xe]
        %v5398 = vld [vmem:[%s4650 + $0x18] sm:$0xe]
        %v5399 = vld [vmem:[%s4650 + $0x24] sm:$0xe]
        %v5400 = vld [vmem:[%s4650 + $0x30] sm:$0xe]
        %v5401 = vld [vmem:[%s4650 + $0x3c] sm:$0xe]
        %v5402 = vld [vmem:[%s4650 + $0x48] sm:$0xe]
        %v5403 = vld [vmem:[%s4650 + $0x54] sm:$0xe]
        %v5404 = vld [vmem:[%s4650 + $0x60] sm:$0xe]
        %v5405 = vld [vmem:[%s4650 + $0x6c] sm:$0xe]
        %v5406 = vld [vmem:[%s4650 + $0x78] sm:$0xe]
        %v5407 = vld [vmem:[%s4650 + $0x84] sm:$0xe]
        %v5408 = vld [vmem:[%s4650 + $0x90] sm:$0xe]
        %v5409 = vld [vmem:[%s4650 + $0x9c] sm:$0xe]
        %v5410 = vld [vmem:[%s4650 + $0xa8] sm:$0xe]
        %v5411 = vld [vmem:[%s4650 + $0xb4] sm:$0xe]
        %s5412 = scalar_lea.vmem [#allocation2], 24
        %v5413 = vld [vmem:[%s5412] sm:$0xf]
        %v5414 = vld [vmem:[%s5412 + $0x4] sm:$0xf]
        %v5415 = vld [vmem:[%s5412 + $0xc] sm:$0xf]
        %v5416 = vld [vmem:[%s5412 + $0x10] sm:$0xf]
        %v5417 = vld [vmem:[%s5412 + $0x18] sm:$0xf]
        %v5418 = vld [vmem:[%s5412 + $0x1c] sm:$0xf]
        %v5419 = vld [vmem:[%s5412 + $0x24] sm:$0xf]
        %v5420 = vld [vmem:[%s5412 + $0x28] sm:$0xf]
        %v5421 = vld [vmem:[%s5412 + $0x30] sm:$0xf]
        %v5422 = vld [vmem:[%s5412 + $0x34] sm:$0xf]
        %v5423 = vld [vmem:[%s5412 + $0x3c] sm:$0xf]
        %v5424 = vld [vmem:[%s5412 + $0x40] sm:$0xf]
        %v5425 = vld [vmem:[%s5412 + $0x48] sm:$0xf]
        %v5426 = vld [vmem:[%s5412 + $0x4c] sm:$0xf]
        %v5427 = vld [vmem:[%s5412 + $0x54] sm:$0xf]
        %v5428 = vld [vmem:[%s5412 + $0x58] sm:$0xf]
        %v5429 = vld [vmem:[%s5412 + $0x60] sm:$0xf]
        %v5430 = vld [vmem:[%s5412 + $0x64] sm:$0xf]
        %v5431 = vld [vmem:[%s5412 + $0x6c] sm:$0xf]
        %v5432 = vld [vmem:[%s5412 + $0x70] sm:$0xf]
        %v5433 = vld [vmem:[%s5412 + $0x78] sm:$0xf]
        %v5434 = vld [vmem:[%s5412 + $0x7c] sm:$0xf]
        %v5435 = vld [vmem:[%s5412 + $0x84] sm:$0xf]
        %v5436 = vld [vmem:[%s5412 + $0x88] sm:$0xf]
        %v5437 = vld [vmem:[%s5412 + $0x90] sm:$0xf]
        %v5438 = vld [vmem:[%s5412 + $0x94] sm:$0xf]
        %v5439 = vld [vmem:[%s5412 + $0x9c] sm:$0xf]
        %v5440 = vld [vmem:[%s5412 + $0xa0] sm:$0xf]
        %v5441 = vld [vmem:[%s5412 + $0xa8] sm:$0xf]
        %v5442 = vld [vmem:[%s5412 + $0xac] sm:$0xf]
        %v5443 = vld [vmem:[%s5412 + $0xb4] sm:$0xf]
        %v5444 = vld [vmem:[%s5412 + $0xb8] sm:$0xf]
        %v5445 = vld [vmem:[%s5412 + $0x8] sm:$0x1]
        %v5446 = vld [vmem:[%s5412 + $0x14] sm:$0x1]
        %v5447 = vld [vmem:[%s5412 + $0x20] sm:$0x1]
        %v5448 = vld [vmem:[%s5412 + $0x2c] sm:$0x1]
        %v5449 = vld [vmem:[%s5412 + $0x38] sm:$0x1]
        %v5450 = vld [vmem:[%s5412 + $0x44] sm:$0x1]
        %v5451 = vld [vmem:[%s5412 + $0x50] sm:$0x1]
        %v5452 = vld [vmem:[%s5412 + $0x5c] sm:$0x1]
        %v5453 = vld [vmem:[%s5412 + $0x68] sm:$0x1]
        %v5454 = vld [vmem:[%s5412 + $0x74] sm:$0x1]
        %v5455 = vld [vmem:[%s5412 + $0x80] sm:$0x1]
        %v5456 = vld [vmem:[%s5412 + $0x8c] sm:$0x1]
        %v5457 = vld [vmem:[%s5412 + $0x98] sm:$0x1]
        %v5458 = vld [vmem:[%s5412 + $0xa4] sm:$0x1]
        %v5459 = vld [vmem:[%s5412 + $0xb0] sm:$0x1]
        %v5460 = vld [vmem:[%s5412 + $0xbc] sm:$0x1]
        %v5461 = vld [vmem:[%s5412] sm:$0xe]
        %v5462 = vld [vmem:[%s5412 + $0xc] sm:$0xe]
        %v5463 = vld [vmem:[%s5412 + $0x18] sm:$0xe]
        %v5464 = vld [vmem:[%s5412 + $0x24] sm:$0xe]
        %v5465 = vld [vmem:[%s5412 + $0x30] sm:$0xe]
        %v5466 = vld [vmem:[%s5412 + $0x3c] sm:$0xe]
        %v5467 = vld [vmem:[%s5412 + $0x48] sm:$0xe]
        %v5468 = vld [vmem:[%s5412 + $0x54] sm:$0xe]
        %v5469 = vld [vmem:[%s5412 + $0x60] sm:$0xe]
        %v5470 = vld [vmem:[%s5412 + $0x6c] sm:$0xe]
        %v5471 = vld [vmem:[%s5412 + $0x78] sm:$0xe]
        %v5472 = vld [vmem:[%s5412 + $0x84] sm:$0xe]
        %v5473 = vld [vmem:[%s5412 + $0x90] sm:$0xe]
        %v5474 = vld [vmem:[%s5412 + $0x9c] sm:$0xe]
        %v5475 = vld [vmem:[%s5412 + $0xa8] sm:$0xe]
        %v5476 = vld [vmem:[%s5412 + $0xb4] sm:$0xe]
        %v5509 = vunpack.c.l.b16 %v5284
        %v5510 = vunpack.c.l.b16 %v5285
        %v5511 = vunpack.c.l.b16 %v5286
        %v5512 = vunpack.c.l.b16 %v5287
        %v5513 = vunpack.c.l.b16 %v5288
        %v5514 = vunpack.c.l.b16 %v5289
        %v5515 = vunpack.c.l.b16 %v5290
        %v5516 = vunpack.c.l.b16 %v5291
        %v5517 = vunpack.c.l.b16 %v5292
        %v5518 = vunpack.c.l.b16 %v5293
        %v5519 = vunpack.c.l.b16 %v5294
        %v5520 = vunpack.c.l.b16 %v5295
        %v5521 = vunpack.c.l.b16 %v5296
        %v5522 = vunpack.c.l.b16 %v5297
        %v5523 = vunpack.c.l.b16 %v5298
        %v5524 = vunpack.c.l.b16 %v5299
        %v5525 = vunpack.c.l.b16 %v5300
        %v5526 = vunpack.c.l.b16 %v5301
        %v5527 = vunpack.c.l.b16 %v5302
        %v5528 = vunpack.c.l.b16 %v5303
        %v5529 = vunpack.c.l.b16 %v5304
        %v5530 = vunpack.c.l.b16 %v5305
        %v5531 = vunpack.c.l.b16 %v5306
        %v5532 = vunpack.c.l.b16 %v5307
        %v5533 = vunpack.c.l.b16 %v5308
        %v5534 = vunpack.c.l.b16 %v5309
        %v5535 = vunpack.c.l.b16 %v5310
        %v5536 = vunpack.c.l.b16 %v5311
        %v5537 = vunpack.c.l.b16 %v5312
        %v5538 = vunpack.c.l.b16 %v5313
        %v5539 = vunpack.c.l.b16 %v5314
        %v5540 = vunpack.c.l.b16 %v5315
        %v5541 = vpack.c.b16 %v5510, %v5509
        %v5542 = vpack.c.b16 %v5512, %v5511
        %v5543 = vpack.c.b16 %v5514, %v5513
        %v5544 = vpack.c.b16 %v5516, %v5515
        %v5545 = vpack.c.b16 %v5518, %v5517
        %v5546 = vpack.c.b16 %v5520, %v5519
        %v5547 = vpack.c.b16 %v5522, %v5521
        %v5548 = vpack.c.b16 %v5524, %v5523
        %v5549 = vpack.c.b16 %v5526, %v5525
        %v5550 = vpack.c.b16 %v5528, %v5527
        %v5551 = vpack.c.b16 %v5530, %v5529
        %v5552 = vpack.c.b16 %v5532, %v5531
        %v5553 = vpack.c.b16 %v5534, %v5533
        %v5554 = vpack.c.b16 %v5536, %v5535
        %v5555 = vpack.c.b16 %v5538, %v5537
        %v5556 = vpack.c.b16 %v5540, %v5539
        %v5573 = vunpack.c.l.b16 %v5316
        %v5574 = vunpack.c.l.b16 %v5317
        %v5575 = vunpack.c.l.b16 %v5318
        %v5576 = vunpack.c.l.b16 %v5319
        %v5577 = vunpack.c.l.b16 %v5320
        %v5578 = vunpack.c.l.b16 %v5321
        %v5579 = vunpack.c.l.b16 %v5322
        %v5580 = vunpack.c.l.b16 %v5323
        %v5581 = vunpack.c.l.b16 %v5324
        %v5582 = vunpack.c.l.b16 %v5325
        %v5583 = vunpack.c.l.b16 %v5326
        %v5584 = vunpack.c.l.b16 %v5327
        %v5585 = vunpack.c.l.b16 %v5328
        %v5586 = vunpack.c.l.b16 %v5329
        %v5587 = vunpack.c.l.b16 %v5330
        %v5588 = vunpack.c.l.b16 %v5331
        %v5589 = vpack.c.b16 %v5573, %v5573
        %v5590 = vpack.c.b16 %v5574, %v5574
        %v5591 = vpack.c.b16 %v5575, %v5575
        %v5592 = vpack.c.b16 %v5576, %v5576
        %v5593 = vpack.c.b16 %v5577, %v5577
        %v5594 = vpack.c.b16 %v5578, %v5578
        %v5595 = vpack.c.b16 %v5579, %v5579
        %v5596 = vpack.c.b16 %v5580, %v5580
        %v5597 = vpack.c.b16 %v5581, %v5581
        %v5598 = vpack.c.b16 %v5582, %v5582
        %v5599 = vpack.c.b16 %v5583, %v5583
        %v5600 = vpack.c.b16 %v5584, %v5584
        %v5601 = vpack.c.b16 %v5585, %v5585
        %v5602 = vpack.c.b16 %v5586, %v5586
        %v5603 = vpack.c.b16 %v5587, %v5587
        %v5604 = vpack.c.b16 %v5588, %v5588
        %v5606 = vshrl.u32 %v5541, 16
        %v5608 = vshll.u32 %v5541, 16
        %v5610 = vrot.slane %v5608, 1
        %v5611 = vor.u32 %v5606, %v5610
        %v5613 = vshll.u32 %v5589, 16
        %v5615 = vrot.slane %v5613, 1
        %v5616 = vsel %vm735, %v5611, %v5615
        %v5618 = vshrl.u32 %v5542, 16
        %v5620 = vshll.u32 %v5542, 16
        %v5622 = vrot.slane %v5620, 1
        %v5623 = vor.u32 %v5618, %v5622
        %v5625 = vshll.u32 %v5590, 16
        %v5627 = vrot.slane %v5625, 1
        %v5628 = vsel %vm735, %v5623, %v5627
        %v5630 = vshrl.u32 %v5543, 16
        %v5632 = vshll.u32 %v5543, 16
        %v5634 = vrot.slane %v5632, 1
        %v5635 = vor.u32 %v5630, %v5634
        %v5637 = vshll.u32 %v5591, 16
        %v5639 = vrot.slane %v5637, 1
        %v5640 = vsel %vm735, %v5635, %v5639
        %v5642 = vshrl.u32 %v5544, 16
        %v5644 = vshll.u32 %v5544, 16
        %v5646 = vrot.slane %v5644, 1
        %v5647 = vor.u32 %v5642, %v5646
        %v5649 = vshll.u32 %v5592, 16
        %v5651 = vrot.slane %v5649, 1
        %v5652 = vsel %vm735, %v5647, %v5651
        %v5654 = vshrl.u32 %v5545, 16
        %v5656 = vshll.u32 %v5545, 16
        %v5658 = vrot.slane %v5656, 1
        %v5659 = vor.u32 %v5654, %v5658
        %v5661 = vshll.u32 %v5593, 16
        %v5663 = vrot.slane %v5661, 1
        %v5664 = vsel %vm735, %v5659, %v5663
        %v5666 = vshrl.u32 %v5546, 16
        %v5668 = vshll.u32 %v5546, 16
        %v5670 = vrot.slane %v5668, 1
        %v5671 = vor.u32 %v5666, %v5670
        %v5673 = vshll.u32 %v5594, 16
        %v5675 = vrot.slane %v5673, 1
        %v5676 = vsel %vm735, %v5671, %v5675
        %v5678 = vshrl.u32 %v5547, 16
        %v5680 = vshll.u32 %v5547, 16
        %v5682 = vrot.slane %v5680, 1
        %v5683 = vor.u32 %v5678, %v5682
        %v5685 = vshll.u32 %v5595, 16
        %v5687 = vrot.slane %v5685, 1
        %v5688 = vsel %vm735, %v5683, %v5687
        %v5690 = vshrl.u32 %v5548, 16
        %v5692 = vshll.u32 %v5548, 16
        %v5694 = vrot.slane %v5692, 1
        %v5695 = vor.u32 %v5690, %v5694
        %v5697 = vshll.u32 %v5596, 16
        %v5699 = vrot.slane %v5697, 1
        %v5700 = vsel %vm735, %v5695, %v5699
        %v5702 = vshrl.u32 %v5549, 16
        %v5704 = vshll.u32 %v5549, 16
        %v5706 = vrot.slane %v5704, 1
        %v5707 = vor.u32 %v5702, %v5706
        %v5709 = vshll.u32 %v5597, 16
        %v5711 = vrot.slane %v5709, 1
        %v5712 = vsel %vm735, %v5707, %v5711
        %v5714 = vshrl.u32 %v5550, 16
        %v5716 = vshll.u32 %v5550, 16
        %v5718 = vrot.slane %v5716, 1
        %v5719 = vor.u32 %v5714, %v5718
        %v5721 = vshll.u32 %v5598, 16
        %v5723 = vrot.slane %v5721, 1
        %v5724 = vsel %vm735, %v5719, %v5723
        %v5726 = vshrl.u32 %v5551, 16
        %v5728 = vshll.u32 %v5551, 16
        %v5730 = vrot.slane %v5728, 1
        %v5731 = vor.u32 %v5726, %v5730
        %v5733 = vshll.u32 %v5599, 16
        %v5735 = vrot.slane %v5733, 1
        %v5736 = vsel %vm735, %v5731, %v5735
        %v5738 = vshrl.u32 %v5552, 16
        %v5740 = vshll.u32 %v5552, 16
        %v5742 = vrot.slane %v5740, 1
        %v5743 = vor.u32 %v5738, %v5742
        %v5745 = vshll.u32 %v5600, 16
        %v5747 = vrot.slane %v5745, 1
        %v5748 = vsel %vm735, %v5743, %v5747
        %v5750 = vshrl.u32 %v5553, 16
        %v5752 = vshll.u32 %v5553, 16
        %v5754 = vrot.slane %v5752, 1
        %v5755 = vor.u32 %v5750, %v5754
        %v5757 = vshll.u32 %v5601, 16
        %v5759 = vrot.slane %v5757, 1
        %v5760 = vsel %vm735, %v5755, %v5759
        %v5762 = vshrl.u32 %v5554, 16
        %v5764 = vshll.u32 %v5554, 16
        %v5766 = vrot.slane %v5764, 1
        %v5767 = vor.u32 %v5762, %v5766
        %v5769 = vshll.u32 %v5602, 16
        %v5771 = vrot.slane %v5769, 1
        %v5772 = vsel %vm735, %v5767, %v5771
        %v5774 = vshrl.u32 %v5555, 16
        %v5776 = vshll.u32 %v5555, 16
        %v5778 = vrot.slane %v5776, 1
        %v5779 = vor.u32 %v5774, %v5778
        %v5781 = vshll.u32 %v5603, 16
        %v5783 = vrot.slane %v5781, 1
        %v5784 = vsel %vm735, %v5779, %v5783
        %v5786 = vshrl.u32 %v5556, 16
        %v5788 = vshll.u32 %v5556, 16
        %v5790 = vrot.slane %v5788, 1
        %v5791 = vor.u32 %v5786, %v5790
        %v5793 = vshll.u32 %v5604, 16
        %v5795 = vrot.slane %v5793, 1
        %v5796 = vsel %vm735, %v5791, %v5795
        %5797 = vrot.lane.b32.xlu0 %v5616, 16
        %v5798 = vpop.permute.xlu0 %5797
        %5799 = vrot.lane.b32.xlu0 %v5628, 16
        %v5800 = vpop.permute.xlu0 %5799
        %5801 = vrot.lane.b32.xlu0 %v5640, 16
        %v5802 = vpop.permute.xlu0 %5801
        %5803 = vrot.lane.b32.xlu0 %v5652, 16
        %v5804 = vpop.permute.xlu0 %5803
        %5805 = vrot.lane.b32.xlu0 %v5664, 16
        %v5806 = vpop.permute.xlu0 %5805
        %5807 = vrot.lane.b32.xlu0 %v5676, 16
        %v5808 = vpop.permute.xlu0 %5807
        %5809 = vrot.lane.b32.xlu0 %v5688, 16
        %v5810 = vpop.permute.xlu0 %5809
        %5811 = vrot.lane.b32.xlu0 %v5700, 16
        %v5812 = vpop.permute.xlu0 %5811
        %5813 = vrot.lane.b32.xlu0 %v5712, 16
        %v5814 = vpop.permute.xlu0 %5813
        %5815 = vrot.lane.b32.xlu0 %v5724, 16
        %v5816 = vpop.permute.xlu0 %5815
        %5817 = vrot.lane.b32.xlu0 %v5736, 16
        %v5818 = vpop.permute.xlu0 %5817
        %5819 = vrot.lane.b32.xlu0 %v5748, 16
        %v5820 = vpop.permute.xlu0 %5819
        %5821 = vrot.lane.b32.xlu0 %v5760, 16
        %v5822 = vpop.permute.xlu0 %5821
        %5823 = vrot.lane.b32.xlu0 %v5772, 16
        %v5824 = vpop.permute.xlu0 %5823
        %5825 = vrot.lane.b32.xlu0 %v5784, 16
        %v5826 = vpop.permute.xlu0 %5825
        %5827 = vrot.lane.b32.xlu0 %v5796, 16
        %v5828 = vpop.permute.xlu0 %5827
        %v5845 = vunpack.c.l.b16 %v5332
        %v5846 = vunpack.c.l.b16 %v5333
        %v5847 = vunpack.c.l.b16 %v5334
        %v5848 = vunpack.c.l.b16 %v5335
        %v5849 = vunpack.c.l.b16 %v5336
        %v5850 = vunpack.c.l.b16 %v5337
        %v5851 = vunpack.c.l.b16 %v5338
        %v5852 = vunpack.c.l.b16 %v5339
        %v5853 = vunpack.c.l.b16 %v5340
        %v5854 = vunpack.c.l.b16 %v5341
        %v5855 = vunpack.c.l.b16 %v5342
        %v5856 = vunpack.c.l.b16 %v5343
        %v5857 = vunpack.c.l.b16 %v5344
        %v5858 = vunpack.c.l.b16 %v5345
        %v5859 = vunpack.c.l.b16 %v5346
        %v5860 = vunpack.c.l.b16 %v5347
        %v5861 = vpack.c.b16 %v5510, %v5845
        %v5862 = vpack.c.b16 %v5512, %v5846
        %v5863 = vpack.c.b16 %v5514, %v5847
        %v5864 = vpack.c.b16 %v5516, %v5848
        %v5865 = vpack.c.b16 %v5518, %v5849
        %v5866 = vpack.c.b16 %v5520, %v5850
        %v5867 = vpack.c.b16 %v5522, %v5851
        %v5868 = vpack.c.b16 %v5524, %v5852
        %v5869 = vpack.c.b16 %v5526, %v5853
        %v5870 = vpack.c.b16 %v5528, %v5854
        %v5871 = vpack.c.b16 %v5530, %v5855
        %v5872 = vpack.c.b16 %v5532, %v5856
        %v5873 = vpack.c.b16 %v5534, %v5857
        %v5874 = vpack.c.b16 %v5536, %v5858
        %v5875 = vpack.c.b16 %v5538, %v5859
        %v5876 = vpack.c.b16 %v5540, %v5860
        %v5877 = vrot.slane %v5861, 1
        %v5878 = vrot.slane %v5589, 1
        %v5879 = vsel %vm1008, %v5877, %v5878
        %v5880 = vrot.slane %v5862, 1
        %v5881 = vrot.slane %v5590, 1
        %v5882 = vsel %vm1008, %v5880, %v5881
        %v5883 = vrot.slane %v5863, 1
        %v5884 = vrot.slane %v5591, 1
        %v5885 = vsel %vm1008, %v5883, %v5884
        %v5886 = vrot.slane %v5864, 1
        %v5887 = vrot.slane %v5592, 1
        %v5888 = vsel %vm1008, %v5886, %v5887
        %v5889 = vrot.slane %v5865, 1
        %v5890 = vrot.slane %v5593, 1
        %v5891 = vsel %vm1008, %v5889, %v5890
        %v5892 = vrot.slane %v5866, 1
        %v5893 = vrot.slane %v5594, 1
        %v5894 = vsel %vm1008, %v5892, %v5893
        %v5895 = vrot.slane %v5867, 1
        %v5896 = vrot.slane %v5595, 1
        %v5897 = vsel %vm1008, %v5895, %v5896
        %v5898 = vrot.slane %v5868, 1
        %v5899 = vrot.slane %v5596, 1
        %v5900 = vsel %vm1008, %v5898, %v5899
        %v5901 = vrot.slane %v5869, 1
        %v5902 = vrot.slane %v5597, 1
        %v5903 = vsel %vm1008, %v5901, %v5902
        %v5904 = vrot.slane %v5870, 1
        %v5905 = vrot.slane %v5598, 1
        %v5906 = vsel %vm1008, %v5904, %v5905
        %v5907 = vrot.slane %v5871, 1
        %v5908 = vrot.slane %v5599, 1
        %v5909 = vsel %vm1008, %v5907, %v5908
        %v5910 = vrot.slane %v5872, 1
        %v5911 = vrot.slane %v5600, 1
        %v5912 = vsel %vm1008, %v5910, %v5911
        %v5913 = vrot.slane %v5873, 1
        %v5914 = vrot.slane %v5601, 1
        %v5915 = vsel %vm1008, %v5913, %v5914
        %v5916 = vrot.slane %v5874, 1
        %v5917 = vrot.slane %v5602, 1
        %v5918 = vsel %vm1008, %v5916, %v5917
        %v5919 = vrot.slane %v5875, 1
        %v5920 = vrot.slane %v5603, 1
        %v5921 = vsel %vm1008, %v5919, %v5920
        %v5922 = vrot.slane %v5876, 1
        %v5923 = vrot.slane %v5604, 1
        %v5924 = vsel %vm1008, %v5922, %v5923
        %5925 = vrot.lane.b32.xlu0 %v5879, 32
        %v5926 = vpop.permute.xlu0 %5925
        %5927 = vrot.lane.b32.xlu0 %v5882, 32
        %v5928 = vpop.permute.xlu0 %5927
        %5929 = vrot.lane.b32.xlu0 %v5885, 32
        %v5930 = vpop.permute.xlu0 %5929
        %5931 = vrot.lane.b32.xlu0 %v5888, 32
        %v5932 = vpop.permute.xlu0 %5931
        %5933 = vrot.lane.b32.xlu0 %v5891, 32
        %v5934 = vpop.permute.xlu0 %5933
        %5935 = vrot.lane.b32.xlu0 %v5894, 32
        %v5936 = vpop.permute.xlu0 %5935
        %5937 = vrot.lane.b32.xlu0 %v5897, 32
        %v5938 = vpop.permute.xlu0 %5937
        %5939 = vrot.lane.b32.xlu0 %v5900, 32
        %v5940 = vpop.permute.xlu0 %5939
        %5941 = vrot.lane.b32.xlu0 %v5903, 32
        %v5942 = vpop.permute.xlu0 %5941
        %5943 = vrot.lane.b32.xlu0 %v5906, 32
        %v5944 = vpop.permute.xlu0 %5943
        %5945 = vrot.lane.b32.xlu0 %v5909, 32
        %v5946 = vpop.permute.xlu0 %5945
        %5947 = vrot.lane.b32.xlu0 %v5912, 32
        %v5948 = vpop.permute.xlu0 %5947
        %5949 = vrot.lane.b32.xlu0 %v5915, 32
        %v5950 = vpop.permute.xlu0 %5949
        %5951 = vrot.lane.b32.xlu0 %v5918, 32
        %v5952 = vpop.permute.xlu0 %5951
        %5953 = vrot.lane.b32.xlu0 %v5921, 32
        %v5954 = vpop.permute.xlu0 %5953
        %5955 = vrot.lane.b32.xlu0 %v5924, 32
        %v5956 = vpop.permute.xlu0 %5955
        %v5989 = vunpack.c.l.b16 %v5348
        %v5990 = vunpack.c.l.b16 %v5349
        %v5991 = vunpack.c.l.b16 %v5350
        %v5992 = vunpack.c.l.b16 %v5351
        %v5993 = vunpack.c.l.b16 %v5352
        %v5994 = vunpack.c.l.b16 %v5353
        %v5995 = vunpack.c.l.b16 %v5354
        %v5996 = vunpack.c.l.b16 %v5355
        %v5997 = vunpack.c.l.b16 %v5356
        %v5998 = vunpack.c.l.b16 %v5357
        %v5999 = vunpack.c.l.b16 %v5358
        %v6000 = vunpack.c.l.b16 %v5359
        %v6001 = vunpack.c.l.b16 %v5360
        %v6002 = vunpack.c.l.b16 %v5361
        %v6003 = vunpack.c.l.b16 %v5362
        %v6004 = vunpack.c.l.b16 %v5363
        %v6005 = vunpack.c.l.b16 %v5364
        %v6006 = vunpack.c.l.b16 %v5365
        %v6007 = vunpack.c.l.b16 %v5366
        %v6008 = vunpack.c.l.b16 %v5367
        %v6009 = vunpack.c.l.b16 %v5368
        %v6010 = vunpack.c.l.b16 %v5369
        %v6011 = vunpack.c.l.b16 %v5370
        %v6012 = vunpack.c.l.b16 %v5371
        %v6013 = vunpack.c.l.b16 %v5372
        %v6014 = vunpack.c.l.b16 %v5373
        %v6015 = vunpack.c.l.b16 %v5374
        %v6016 = vunpack.c.l.b16 %v5375
        %v6017 = vunpack.c.l.b16 %v5376
        %v6018 = vunpack.c.l.b16 %v5377
        %v6019 = vunpack.c.l.b16 %v5378
        %v6020 = vunpack.c.l.b16 %v5379
        %v6021 = vpack.c.b16 %v5990, %v5989
        %v6022 = vpack.c.b16 %v5992, %v5991
        %v6023 = vpack.c.b16 %v5994, %v5993
        %v6024 = vpack.c.b16 %v5996, %v5995
        %v6025 = vpack.c.b16 %v5998, %v5997
        %v6026 = vpack.c.b16 %v6000, %v5999
        %v6027 = vpack.c.b16 %v6002, %v6001
        %v6028 = vpack.c.b16 %v6004, %v6003
        %v6029 = vpack.c.b16 %v6006, %v6005
        %v6030 = vpack.c.b16 %v6008, %v6007
        %v6031 = vpack.c.b16 %v6010, %v6009
        %v6032 = vpack.c.b16 %v6012, %v6011
        %v6033 = vpack.c.b16 %v6014, %v6013
        %v6034 = vpack.c.b16 %v6016, %v6015
        %v6035 = vpack.c.b16 %v6018, %v6017
        %v6036 = vpack.c.b16 %v6020, %v6019
        %6037 = vrot.lane.b32.xlu0 %v6021, 48
        %v6038 = vpop.permute.xlu0 %6037
        %6039 = vrot.lane.b32.xlu0 %v6022, 48
        %v6040 = vpop.permute.xlu0 %6039
        %6041 = vrot.lane.b32.xlu0 %v6023, 48
        %v6042 = vpop.permute.xlu0 %6041
        %6043 = vrot.lane.b32.xlu0 %v6024, 48
        %v6044 = vpop.permute.xlu0 %6043
        %6045 = vrot.lane.b32.xlu0 %v6025, 48
        %v6046 = vpop.permute.xlu0 %6045
        %6047 = vrot.lane.b32.xlu0 %v6026, 48
        %v6048 = vpop.permute.xlu0 %6047
        %6049 = vrot.lane.b32.xlu0 %v6027, 48
        %v6050 = vpop.permute.xlu0 %6049
        %6051 = vrot.lane.b32.xlu0 %v6028, 48
        %v6052 = vpop.permute.xlu0 %6051
        %6053 = vrot.lane.b32.xlu0 %v6029, 48
        %v6054 = vpop.permute.xlu0 %6053
        %6055 = vrot.lane.b32.xlu0 %v6030, 48
        %v6056 = vpop.permute.xlu0 %6055
        %6057 = vrot.lane.b32.xlu0 %v6031, 48
        %v6058 = vpop.permute.xlu0 %6057
        %6059 = vrot.lane.b32.xlu0 %v6032, 48
        %v6060 = vpop.permute.xlu0 %6059
        %6061 = vrot.lane.b32.xlu0 %v6033, 48
        %v6062 = vpop.permute.xlu0 %6061
        %6063 = vrot.lane.b32.xlu0 %v6034, 48
        %v6064 = vpop.permute.xlu0 %6063
        %6065 = vrot.lane.b32.xlu0 %v6035, 48
        %v6066 = vpop.permute.xlu0 %6065
        %6067 = vrot.lane.b32.xlu0 %v6036, 48
        %v6068 = vpop.permute.xlu0 %6067
        %v6085 = vunpack.c.l.b16 %v5380
        %v6086 = vunpack.c.l.b16 %v5381
        %v6087 = vunpack.c.l.b16 %v5382
        %v6088 = vunpack.c.l.b16 %v5383
        %v6089 = vunpack.c.l.b16 %v5384
        %v6090 = vunpack.c.l.b16 %v5385
        %v6091 = vunpack.c.l.b16 %v5386
        %v6092 = vunpack.c.l.b16 %v5387
        %v6093 = vunpack.c.l.b16 %v5388
        %v6094 = vunpack.c.l.b16 %v5389
        %v6095 = vunpack.c.l.b16 %v5390
        %v6096 = vunpack.c.l.b16 %v5391
        %v6097 = vunpack.c.l.b16 %v5392
        %v6098 = vunpack.c.l.b16 %v5393
        %v6099 = vunpack.c.l.b16 %v5394
        %v6100 = vunpack.c.l.b16 %v5395
        %v6101 = vpack.c.b16 %v6085, %v6085
        %v6102 = vpack.c.b16 %v6086, %v6086
        %v6103 = vpack.c.b16 %v6087, %v6087
        %v6104 = vpack.c.b16 %v6088, %v6088
        %v6105 = vpack.c.b16 %v6089, %v6089
        %v6106 = vpack.c.b16 %v6090, %v6090
        %v6107 = vpack.c.b16 %v6091, %v6091
        %v6108 = vpack.c.b16 %v6092, %v6092
        %v6109 = vpack.c.b16 %v6093, %v6093
        %v6110 = vpack.c.b16 %v6094, %v6094
        %v6111 = vpack.c.b16 %v6095, %v6095
        %v6112 = vpack.c.b16 %v6096, %v6096
        %v6113 = vpack.c.b16 %v6097, %v6097
        %v6114 = vpack.c.b16 %v6098, %v6098
        %v6115 = vpack.c.b16 %v6099, %v6099
        %v6116 = vpack.c.b16 %v6100, %v6100
        %v6118 = vshrl.u32 %v6021, 16
        %v6120 = vshll.u32 %v6021, 16
        %v6122 = vrot.slane %v6120, 1
        %v6123 = vor.u32 %v6118, %v6122
        %v6125 = vshll.u32 %v6101, 16
        %v6127 = vrot.slane %v6125, 1
        %v6128 = vsel %vm735, %v6123, %v6127
        %v6130 = vshrl.u32 %v6022, 16
        %v6132 = vshll.u32 %v6022, 16
        %v6134 = vrot.slane %v6132, 1
        %v6135 = vor.u32 %v6130, %v6134
        %v6137 = vshll.u32 %v6102, 16
        %v6139 = vrot.slane %v6137, 1
        %v6140 = vsel %vm735, %v6135, %v6139
        %v6142 = vshrl.u32 %v6023, 16
        %v6144 = vshll.u32 %v6023, 16
        %v6146 = vrot.slane %v6144, 1
        %v6147 = vor.u32 %v6142, %v6146
        %v6149 = vshll.u32 %v6103, 16
        %v6151 = vrot.slane %v6149, 1
        %v6152 = vsel %vm735, %v6147, %v6151
        %v6154 = vshrl.u32 %v6024, 16
        %v6156 = vshll.u32 %v6024, 16
        %v6158 = vrot.slane %v6156, 1
        %v6159 = vor.u32 %v6154, %v6158
        %v6161 = vshll.u32 %v6104, 16
        %v6163 = vrot.slane %v6161, 1
        %v6164 = vsel %vm735, %v6159, %v6163
        %v6166 = vshrl.u32 %v6025, 16
        %v6168 = vshll.u32 %v6025, 16
        %v6170 = vrot.slane %v6168, 1
        %v6171 = vor.u32 %v6166, %v6170
        %v6173 = vshll.u32 %v6105, 16
        %v6175 = vrot.slane %v6173, 1
        %v6176 = vsel %vm735, %v6171, %v6175
        %v6178 = vshrl.u32 %v6026, 16
        %v6180 = vshll.u32 %v6026, 16
        %v6182 = vrot.slane %v6180, 1
        %v6183 = vor.u32 %v6178, %v6182
        %v6185 = vshll.u32 %v6106, 16
        %v6187 = vrot.slane %v6185, 1
        %v6188 = vsel %vm735, %v6183, %v6187
        %v6190 = vshrl.u32 %v6027, 16
        %v6192 = vshll.u32 %v6027, 16
        %v6194 = vrot.slane %v6192, 1
        %v6195 = vor.u32 %v6190, %v6194
        %v6197 = vshll.u32 %v6107, 16
        %v6199 = vrot.slane %v6197, 1
        %v6200 = vsel %vm735, %v6195, %v6199
        %v6202 = vshrl.u32 %v6028, 16
        %v6204 = vshll.u32 %v6028, 16
        %v6206 = vrot.slane %v6204, 1
        %v6207 = vor.u32 %v6202, %v6206
        %v6209 = vshll.u32 %v6108, 16
        %v6211 = vrot.slane %v6209, 1
        %v6212 = vsel %vm735, %v6207, %v6211
        %v6214 = vshrl.u32 %v6029, 16
        %v6216 = vshll.u32 %v6029, 16
        %v6218 = vrot.slane %v6216, 1
        %v6219 = vor.u32 %v6214, %v6218
        %v6221 = vshll.u32 %v6109, 16
        %v6223 = vrot.slane %v6221, 1
        %v6224 = vsel %vm735, %v6219, %v6223
        %v6226 = vshrl.u32 %v6030, 16
        %v6228 = vshll.u32 %v6030, 16
        %v6230 = vrot.slane %v6228, 1
        %v6231 = vor.u32 %v6226, %v6230
        %v6233 = vshll.u32 %v6110, 16
        %v6235 = vrot.slane %v6233, 1
        %v6236 = vsel %vm735, %v6231, %v6235
        %v6238 = vshrl.u32 %v6031, 16
        %v6240 = vshll.u32 %v6031, 16
        %v6242 = vrot.slane %v6240, 1
        %v6243 = vor.u32 %v6238, %v6242
        %v6245 = vshll.u32 %v6111, 16
        %v6247 = vrot.slane %v6245, 1
        %v6248 = vsel %vm735, %v6243, %v6247
        %v6250 = vshrl.u32 %v6032, 16
        %v6252 = vshll.u32 %v6032, 16
        %v6254 = vrot.slane %v6252, 1
        %v6255 = vor.u32 %v6250, %v6254
        %v6257 = vshll.u32 %v6112, 16
        %v6259 = vrot.slane %v6257, 1
        %v6260 = vsel %vm735, %v6255, %v6259
        %v6262 = vshrl.u32 %v6033, 16
        %v6264 = vshll.u32 %v6033, 16
        %v6266 = vrot.slane %v6264, 1
        %v6267 = vor.u32 %v6262, %v6266
        %v6269 = vshll.u32 %v6113, 16
        %v6271 = vrot.slane %v6269, 1
        %v6272 = vsel %vm735, %v6267, %v6271
        %v6274 = vshrl.u32 %v6034, 16
        %v6276 = vshll.u32 %v6034, 16
        %v6278 = vrot.slane %v6276, 1
        %v6279 = vor.u32 %v6274, %v6278
        %v6281 = vshll.u32 %v6114, 16
        %v6283 = vrot.slane %v6281, 1
        %v6284 = vsel %vm735, %v6279, %v6283
        %v6286 = vshrl.u32 %v6035, 16
        %v6288 = vshll.u32 %v6035, 16
        %v6290 = vrot.slane %v6288, 1
        %v6291 = vor.u32 %v6286, %v6290
        %v6293 = vshll.u32 %v6115, 16
        %v6295 = vrot.slane %v6293, 1
        %v6296 = vsel %vm735, %v6291, %v6295
        %v6298 = vshrl.u32 %v6036, 16
        %v6300 = vshll.u32 %v6036, 16
        %v6302 = vrot.slane %v6300, 1
        %v6303 = vor.u32 %v6298, %v6302
        %v6305 = vshll.u32 %v6116, 16
        %v6307 = vrot.slane %v6305, 1
        %v6308 = vsel %vm735, %v6303, %v6307
        %6309 = vrot.lane.b32.xlu0 %v6128, 64
        %v6310 = vpop.permute.xlu0 %6309
        %6311 = vrot.lane.b32.xlu0 %v6140, 64
        %v6312 = vpop.permute.xlu0 %6311
        %6313 = vrot.lane.b32.xlu0 %v6152, 64
        %v6314 = vpop.permute.xlu0 %6313
        %6315 = vrot.lane.b32.xlu0 %v6164, 64
        %v6316 = vpop.permute.xlu0 %6315
        %6317 = vrot.lane.b32.xlu0 %v6176, 64
        %v6318 = vpop.permute.xlu0 %6317
        %6319 = vrot.lane.b32.xlu0 %v6188, 64
        %v6320 = vpop.permute.xlu0 %6319
        %6321 = vrot.lane.b32.xlu0 %v6200, 64
        %v6322 = vpop.permute.xlu0 %6321
        %6323 = vrot.lane.b32.xlu0 %v6212, 64
        %v6324 = vpop.permute.xlu0 %6323
        %6325 = vrot.lane.b32.xlu0 %v6224, 64
        %v6326 = vpop.permute.xlu0 %6325
        %6327 = vrot.lane.b32.xlu0 %v6236, 64
        %v6328 = vpop.permute.xlu0 %6327
        %6329 = vrot.lane.b32.xlu0 %v6248, 64
        %v6330 = vpop.permute.xlu0 %6329
        %6331 = vrot.lane.b32.xlu0 %v6260, 64
        %v6332 = vpop.permute.xlu0 %6331
        %6333 = vrot.lane.b32.xlu0 %v6272, 64
        %v6334 = vpop.permute.xlu0 %6333
        %6335 = vrot.lane.b32.xlu0 %v6284, 64
        %v6336 = vpop.permute.xlu0 %6335
        %6337 = vrot.lane.b32.xlu0 %v6296, 64
        %v6338 = vpop.permute.xlu0 %6337
        %6339 = vrot.lane.b32.xlu0 %v6308, 64
        %v6340 = vpop.permute.xlu0 %6339
        %v6357 = vunpack.c.l.b16 %v5396
        %v6358 = vunpack.c.l.b16 %v5397
        %v6359 = vunpack.c.l.b16 %v5398
        %v6360 = vunpack.c.l.b16 %v5399
        %v6361 = vunpack.c.l.b16 %v5400
        %v6362 = vunpack.c.l.b16 %v5401
        %v6363 = vunpack.c.l.b16 %v5402
        %v6364 = vunpack.c.l.b16 %v5403
        %v6365 = vunpack.c.l.b16 %v5404
        %v6366 = vunpack.c.l.b16 %v5405
        %v6367 = vunpack.c.l.b16 %v5406
        %v6368 = vunpack.c.l.b16 %v5407
        %v6369 = vunpack.c.l.b16 %v5408
        %v6370 = vunpack.c.l.b16 %v5409
        %v6371 = vunpack.c.l.b16 %v5410
        %v6372 = vunpack.c.l.b16 %v5411
        %v6373 = vpack.c.b16 %v5990, %v6357
        %v6374 = vpack.c.b16 %v5992, %v6358
        %v6375 = vpack.c.b16 %v5994, %v6359
        %v6376 = vpack.c.b16 %v5996, %v6360
        %v6377 = vpack.c.b16 %v5998, %v6361
        %v6378 = vpack.c.b16 %v6000, %v6362
        %v6379 = vpack.c.b16 %v6002, %v6363
        %v6380 = vpack.c.b16 %v6004, %v6364
        %v6381 = vpack.c.b16 %v6006, %v6365
        %v6382 = vpack.c.b16 %v6008, %v6366
        %v6383 = vpack.c.b16 %v6010, %v6367
        %v6384 = vpack.c.b16 %v6012, %v6368
        %v6385 = vpack.c.b16 %v6014, %v6369
        %v6386 = vpack.c.b16 %v6016, %v6370
        %v6387 = vpack.c.b16 %v6018, %v6371
        %v6388 = vpack.c.b16 %v6020, %v6372
        %v6389 = vrot.slane %v6373, 1
        %v6390 = vrot.slane %v6101, 1
        %v6391 = vsel %vm1008, %v6389, %v6390
        %v6392 = vrot.slane %v6374, 1
        %v6393 = vrot.slane %v6102, 1
        %v6394 = vsel %vm1008, %v6392, %v6393
        %v6395 = vrot.slane %v6375, 1
        %v6396 = vrot.slane %v6103, 1
        %v6397 = vsel %vm1008, %v6395, %v6396
        %v6398 = vrot.slane %v6376, 1
        %v6399 = vrot.slane %v6104, 1
        %v6400 = vsel %vm1008, %v6398, %v6399
        %v6401 = vrot.slane %v6377, 1
        %v6402 = vrot.slane %v6105, 1
        %v6403 = vsel %vm1008, %v6401, %v6402
        %v6404 = vrot.slane %v6378, 1
        %v6405 = vrot.slane %v6106, 1
        %v6406 = vsel %vm1008, %v6404, %v6405
        %v6407 = vrot.slane %v6379, 1
        %v6408 = vrot.slane %v6107, 1
        %v6409 = vsel %vm1008, %v6407, %v6408
        %v6410 = vrot.slane %v6380, 1
        %v6411 = vrot.slane %v6108, 1
        %v6412 = vsel %vm1008, %v6410, %v6411
        %v6413 = vrot.slane %v6381, 1
        %v6414 = vrot.slane %v6109, 1
        %v6415 = vsel %vm1008, %v6413, %v6414
        %v6416 = vrot.slane %v6382, 1
        %v6417 = vrot.slane %v6110, 1
        %v6418 = vsel %vm1008, %v6416, %v6417
        %v6419 = vrot.slane %v6383, 1
        %v6420 = vrot.slane %v6111, 1
        %v6421 = vsel %vm1008, %v6419, %v6420
        %v6422 = vrot.slane %v6384, 1
        %v6423 = vrot.slane %v6112, 1
        %v6424 = vsel %vm1008, %v6422, %v6423
        %v6425 = vrot.slane %v6385, 1
        %v6426 = vrot.slane %v6113, 1
        %v6427 = vsel %vm1008, %v6425, %v6426
        %v6428 = vrot.slane %v6386, 1
        %v6429 = vrot.slane %v6114, 1
        %v6430 = vsel %vm1008, %v6428, %v6429
        %v6431 = vrot.slane %v6387, 1
        %v6432 = vrot.slane %v6115, 1
        %v6433 = vsel %vm1008, %v6431, %v6432
        %v6434 = vrot.slane %v6388, 1
        %v6435 = vrot.slane %v6116, 1
        %v6436 = vsel %vm1008, %v6434, %v6435
        %6437 = vrot.lane.b32.xlu0 %v6391, 80
        %v6438 = vpop.permute.xlu0 %6437
        %6439 = vrot.lane.b32.xlu0 %v6394, 80
        %v6440 = vpop.permute.xlu0 %6439
        %6441 = vrot.lane.b32.xlu0 %v6397, 80
        %v6442 = vpop.permute.xlu0 %6441
        %6443 = vrot.lane.b32.xlu0 %v6400, 80
        %v6444 = vpop.permute.xlu0 %6443
        %6445 = vrot.lane.b32.xlu0 %v6403, 80
        %v6446 = vpop.permute.xlu0 %6445
        %6447 = vrot.lane.b32.xlu0 %v6406, 80
        %v6448 = vpop.permute.xlu0 %6447
        %6449 = vrot.lane.b32.xlu0 %v6409, 80
        %v6450 = vpop.permute.xlu0 %6449
        %6451 = vrot.lane.b32.xlu0 %v6412, 80
        %v6452 = vpop.permute.xlu0 %6451
        %6453 = vrot.lane.b32.xlu0 %v6415, 80
        %v6454 = vpop.permute.xlu0 %6453
        %6455 = vrot.lane.b32.xlu0 %v6418, 80
        %v6456 = vpop.permute.xlu0 %6455
        %6457 = vrot.lane.b32.xlu0 %v6421, 80
        %v6458 = vpop.permute.xlu0 %6457
        %6459 = vrot.lane.b32.xlu0 %v6424, 80
        %v6460 = vpop.permute.xlu0 %6459
        %6461 = vrot.lane.b32.xlu0 %v6427, 80
        %v6462 = vpop.permute.xlu0 %6461
        %6463 = vrot.lane.b32.xlu0 %v6430, 80
        %v6464 = vpop.permute.xlu0 %6463
        %6465 = vrot.lane.b32.xlu0 %v6433, 80
        %v6466 = vpop.permute.xlu0 %6465
        %6467 = vrot.lane.b32.xlu0 %v6436, 80
        %v6468 = vpop.permute.xlu0 %6467
        %v6501 = vunpack.c.l.b16 %v5413
        %v6502 = vunpack.c.l.b16 %v5414
        %v6503 = vunpack.c.l.b16 %v5415
        %v6504 = vunpack.c.l.b16 %v5416
        %v6505 = vunpack.c.l.b16 %v5417
        %v6506 = vunpack.c.l.b16 %v5418
        %v6507 = vunpack.c.l.b16 %v5419
        %v6508 = vunpack.c.l.b16 %v5420
        %v6509 = vunpack.c.l.b16 %v5421
        %v6510 = vunpack.c.l.b16 %v5422
        %v6511 = vunpack.c.l.b16 %v5423
        %v6512 = vunpack.c.l.b16 %v5424
        %v6513 = vunpack.c.l.b16 %v5425
        %v6514 = vunpack.c.l.b16 %v5426
        %v6515 = vunpack.c.l.b16 %v5427
        %v6516 = vunpack.c.l.b16 %v5428
        %v6517 = vunpack.c.l.b16 %v5429
        %v6518 = vunpack.c.l.b16 %v5430
        %v6519 = vunpack.c.l.b16 %v5431
        %v6520 = vunpack.c.l.b16 %v5432
        %v6521 = vunpack.c.l.b16 %v5433
        %v6522 = vunpack.c.l.b16 %v5434
        %v6523 = vunpack.c.l.b16 %v5435
        %v6524 = vunpack.c.l.b16 %v5436
        %v6525 = vunpack.c.l.b16 %v5437
        %v6526 = vunpack.c.l.b16 %v5438
        %v6527 = vunpack.c.l.b16 %v5439
        %v6528 = vunpack.c.l.b16 %v5440
        %v6529 = vunpack.c.l.b16 %v5441
        %v6530 = vunpack.c.l.b16 %v5442
        %v6531 = vunpack.c.l.b16 %v5443
        %v6532 = vunpack.c.l.b16 %v5444
        %v6533 = vpack.c.b16 %v6502, %v6501
        %v6534 = vpack.c.b16 %v6504, %v6503
        %v6535 = vpack.c.b16 %v6506, %v6505
        %v6536 = vpack.c.b16 %v6508, %v6507
        %v6537 = vpack.c.b16 %v6510, %v6509
        %v6538 = vpack.c.b16 %v6512, %v6511
        %v6539 = vpack.c.b16 %v6514, %v6513
        %v6540 = vpack.c.b16 %v6516, %v6515
        %v6541 = vpack.c.b16 %v6518, %v6517
        %v6542 = vpack.c.b16 %v6520, %v6519
        %v6543 = vpack.c.b16 %v6522, %v6521
        %v6544 = vpack.c.b16 %v6524, %v6523
        %v6545 = vpack.c.b16 %v6526, %v6525
        %v6546 = vpack.c.b16 %v6528, %v6527
        %v6547 = vpack.c.b16 %v6530, %v6529
        %v6548 = vpack.c.b16 %v6532, %v6531
        %6549 = vrot.lane.b32.xlu0 %v6533, 96
        %v6550 = vpop.permute.xlu0 %6549
        %6551 = vrot.lane.b32.xlu0 %v6534, 96
        %v6552 = vpop.permute.xlu0 %6551
        %6553 = vrot.lane.b32.xlu0 %v6535, 96
        %v6554 = vpop.permute.xlu0 %6553
        %6555 = vrot.lane.b32.xlu0 %v6536, 96
        %v6556 = vpop.permute.xlu0 %6555
        %6557 = vrot.lane.b32.xlu0 %v6537, 96
        %v6558 = vpop.permute.xlu0 %6557
        %6559 = vrot.lane.b32.xlu0 %v6538, 96
        %v6560 = vpop.permute.xlu0 %6559
        %6561 = vrot.lane.b32.xlu0 %v6539, 96
        %v6562 = vpop.permute.xlu0 %6561
        %6563 = vrot.lane.b32.xlu0 %v6540, 96
        %v6564 = vpop.permute.xlu0 %6563
        %6565 = vrot.lane.b32.xlu0 %v6541, 96
        %v6566 = vpop.permute.xlu0 %6565
        %6567 = vrot.lane.b32.xlu0 %v6542, 96
        %v6568 = vpop.permute.xlu0 %6567
        %6569 = vrot.lane.b32.xlu0 %v6543, 96
        %v6570 = vpop.permute.xlu0 %6569
        %6571 = vrot.lane.b32.xlu0 %v6544, 96
        %v6572 = vpop.permute.xlu0 %6571
        %6573 = vrot.lane.b32.xlu0 %v6545, 96
        %v6574 = vpop.permute.xlu0 %6573
        %6575 = vrot.lane.b32.xlu0 %v6546, 96
        %v6576 = vpop.permute.xlu0 %6575
        %6577 = vrot.lane.b32.xlu0 %v6547, 96
        %v6578 = vpop.permute.xlu0 %6577
        %6579 = vrot.lane.b32.xlu0 %v6548, 96
        %v6580 = vpop.permute.xlu0 %6579
        %v6597 = vunpack.c.l.b16 %v5445
        %v6598 = vunpack.c.l.b16 %v5446
        %v6599 = vunpack.c.l.b16 %v5447
        %v6600 = vunpack.c.l.b16 %v5448
        %v6601 = vunpack.c.l.b16 %v5449
        %v6602 = vunpack.c.l.b16 %v5450
        %v6603 = vunpack.c.l.b16 %v5451
        %v6604 = vunpack.c.l.b16 %v5452
        %v6605 = vunpack.c.l.b16 %v5453
        %v6606 = vunpack.c.l.b16 %v5454
        %v6607 = vunpack.c.l.b16 %v5455
        %v6608 = vunpack.c.l.b16 %v5456
        %v6609 = vunpack.c.l.b16 %v5457
        %v6610 = vunpack.c.l.b16 %v5458
        %v6611 = vunpack.c.l.b16 %v5459
        %v6612 = vunpack.c.l.b16 %v5460
        %v6613 = vpack.c.b16 %v6597, %v6597
        %v6614 = vpack.c.b16 %v6598, %v6598
        %v6615 = vpack.c.b16 %v6599, %v6599
        %v6616 = vpack.c.b16 %v6600, %v6600
        %v6617 = vpack.c.b16 %v6601, %v6601
        %v6618 = vpack.c.b16 %v6602, %v6602
        %v6619 = vpack.c.b16 %v6603, %v6603
        %v6620 = vpack.c.b16 %v6604, %v6604
        %v6621 = vpack.c.b16 %v6605, %v6605
        %v6622 = vpack.c.b16 %v6606, %v6606
        %v6623 = vpack.c.b16 %v6607, %v6607
        %v6624 = vpack.c.b16 %v6608, %v6608
        %v6625 = vpack.c.b16 %v6609, %v6609
        %v6626 = vpack.c.b16 %v6610, %v6610
        %v6627 = vpack.c.b16 %v6611, %v6611
        %v6628 = vpack.c.b16 %v6612, %v6612
        %v6630 = vshrl.u32 %v6533, 16
        %v6632 = vshll.u32 %v6533, 16
        %v6634 = vrot.slane %v6632, 1
        %v6635 = vor.u32 %v6630, %v6634
        %v6637 = vshll.u32 %v6613, 16
        %v6639 = vrot.slane %v6637, 1
        %v6640 = vsel %vm735, %v6635, %v6639
        %v6642 = vshrl.u32 %v6534, 16
        %v6644 = vshll.u32 %v6534, 16
        %v6646 = vrot.slane %v6644, 1
        %v6647 = vor.u32 %v6642, %v6646
        %v6649 = vshll.u32 %v6614, 16
        %v6651 = vrot.slane %v6649, 1
        %v6652 = vsel %vm735, %v6647, %v6651
        %v6654 = vshrl.u32 %v6535, 16
        %v6656 = vshll.u32 %v6535, 16
        %v6658 = vrot.slane %v6656, 1
        %v6659 = vor.u32 %v6654, %v6658
        %v6661 = vshll.u32 %v6615, 16
        %v6663 = vrot.slane %v6661, 1
        %v6664 = vsel %vm735, %v6659, %v6663
        %v6666 = vshrl.u32 %v6536, 16
        %v6668 = vshll.u32 %v6536, 16
        %v6670 = vrot.slane %v6668, 1
        %v6671 = vor.u32 %v6666, %v6670
        %v6673 = vshll.u32 %v6616, 16
        %v6675 = vrot.slane %v6673, 1
        %v6676 = vsel %vm735, %v6671, %v6675
        %v6678 = vshrl.u32 %v6537, 16
        %v6680 = vshll.u32 %v6537, 16
        %v6682 = vrot.slane %v6680, 1
        %v6683 = vor.u32 %v6678, %v6682
        %v6685 = vshll.u32 %v6617, 16
        %v6687 = vrot.slane %v6685, 1
        %v6688 = vsel %vm735, %v6683, %v6687
        %v6690 = vshrl.u32 %v6538, 16
        %v6692 = vshll.u32 %v6538, 16
        %v6694 = vrot.slane %v6692, 1
        %v6695 = vor.u32 %v6690, %v6694
        %v6697 = vshll.u32 %v6618, 16
        %v6699 = vrot.slane %v6697, 1
        %v6700 = vsel %vm735, %v6695, %v6699
        %v6702 = vshrl.u32 %v6539, 16
        %v6704 = vshll.u32 %v6539, 16
        %v6706 = vrot.slane %v6704, 1
        %v6707 = vor.u32 %v6702, %v6706
        %v6709 = vshll.u32 %v6619, 16
        %v6711 = vrot.slane %v6709, 1
        %v6712 = vsel %vm735, %v6707, %v6711
        %v6714 = vshrl.u32 %v6540, 16
        %v6716 = vshll.u32 %v6540, 16
        %v6718 = vrot.slane %v6716, 1
        %v6719 = vor.u32 %v6714, %v6718
        %v6721 = vshll.u32 %v6620, 16
        %v6723 = vrot.slane %v6721, 1
        %v6724 = vsel %vm735, %v6719, %v6723
        %v6726 = vshrl.u32 %v6541, 16
        %v6728 = vshll.u32 %v6541, 16
        %v6730 = vrot.slane %v6728, 1
        %v6731 = vor.u32 %v6726, %v6730
        %v6733 = vshll.u32 %v6621, 16
        %v6735 = vrot.slane %v6733, 1
        %v6736 = vsel %vm735, %v6731, %v6735
        %v6738 = vshrl.u32 %v6542, 16
        %v6740 = vshll.u32 %v6542, 16
        %v6742 = vrot.slane %v6740, 1
        %v6743 = vor.u32 %v6738, %v6742
        %v6745 = vshll.u32 %v6622, 16
        %v6747 = vrot.slane %v6745, 1
        %v6748 = vsel %vm735, %v6743, %v6747
        %v6750 = vshrl.u32 %v6543, 16
        %v6752 = vshll.u32 %v6543, 16
        %v6754 = vrot.slane %v6752, 1
        %v6755 = vor.u32 %v6750, %v6754
        %v6757 = vshll.u32 %v6623, 16
        %v6759 = vrot.slane %v6757, 1
        %v6760 = vsel %vm735, %v6755, %v6759
        %v6762 = vshrl.u32 %v6544, 16
        %v6764 = vshll.u32 %v6544, 16
        %v6766 = vrot.slane %v6764, 1
        %v6767 = vor.u32 %v6762, %v6766
        %v6769 = vshll.u32 %v6624, 16
        %v6771 = vrot.slane %v6769, 1
        %v6772 = vsel %vm735, %v6767, %v6771
        %v6774 = vshrl.u32 %v6545, 16
        %v6776 = vshll.u32 %v6545, 16
        %v6778 = vrot.slane %v6776, 1
        %v6779 = vor.u32 %v6774, %v6778
        %v6781 = vshll.u32 %v6625, 16
        %v6783 = vrot.slane %v6781, 1
        %v6784 = vsel %vm735, %v6779, %v6783
        %v6786 = vshrl.u32 %v6546, 16
        %v6788 = vshll.u32 %v6546, 16
        %v6790 = vrot.slane %v6788, 1
        %v6791 = vor.u32 %v6786, %v6790
        %v6793 = vshll.u32 %v6626, 16
        %v6795 = vrot.slane %v6793, 1
        %v6796 = vsel %vm735, %v6791, %v6795
        %v6798 = vshrl.u32 %v6547, 16
        %v6800 = vshll.u32 %v6547, 16
        %v6802 = vrot.slane %v6800, 1
        %v6803 = vor.u32 %v6798, %v6802
        %v6805 = vshll.u32 %v6627, 16
        %v6807 = vrot.slane %v6805, 1
        %v6808 = vsel %vm735, %v6803, %v6807
        %v6810 = vshrl.u32 %v6548, 16
        %v6812 = vshll.u32 %v6548, 16
        %v6814 = vrot.slane %v6812, 1
        %v6815 = vor.u32 %v6810, %v6814
        %v6817 = vshll.u32 %v6628, 16
        %v6819 = vrot.slane %v6817, 1
        %v6820 = vsel %vm735, %v6815, %v6819
        %6821 = vrot.lane.b32.xlu0 %v6640, 112
        %v6822 = vpop.permute.xlu0 %6821
        %6823 = vrot.lane.b32.xlu0 %v6652, 112
        %v6824 = vpop.permute.xlu0 %6823
        %6825 = vrot.lane.b32.xlu0 %v6664, 112
        %v6826 = vpop.permute.xlu0 %6825
        %6827 = vrot.lane.b32.xlu0 %v6676, 112
        %v6828 = vpop.permute.xlu0 %6827
        %6829 = vrot.lane.b32.xlu0 %v6688, 112
        %v6830 = vpop.permute.xlu0 %6829
        %6831 = vrot.lane.b32.xlu0 %v6700, 112
        %v6832 = vpop.permute.xlu0 %6831
        %6833 = vrot.lane.b32.xlu0 %v6712, 112
        %v6834 = vpop.permute.xlu0 %6833
        %6835 = vrot.lane.b32.xlu0 %v6724, 112
        %v6836 = vpop.permute.xlu0 %6835
        %6837 = vrot.lane.b32.xlu0 %v6736, 112
        %v6838 = vpop.permute.xlu0 %6837
        %6839 = vrot.lane.b32.xlu0 %v6748, 112
        %v6840 = vpop.permute.xlu0 %6839
        %6841 = vrot.lane.b32.xlu0 %v6760, 112
        %v6842 = vpop.permute.xlu0 %6841
        %6843 = vrot.lane.b32.xlu0 %v6772, 112
        %v6844 = vpop.permute.xlu0 %6843
        %6845 = vrot.lane.b32.xlu0 %v6784, 112
        %v6846 = vpop.permute.xlu0 %6845
        %6847 = vrot.lane.b32.xlu0 %v6796, 112
        %v6848 = vpop.permute.xlu0 %6847
        %6849 = vrot.lane.b32.xlu0 %v6808, 112
        %v6850 = vpop.permute.xlu0 %6849
        %6851 = vrot.lane.b32.xlu0 %v6820, 112
        %v6852 = vpop.permute.xlu0 %6851
        %v6869 = vunpack.c.l.b16 %v5461
        %v6870 = vunpack.c.l.b16 %v5462
        %v6871 = vunpack.c.l.b16 %v5463
        %v6872 = vunpack.c.l.b16 %v5464
        %v6873 = vunpack.c.l.b16 %v5465
        %v6874 = vunpack.c.l.b16 %v5466
        %v6875 = vunpack.c.l.b16 %v5467
        %v6876 = vunpack.c.l.b16 %v5468
        %v6877 = vunpack.c.l.b16 %v5469
        %v6878 = vunpack.c.l.b16 %v5470
        %v6879 = vunpack.c.l.b16 %v5471
        %v6880 = vunpack.c.l.b16 %v5472
        %v6881 = vunpack.c.l.b16 %v5473
        %v6882 = vunpack.c.l.b16 %v5474
        %v6883 = vunpack.c.l.b16 %v5475
        %v6884 = vunpack.c.l.b16 %v5476
        %v6885 = vpack.c.b16 %v6502, %v6869
        %v6886 = vpack.c.b16 %v6504, %v6870
        %v6887 = vpack.c.b16 %v6506, %v6871
        %v6888 = vpack.c.b16 %v6508, %v6872
        %v6889 = vpack.c.b16 %v6510, %v6873
        %v6890 = vpack.c.b16 %v6512, %v6874
        %v6891 = vpack.c.b16 %v6514, %v6875
        %v6892 = vpack.c.b16 %v6516, %v6876
        %v6893 = vpack.c.b16 %v6518, %v6877
        %v6894 = vpack.c.b16 %v6520, %v6878
        %v6895 = vpack.c.b16 %v6522, %v6879
        %v6896 = vpack.c.b16 %v6524, %v6880
        %v6897 = vpack.c.b16 %v6526, %v6881
        %v6898 = vpack.c.b16 %v6528, %v6882
        %v6899 = vpack.c.b16 %v6530, %v6883
        %v6900 = vpack.c.b16 %v6532, %v6884
        %v6901 = vrot.slane %v6885, 1
        %v6902 = vrot.slane %v6613, 1
        %v6903 = vsel %vm1008, %v6901, %v6902
        %v6904 = vrot.slane %v6886, 1
        %v6905 = vrot.slane %v6614, 1
        %v6906 = vsel %vm1008, %v6904, %v6905
        %v6907 = vrot.slane %v6887, 1
        %v6908 = vrot.slane %v6615, 1
        %v6909 = vsel %vm1008, %v6907, %v6908
        %v6910 = vrot.slane %v6888, 1
        %v6911 = vrot.slane %v6616, 1
        %v6912 = vsel %vm1008, %v6910, %v6911
        %v6913 = vrot.slane %v6889, 1
        %v6914 = vrot.slane %v6617, 1
        %v6915 = vsel %vm1008, %v6913, %v6914
        %v6916 = vrot.slane %v6890, 1
        %v6917 = vrot.slane %v6618, 1
        %v6918 = vsel %vm1008, %v6916, %v6917
        %v6919 = vrot.slane %v6891, 1
        %v6920 = vrot.slane %v6619, 1
        %v6921 = vsel %vm1008, %v6919, %v6920
        %v6922 = vrot.slane %v6892, 1
        %v6923 = vrot.slane %v6620, 1
        %v6924 = vsel %vm1008, %v6922, %v6923
        %v6925 = vrot.slane %v6893, 1
        %v6926 = vrot.slane %v6621, 1
        %v6927 = vsel %vm1008, %v6925, %v6926
        %v6928 = vrot.slane %v6894, 1
        %v6929 = vrot.slane %v6622, 1
        %v6930 = vsel %vm1008, %v6928, %v6929
        %v6931 = vrot.slane %v6895, 1
        %v6932 = vrot.slane %v6623, 1
        %v6933 = vsel %vm1008, %v6931, %v6932
        %v6934 = vrot.slane %v6896, 1
        %v6935 = vrot.slane %v6624, 1
        %v6936 = vsel %vm1008, %v6934, %v6935
        %v6937 = vrot.slane %v6897, 1
        %v6938 = vrot.slane %v6625, 1
        %v6939 = vsel %vm1008, %v6937, %v6938
        %v6940 = vrot.slane %v6898, 1
        %v6941 = vrot.slane %v6626, 1
        %v6942 = vsel %vm1008, %v6940, %v6941
        %v6943 = vrot.slane %v6899, 1
        %v6944 = vrot.slane %v6627, 1
        %v6945 = vsel %vm1008, %v6943, %v6944
        %v6946 = vrot.slane %v6900, 1
        %v6947 = vrot.slane %v6628, 1
        %v6948 = vsel %vm1008, %v6946, %v6947
        %v6950 = vsel %vm2146, %v5541, %v5798
        %v6952 = vsel %vm2146, %v5542, %v5800
        %v6954 = vsel %vm2146, %v5543, %v5802
        %v6956 = vsel %vm2146, %v5544, %v5804
        %v6958 = vsel %vm2146, %v5545, %v5806
        %v6960 = vsel %vm2146, %v5546, %v5808
        %v6962 = vsel %vm2146, %v5547, %v5810
        %v6964 = vsel %vm2146, %v5548, %v5812
        %v6966 = vsel %vm2146, %v5549, %v5814
        %v6968 = vsel %vm2146, %v5550, %v5816
        %v6970 = vsel %vm2146, %v5551, %v5818
        %v6972 = vsel %vm2146, %v5552, %v5820
        %v6974 = vsel %vm2146, %v5553, %v5822
        %v6976 = vsel %vm2146, %v5554, %v5824
        %v6978 = vsel %vm2146, %v5555, %v5826
        %v6980 = vsel %vm2146, %v5556, %v5828
        %v6982 = vsel %vm2212, %v6950, %v5926
        %v6984 = vsel %vm2212, %v6952, %v5928
        %v6986 = vsel %vm2212, %v6954, %v5930
        %v6988 = vsel %vm2212, %v6956, %v5932
        %v6990 = vsel %vm2212, %v6958, %v5934
        %v6992 = vsel %vm2212, %v6960, %v5936
        %v6994 = vsel %vm2212, %v6962, %v5938
        %v6996 = vsel %vm2212, %v6964, %v5940
        %v6998 = vsel %vm2212, %v6966, %v5942
        %v7000 = vsel %vm2212, %v6968, %v5944
        %v7002 = vsel %vm2212, %v6970, %v5946
        %v7004 = vsel %vm2212, %v6972, %v5948
        %v7006 = vsel %vm2212, %v6974, %v5950
        %v7008 = vsel %vm2212, %v6976, %v5952
        %v7010 = vsel %vm2212, %v6978, %v5954
        %v7012 = vsel %vm2212, %v6980, %v5956
        %v7014 = vsel %vm2278, %v6982, %v6038
        %v7016 = vsel %vm2278, %v6984, %v6040
        %v7018 = vsel %vm2278, %v6986, %v6042
        %v7020 = vsel %vm2278, %v6988, %v6044
        %v7022 = vsel %vm2278, %v6990, %v6046
        %v7024 = vsel %vm2278, %v6992, %v6048
        %v7026 = vsel %vm2278, %v6994, %v6050
        %v7028 = vsel %vm2278, %v6996, %v6052
        %v7030 = vsel %vm2278, %v6998, %v6054
        %v7032 = vsel %vm2278, %v7000, %v6056
        %v7034 = vsel %vm2278, %v7002, %v6058
        %v7036 = vsel %vm2278, %v7004, %v6060
        %v7038 = vsel %vm2278, %v7006, %v6062
        %v7040 = vsel %vm2278, %v7008, %v6064
        %v7042 = vsel %vm2278, %v7010, %v6066
        %v7044 = vsel %vm2278, %v7012, %v6068
        %v7046 = vsel %vm2344, %v7014, %v6310
        %v7048 = vsel %vm2344, %v7016, %v6312
        %v7050 = vsel %vm2344, %v7018, %v6314
        %v7052 = vsel %vm2344, %v7020, %v6316
        %v7054 = vsel %vm2344, %v7022, %v6318
        %v7056 = vsel %vm2344, %v7024, %v6320
        %v7058 = vsel %vm2344, %v7026, %v6322
        %v7060 = vsel %vm2344, %v7028, %v6324
        %v7062 = vsel %vm2344, %v7030, %v6326
        %v7064 = vsel %vm2344, %v7032, %v6328
        %v7066 = vsel %vm2344, %v7034, %v6330
        %v7068 = vsel %vm2344, %v7036, %v6332
        %v7070 = vsel %vm2344, %v7038, %v6334
        %v7072 = vsel %vm2344, %v7040, %v6336
        %v7074 = vsel %vm2344, %v7042, %v6338
        %v7076 = vsel %vm2344, %v7044, %v6340
        %vm7077 = vcmask 654336
        %v7079 = vsel %vm7077, %v7046, %v6438
        %v7081 = vsel %vm7077, %v7048, %v6440
        %v7083 = vsel %vm7077, %v7050, %v6442
        %v7085 = vsel %vm7077, %v7052, %v6444
        %v7087 = vsel %vm7077, %v7054, %v6446
        %v7089 = vsel %vm7077, %v7056, %v6448
        %v7091 = vsel %vm7077, %v7058, %v6450
        %v7093 = vsel %vm7077, %v7060, %v6452
        %v7095 = vsel %vm7077, %v7062, %v6454
        %v7097 = vsel %vm7077, %v7064, %v6456
        %v7099 = vsel %vm7077, %v7066, %v6458
        %v7101 = vsel %vm7077, %v7068, %v6460
        %v7103 = vsel %vm7077, %v7070, %v6462
        %v7105 = vsel %vm7077, %v7072, %v6464
        %v7107 = vsel %vm7077, %v7074, %v6466
        %v7109 = vsel %vm7077, %v7076, %v6468
        %vm7110 = vcmask 785408
        %v7112 = vsel %vm7110, %v7079, %v6550
        %v7114 = vsel %vm7110, %v7081, %v6552
        %v7116 = vsel %vm7110, %v7083, %v6554
        %v7118 = vsel %vm7110, %v7085, %v6556
        %v7120 = vsel %vm7110, %v7087, %v6558
        %v7122 = vsel %vm7110, %v7089, %v6560
        %v7124 = vsel %vm7110, %v7091, %v6562
        %v7126 = vsel %vm7110, %v7093, %v6564
        %v7128 = vsel %vm7110, %v7095, %v6566
        %v7130 = vsel %vm7110, %v7097, %v6568
        %v7132 = vsel %vm7110, %v7099, %v6570
        %v7134 = vsel %vm7110, %v7101, %v6572
        %v7136 = vsel %vm7110, %v7103, %v6574
        %v7138 = vsel %vm7110, %v7105, %v6576
        %v7140 = vsel %vm7110, %v7107, %v6578
        %v7142 = vsel %vm7110, %v7109, %v6580
        %vm7143 = vcmask 916480
        %v7145 = vsel %vm7143, %v7112, %v6822
        %v7148 = vsel %vm7143, %v7114, %v6824
        %v7151 = vsel %vm7143, %v7116, %v6826
        %v7154 = vsel %vm7143, %v7118, %v6828
        %v7157 = vsel %vm7143, %v7120, %v6830
        %v7160 = vsel %vm7143, %v7122, %v6832
        %v7163 = vsel %vm7143, %v7124, %v6834
        %v7166 = vsel %vm7143, %v7126, %v6836
        %v7169 = vsel %vm7143, %v7128, %v6838
        %v7172 = vsel %vm7143, %v7130, %v6840
        %v7175 = vsel %vm7143, %v7132, %v6842
        %v7178 = vsel %vm7143, %v7134, %v6844
        %v7181 = vsel %vm7143, %v7136, %v6846
        %v7184 = vsel %vm7143, %v7138, %v6848
        %v7187 = vsel %vm7143, %v7140, %v6850
        %v7190 = vsel %vm7143, %v7142, %v6852
        %v7192 = vld [vmem:[%s10] sm:$0xff]
        %v7193 = vld [vmem:[%s10 + $0x8] sm:$0xff]
        %v7194 = vld [vmem:[%s10 + $0x10] sm:$0xff]
        %v7195 = vld [vmem:[%s10 + $0x18] sm:$0xff]
        %v7196 = vld [vmem:[%s11] sm:$0xff]
        %v7197 = vld [vmem:[%s11 + $0x8] sm:$0xff]
        %v7198 = vld [vmem:[%s11 + $0x10] sm:$0xff]
        %v7199 = vld [vmem:[%s11 + $0x18] sm:$0xff]
        %7201 = vset.pattern.permute.xlu0 0
        %7202 = vperm.xlu0 %7201, %v7196
        %v7203 = vpop.permute.xlu0 %7202
        %7206 = vset.pattern.permute.xlu0 0
        %7207 = vperm.xlu0 %7206, %v7197
        %v7208 = vpop.permute.xlu0 %7207
        %7211 = vset.pattern.permute.xlu0 0
        %7212 = vperm.xlu0 %7211, %v7198
        %v7213 = vpop.permute.xlu0 %7212
        %7216 = vset.pattern.permute.xlu0 0
        %7217 = vperm.xlu0 %7216, %v7199
        %v7218 = vpop.permute.xlu0 %7217
        %v7224 = vunpack.c.l.b16 %v7192
        %v7225 = vunpack.c.h.b16 %v7192
        %v7226 = vunpack.c.l.b16 %v7193
        %v7227 = vunpack.c.h.b16 %v7193
        %v7228 = vunpack.c.l.b16 %v7194
        %v7229 = vunpack.c.h.b16 %v7194
        %v7230 = vunpack.c.l.b16 %v7195
        %v7231 = vunpack.c.h.b16 %v7195
        %v7232 = vpack.c.b16 %v7226, %v7224
        %v7233 = vpack.c.b16 %v7227, %v7225
        %v7234 = vpack.c.b16 %v7230, %v7228
        %v7235 = vpack.c.b16 %v7231, %v7229
        %v7239 = vsel %vm2146, %v7233, 0
        %v7242 = vsel %vm2146, %v7235, 0
        %v7245 = vsel %vm2146, %v6903, 0
        %v7248 = vsel %vm2146, %v6906, 0
        %v7251 = vsel %vm2146, %v6909, 0
        %v7254 = vsel %vm2146, %v6912, 0
        %v7257 = vsel %vm2146, %v6915, 0
        %v7260 = vsel %vm2146, %v6918, 0
        %v7263 = vsel %vm2146, %v6921, 0
        %v7266 = vsel %vm2146, %v6924, 0
        %v7269 = vsel %vm2146, %v6927, 0
        %v7272 = vsel %vm2146, %v6930, 0
        %v7275 = vsel %vm2146, %v6933, 0
        %v7278 = vsel %vm2146, %v6936, 0
        %v7281 = vsel %vm2146, %v6939, 0
        %v7284 = vsel %vm2146, %v6942, 0
        %v7287 = vsel %vm2146, %v6945, 0
        %v7290 = vsel %vm2146, %v6948, 0
        %7292 = vmatprep.subr.bf16.mxu0 %v7266
        %7293 = vmatpush1.bf16.xpose.msra.mxu0 %v7166
        %7294 = vmatprep.subr.bf16.mxu0 %v7263
        %7295 = vmatpush1.bf16.xpose.msra.mxu0 %v7163
        %7296 = vmatprep.subr.bf16.mxu0 %v7260
        %7297 = vmatpush1.bf16.xpose.msra.mxu0 %v7160
        %7298 = vmatprep.subr.bf16.mxu0 %v7257
        %7299 = vmatpush1.bf16.xpose.msra.mxu0 %v7157
        %7300 = vmatprep.subr.bf16.mxu0 %v7254
        %7301 = vmatpush1.bf16.xpose.msra.mxu0 %v7154
        %7302 = vmatprep.subr.bf16.mxu0 %v7251
        %7303 = vmatpush1.bf16.xpose.msra.mxu0 %v7151
        %7304 = vmatprep.subr.bf16.mxu0 %v7248
        %7305 = vmatpush1.bf16.xpose.msra.mxu0 %v7148
        %7306 = vmatprep.subr.bf16.mxu0 %v7245
        %7307 = vmatpush1.bf16.xpose.msra.mxu0 %v7145
        %7308 = vmatprep.subr.bf16.mxu0 %v7290
        %7309 = vmatpush2.bf16.xpose.msra.mxu0 %v7190
        %7310 = vmatprep.subr.bf16.mxu0 %v7287
        %7311 = vmatpush2.bf16.xpose.msra.mxu0 %v7187
        %7312 = vmatprep.subr.bf16.mxu0 %v7284
        %7313 = vmatpush2.bf16.xpose.msra.mxu0 %v7184
        %7314 = vmatprep.subr.bf16.mxu0 %v7281
        %7315 = vmatpush2.bf16.xpose.msra.mxu0 %v7181
        %7316 = vmatprep.subr.bf16.mxu0 %v7278
        %7317 = vmatpush2.bf16.xpose.msra.mxu0 %v7178
        %7318 = vmatprep.subr.bf16.mxu0 %v7275
        %7319 = vmatpush2.bf16.xpose.msra.mxu0 %v7175
        %7320 = vmatprep.subr.bf16.mxu0 %v7272
        %7321 = vmatpush2.bf16.xpose.msra.mxu0 %v7172
        %7322 = vmatprep.subr.bf16.mxu0 %v7269
        %7323 = vmatpush2.bf16.xpose.msra.mxu0 %v7169
        %7324 = vmatprep.mubr.bf16.mxu0 %v7239
        %7325 = vmatmul.mubr.bf16.gmra.mxu0 %v7232
        %v7326 = vpop.f32.mrf.mxu0
        %v7327 = vadd.f32 %v7203, %v7326
        %v7328 = vpop.f32.mrf.mxu0
        %v7329 = vadd.f32 %v7203, %v7328
        %v7330 = vpop.f32.mrf.mxu0
        %v7331 = vadd.f32 %v7208, %v7330
        %v7332 = vpop.f32.mrf.mxu0
        %v7333 = vadd.f32 %v7208, %v7332
        %7334 = vmatprep.mubr.bf16.mxu0 %v7242
        %7335 = vmatmul.mubr.bf16.gmra.mxu0 %v7234
        %v7336 = vpop.f32.mrf.mxu0
        %v7337 = vadd.f32 %v7213, %v7336
        %v7338 = vpop.f32.mrf.mxu0
        %v7339 = vadd.f32 %v7213, %v7338
        %v7340 = vpop.f32.mrf.mxu0
        %v7341 = vadd.f32 %v7218, %v7340
        %v7342 = vpop.f32.mrf.mxu0
        %v7343 = vadd.f32 %v7218, %v7342
        %7344 = vdwg.mxu0
        %7345 = vst [vmem:[%s406] sm:$0xff] %v7327
        %7346 = vst [vmem:[%s406 + $0x8] sm:$0xff] %v7329
        %7347 = vst [vmem:[%s406 + $0x10] sm:$0xff] %v7331
        %7348 = vst [vmem:[%s406 + $0x18] sm:$0xff] %v7333
        %7349 = vst [vmem:[%s406 + $0x20] sm:$0xff] %v7337
        %7350 = vst [vmem:[%s406 + $0x28] sm:$0xff] %v7339
        %7351 = vst [vmem:[%s406 + $0x30] sm:$0xff] %v7341
        %7352 = vst [vmem:[%s406 + $0x38] sm:$0xff] %v7343
        %s7353 = sand.u32 %s291, 1
        %s7354 = scalar_lea.sflag [#allocation4], %s7353
        %s7355 = sand.u32 %s291, 1
        %s7356 = smul.addr %s7355, 64
        %s7357 = scalar_lea.vmem [#allocation3], %s7356
        // Predicated region
        $region69: #{tpu_custom_call.1} parent=67 // pred_check
          %p7358 = pneg %p301
        $region70: #{tpu_custom_call.1} parent=67 // pred_check_branch
          %7360 = sbr.rel (%p7358) target = $region72
        $region71: #{tpu_custom_call.1} parent=67 // pred_region
          %s7362 = ssub.s32 1024, 1024
          %7363 = vsyncadd %s7354, %s7362
          %s7364 = smul.addr %s26, 8
          %s7365 = smul.addr %s7364, 128
          %s7366 = scalar_lea.hbm %s12, %s7365
          %s7367 = sshll.u32 %s7357, 4
          %s7368 = int_to_ptr.vmem [resolvable:$true] %s7367
          %7373 = dma.vmem_to_hbm [thread:$0]  %s7368, 1024, %s7366, %s7354, 256, 256, 16
        $region72: #{tpu_custom_call.1} parent=67 // pred_fallthru
          _
      $region68: #{tpu_custom_call.1} parent=5 // pred_fallthru
        _
      %p7374 = scmp.le.s32.totalorder 2, %s21
      // Predicated region
      $region73: #{tpu_custom_call.1} parent=5 // pred_check
        %p7375 = pneg %p7374
      $region74: #{tpu_custom_call.1} parent=5 // pred_check_branch
        %7377 = sbr.rel (%p7375) target = $region76
      $region75: #{tpu_custom_call.1} parent=5 // pred_region
        %s7378 = ssub.s32 %s21, 2
        // Predicated region
        $region77: #{tpu_custom_call.1} parent=75 // pred_check
          %p7379 = pneg %p307
        $region78: #{tpu_custom_call.1} parent=75 // pred_check_branch
          %7381 = sbr.rel (%p7379) target = $region80
        $region79: #{tpu_custom_call.1} parent=75 // pred_region
          %s7382 = sand.u32 %s292, 1
          %s7383 = scalar_lea.sflag [#allocation4], %s7382
          %s7384 = sand.u32 %s292, 1
          %s7385 = smul.addr %s7384, 64
          %s7386 = scalar_lea.vmem [#allocation3], %s7385
          %7387 = dma.done %s7383, 1024
        $region80: #{tpu_custom_call.1} parent=75 // pred_fallthru
          _
      $region76: #{tpu_custom_call.1} parent=5 // pred_fallthru
        _
    $region6: #{tpu_custom_call.1} parent=1 // loop_footer
      %s25 = sadd.s32 1, %s21
    $region7: #{tpu_custom_call.1} parent=1 // loop_footer_branch
      %20 = sbr.rel target = $region3
    $region8: #{tpu_custom_call.1} parent=1 // loop_exit
      _
    %7388 = vsyncpa [#allocation4], 1
    %s7389 = scalar_lea.sflag [#allocation4], 1
    %7390 = vsyncpa %s7389, 1

</llo_original>
